<compile_context>
chip_gen: v7x
topology: tpu7x:2x2x1
jax: 0.10.0
libtpu: 0.0.40
codegen_flags: <defaults>
</compile_context>

<pallas_src>
import jax
import jax.numpy as jnp
from jax.experimental import pallas as pl
from jax.experimental.pallas import tpu as pltpu


# ----------------------------------------------------------------------------
# Kernel A: stacked-LSTM recurrence over a chunk of Tc timesteps (batch = 1).
# ----------------------------------------------------------------------------
def _make_lstm_kernel(num_layers, hidden_size, time_chunk):
    H = hidden_size
    Tc = time_chunk

    def kernel(*refs):
        # refs = x_ref, [w_ih_T, w_hh_T, b]*L, h_out_ref, h_scr, c_scr
        x_ref = refs[0]
        lstm_refs = refs[1:1 + 3 * num_layers]
        out_ref = refs[1 + 3 * num_layers]
        h_scr = refs[2 + 3 * num_layers]
        c_scr = refs[3 + 3 * num_layers]

        @pl.when(pl.program_id(0) == 0)
        def _():  # h0 = c0 = 0 at the start of the sequence
            h_scr[...] = jnp.zeros_like(h_scr)
            c_scr[...] = jnp.zeros_like(c_scr)

        # Carry h/c as values inside the chunk; touch scratch only at chunk
        # boundaries (it persists across the sequential grid axis).
        h_state = [h_scr[l] for l in range(num_layers)]
        c_state = [c_scr[l] for l in range(num_layers)]

        for s in range(Tc):                       # Tc is small -> unrolled
            inp = x_ref[s]                        # (1, E) current timestep
            for l in range(num_layers):
                w_ih_t = lstm_refs[3 * l][...]    # (in_dim, 4H) pre-transposed
                w_hh_t = lstm_refs[3 * l + 1][...]  # (H, 4H)    pre-transposed
                b = lstm_refs[3 * l + 2][...]     # (1, 4H) = b_ih + b_hh

                gates = (jnp.dot(inp, w_ih_t,
                                 preferred_element_type=jnp.float32)
                         + jnp.dot(h_state[l], w_hh_t,
                                   preferred_element_type=jnp.float32)
                         + b)                     # (1, 4H)

                i_g = jax.nn.sigmoid(gates[:, 0 * H:1 * H])
                f_g = jax.nn.sigmoid(gates[:, 1 * H:2 * H])
                g_g = jnp.tanh(gates[:, 2 * H:3 * H])
                o_g = jax.nn.sigmoid(gates[:, 3 * H:4 * H])

                c_new = f_g * c_state[l] + i_g * g_g
                h_new = o_g * jnp.tanh(c_new)
                c_state[l] = c_new
                h_state[l] = h_new
                inp = h_new                       # feed next layer

            out_ref[s] = inp                      # (1, H) hidden of top layer

        for l in range(num_layers):               # write state back once/chunk
            h_scr[l] = h_state[l]
            c_scr[l] = c_state[l]

    return kernel


# ----------------------------------------------------------------------------
# Kernel B: hoisted output Linear  (T, H) @ (H, V) + b  tiled over (time, vocab)
# ----------------------------------------------------------------------------
def _proj_kernel(h_ref, w_ref, b_ref, out_ref):
    out_ref[...] = (jnp.dot(h_ref[...], w_ref[...],
                            preferred_element_type=jnp.float32)
                    + b_ref[...])


def _project(h_all, w_lin_t, b_lin):
    Tp, H = h_all.shape
    V = w_lin_t.shape[1]
    # Tp is always a multiple of 8 (padded by the caller); pick legal tiles.
    tile_t = Tp if Tp <= 128 else 128
    tile_v = V if (V % 128 != 0) else min(V, 512)
    grid = (pl.cdiv(Tp, tile_t), pl.cdiv(V, tile_v))

    return pl.pallas_call(
        _proj_kernel,
        out_shape=jax.ShapeDtypeStruct((Tp, V), jnp.float32),
        grid_spec=pltpu.PrefetchScalarGridSpec(
            num_scalar_prefetch=0,
            grid=grid,
            in_specs=[
                pl.BlockSpec((tile_t, H), lambda i, j: (i, 0)),
                pl.BlockSpec((H, tile_v), lambda i, j: (0, j)),
                pl.BlockSpec((1, tile_v), lambda i, j: (0, j)),
            ],
            out_specs=pl.BlockSpec((tile_t, tile_v), lambda i, j: (i, j)),
        ),
        compiler_params=pltpu.CompilerParams(
            dimension_semantics=("parallel", "parallel")),
    )(h_all, w_lin_t, b_lin)


# ----------------------------------------------------------------------------
# Wrapper: faithful DecoderRNN.forward
# ----------------------------------------------------------------------------
def decoder_rnn_forward(features, captions, lengths, params, time_chunk=8):
    """Returns (lengths[0], vocab_size) logits, matching the PyTorch forward."""
    embed_w = params["embed"]                       # (V, E)
    lstm_params = params["lstm"]                    # list of (w_ih, w_hh, b)
    w_lin, b_lin = params["linear"]                 # (V, H), (1, V)

    num_layers = len(lstm_params)
    H = lstm_params[0][1].shape[1]
    V, E = embed_w.shape
    B, T = captions.shape
    T1 = T + 1

    # pack/pad_packed + "[0][0]" selection: only batch row 0 (the longest
    # sequence, lengths sorted descending) for its first lengths[0] steps is
    # ever consumed -- compute only that.  `lengths` must be host-concrete.
    max_len = min(int(lengths[0]), T1)

    # Glue: embedding gather for row 0, prepend the feature vector as step 0.
    emb0 = jnp.take(embed_w, captions[0], axis=0)                  # (T, E)
    seq0 = jnp.concatenate(
        [features[0:1].astype(jnp.float32), emb0.astype(jnp.float32)],
        axis=0)[:max_len]                                          # (max_len, E)

    Tc = time_chunk
    num_chunks = pl.cdiv(max_len, Tc)
    T_pad = num_chunks * Tc
    if T_pad > max_len:
        seq0 = jnp.pad(seq0, ((0, T_pad - max_len), (0, 0)))
    seq_tm = seq0[:, None, :]                                      # (T_pad, 1, E)

    # Inputs for kernel A: pre-transposed gate weights, pre-summed biases.
    in_specs = [pl.BlockSpec((Tc, 1, E), lambda c: (c, 0, 0))]
    flat_inputs = [seq_tm]
    for l in range(num_layers):
        w_ih, w_hh, b = lstm_params[l]
        in_dim = E if l == 0 else H
        in_specs += [
            pl.BlockSpec((in_dim, 4 * H), lambda c: (0, 0)),
            pl.BlockSpec((H, 4 * H), lambda c: (0, 0)),
            pl.BlockSpec((1, 4 * H), lambda c: (0, 0)),
        ]
        flat_inputs += [
            jnp.transpose(w_ih).astype(jnp.float32),   # (in_dim, 4H)
            jnp.transpose(w_hh).astype(jnp.float32),   # (H, 4H)
            b.astype(jnp.float32),                     # (1, 4H)
        ]

    lstm_kernel = _make_lstm_kernel(num_layers, H, Tc)

    h_all = pl.pallas_call(
        lstm_kernel,
        out_shape=jax.ShapeDtypeStruct((T_pad, 1, H), jnp.float32),
        grid_spec=pltpu.PrefetchScalarGridSpec(
            num_scalar_prefetch=0,
            grid=(num_chunks,),
            in_specs=in_specs,
            out_specs=pl.BlockSpec((Tc, 1, H), lambda c: (c, 0, 0)),
            scratch_shapes=[
                pltpu.VMEM((num_layers, 1, H), jnp.float32),  # h state
                pltpu.VMEM((num_layers, 1, H), jnp.float32),  # c state
            ],
        ),
        compiler_params=pltpu.CompilerParams(
            dimension_semantics=("arbitrary",)),  # time recurrence: sequential
    )(*flat_inputs)                               # (T_pad, 1, H)

    # Hoisted Linear: one lane-dense GEMM over all timesteps.
    h_flat = h_all.reshape(T_pad, H)
    logits = _project(h_flat,
                      jnp.transpose(w_lin).astype(jnp.float32),  # (H, V)
                      b_lin.astype(jnp.float32))                 # (1, V)
    return logits[:max_len]                        # (max_len, V)


# ----------------------------------------------------------------------------
# Param init (PyTorch layout) and pure-JAX reference for a sanity check.
# ----------------------------------------------------------------------------
def init_params(key, vocab_size, embed_size, hidden_size, num_layers):
    ks = jax.random.split(key, 4 * num_layers + 4)
    scale = 0.1
    params = {}
    params["embed"] = scale * jax.random.normal(
        ks[0], (vocab_size, embed_size), jnp.float32)
    lstm = []
    for l in range(num_layers):
        in_dim = embed_size if l == 0 else hidden_size
        w_ih = scale * jax.random.normal(
            ks[1 + 4 * l], (4 * hidden_size, in_dim), jnp.float32)
        w_hh = scale * jax.random.normal(
            ks[2 + 4 * l], (4 * hidden_size, hidden_size), jnp.float32)
        b_ih = scale * jax.random.normal(
            ks[3 + 4 * l], (4 * hidden_size,), jnp.float32)
        b_hh = scale * jax.random.normal(
            ks[4 + 4 * l], (4 * hidden_size,), jnp.float32)
        lstm.append((w_ih, w_hh, (b_ih + b_hh)[None, :]))
    params["lstm"] = lstm
    w_lin = scale * jax.random.normal(
        ks[-2], (vocab_size, hidden_size), jnp.float32)
    b_lin = scale * jax.random.normal(ks[-1], (vocab_size,), jnp.float32)[None, :]
    params["linear"] = (w_lin, b_lin)
    return params


def _reference_forward(features, captions, lengths, params):
    """Pure-JAX DecoderRNN.forward for numerical sanity checking."""
    embed_w = params["embed"]
    lstm_params = params["lstm"]
    w_lin, b_lin = params["linear"]
    H = lstm_params[0][1].shape[1]
    L = len(lstm_params)
    max_len = int(lengths[0])

    emb0 = jnp.take(embed_w, captions[0], axis=0)
    seq0 = jnp.concatenate([features[0:1], emb0], axis=0)[:max_len]
    h = [jnp.zeros((1, H), jnp.float32) for _ in range(L)]
    c = [jnp.zeros((1, H), jnp.float32) for _ in range(L)]
    outs = []
    for t in range(max_len):
        x = seq0[t:t + 1]
        for l in range(L):
            w_ih, w_hh, b = lstm_params[l]
            gates = x @ w_ih.T + h[l] @ w_hh.T + b
            i_g = jax.nn.sigmoid(gates[:, 0 * H:1 * H])
            f_g = jax.nn.sigmoid(gates[:, 1 * H:2 * H])
            g_g = jnp.tanh(gates[:, 2 * H:3 * H])
            o_g = jax.nn.sigmoid(gates[:, 3 * H:4 * H])
            c[l] = f_g * c[l] + i_g * g_g
            h[l] = o_g * jnp.tanh(c[l])
            x = h[l]
        outs.append(x)
    hs = jnp.concatenate(outs, axis=0)
    return hs @ w_lin.T + b_lin


if __name__ == "__main__":
    vocab_size, embed_size, hidden_size, num_layers = 32, 16, 32, 2
    batch, cap_len = 2, 7  # sequence fed to the LSTM has length cap_len + 1 = 8

    key = jax.random.PRNGKey(0)
    k_param, k_feat, k_cap = jax.random.split(key, 3)

    params = init_params(k_param, vocab_size, embed_size, hidden_size, num_layers)
    features = jax.random.normal(k_feat, (batch, embed_size), jnp.float32)
    captions = jax.random.randint(k_cap, (batch, cap_len), 0, vocab_size,
                                  dtype=jnp.int32)
    lengths = [8, 5]  # sorted descending, as pack_padded_sequence requires

    outputs = decoder_rnn_forward(features, captions, lengths, params)
    outputs = jax.block_until_ready(outputs)
    assert outputs.shape == (lengths[0], vocab_size), outputs.shape

    ref = _reference_forward(features, captions, lengths, params)
    max_err = float(jnp.max(jnp.abs(outputs - ref)))
    assert max_err < 2e-2, f"mismatch vs reference: {max_err}"

    print("KERNEL_OK")
</pallas_src>

<mosaic_0001>
module attributes {stable_mosaic.version = 11 : i64} {
  func.func @kernel(%arg0: i32, %arg1: memref<8x1x16xf32, #tpu.memory_space<vmem>>, %arg2: memref<16x128xf32, #tpu.memory_space<vmem>>, %arg3: memref<32x128xf32, #tpu.memory_space<vmem>>, %arg4: memref<1x128xf32, #tpu.memory_space<vmem>>, %arg5: memref<32x128xf32, #tpu.memory_space<vmem>>, %arg6: memref<32x128xf32, #tpu.memory_space<vmem>>, %arg7: memref<1x128xf32, #tpu.memory_space<vmem>>, %arg8: memref<8x1x32xf32, #tpu.memory_space<vmem>>, %arg9: memref<2x1x32xf32, #tpu.memory_space<vmem>>, %arg10: memref<2x1x32xf32, #tpu.memory_space<vmem>>) attributes {dimension_semantics = [#tpu.dimension_semantics<arbitrary>], iteration_bounds = array<i64: 1>, scalar_prefetch = 0 : i64, scratch_operands = 2 : i64, tpu.core_type = #tpu.core_type<tc>, window_params = [{transform_indices = @transform_0, window_bounds = array<i64: 8, 1, 16>}, {pipeline_mode = #tpu.pipeline_mode<synchronous>, transform_indices = @transform_1, window_bounds = array<i64: 16, 128>}, {pipeline_mode = #tpu.pipeline_mode<synchronous>, transform_indices = @transform_2, window_bounds = array<i64: 32, 128>}, {pipeline_mode = #tpu.pipeline_mode<synchronous>, transform_indices = @transform_3, window_bounds = array<i64: 1, 128>}, {pipeline_mode = #tpu.pipeline_mode<synchronous>, transform_indices = @transform_4, window_bounds = array<i64: 32, 128>}, {pipeline_mode = #tpu.pipeline_mode<synchronous>, transform_indices = @transform_5, window_bounds = array<i64: 32, 128>}, {pipeline_mode = #tpu.pipeline_mode<synchronous>, transform_indices = @transform_6, window_bounds = array<i64: 1, 128>}, {transform_indices = @transform_7, window_bounds = array<i64: 8, 1, 32>}]} {
    %c0_i32 = arith.constant 0 : i32
    %0 = arith.cmpi eq, %arg0, %c0_i32 : i32
    %1 = arith.extui %0 : i1 to i32
    %c0_i32_0 = arith.constant 0 : i32
    %2 = arith.cmpi ne, %1, %c0_i32_0 : i32
    scf.if %2 {
      %cst_240 = arith.constant 0.000000e+00 : f32
      %575 = vector.broadcast %cst_240 : f32 to vector<2x1x32xf32>
      %c0_241 = arith.constant 0 : index
      %c0_242 = arith.constant 0 : index
      %c0_243 = arith.constant 0 : index
      %576 = vector.load %arg9[%c0_241, %c0_242, %c0_243] : memref<2x1x32xf32, #tpu.memory_space<vmem>>, vector<2x1x32xf32>
      tpu.vector_store %arg9[%c0_241, %c0_242, %c0_243], %575 {strides = array<i32>} : memref<2x1x32xf32, #tpu.memory_space<vmem>>, vector<2x1x32xf32>,
      %cst_244 = arith.constant 0.000000e+00 : f32
      %577 = vector.broadcast %cst_244 : f32 to vector<2x1x32xf32>
      %c0_245 = arith.constant 0 : index
      %c0_246 = arith.constant 0 : index
      %c0_247 = arith.constant 0 : index
      %578 = vector.load %arg10[%c0_245, %c0_246, %c0_247] : memref<2x1x32xf32, #tpu.memory_space<vmem>>, vector<2x1x32xf32>
      tpu.vector_store %arg10[%c0_245, %c0_246, %c0_247], %577 {strides = array<i32>} : memref<2x1x32xf32, #tpu.memory_space<vmem>>, vector<2x1x32xf32>,
    } else {
    }
    %c0 = arith.constant 0 : index
    %c0_1 = arith.constant 0 : index
    %c0_2 = arith.constant 0 : index
    %3 = vector.load %arg9[%c0, %c0_1, %c0_2] : memref<2x1x32xf32, #tpu.memory_space<vmem>>, vector<1x1x32xf32>
    %4 = vector.shape_cast %3 : vector<1x1x32xf32> to vector<1x32xf32>
    %c1 = arith.constant 1 : index
    %c0_3 = arith.constant 0 : index
    %c0_4 = arith.constant 0 : index
    %5 = vector.load %arg9[%c1, %c0_3, %c0_4] : memref<2x1x32xf32, #tpu.memory_space<vmem>>, vector<1x1x32xf32>
    %6 = vector.shape_cast %5 : vector<1x1x32xf32> to vector<1x32xf32>
    %c0_5 = arith.constant 0 : index
    %c0_6 = arith.constant 0 : index
    %c0_7 = arith.constant 0 : index
    %7 = vector.load %arg10[%c0_5, %c0_6, %c0_7] : memref<2x1x32xf32, #tpu.memory_space<vmem>>, vector<1x1x32xf32>
    %8 = vector.shape_cast %7 : vector<1x1x32xf32> to vector<1x32xf32>
    %c1_8 = arith.constant 1 : index
    %c0_9 = arith.constant 0 : index
    %c0_10 = arith.constant 0 : index
    %9 = vector.load %arg10[%c1_8, %c0_9, %c0_10] : memref<2x1x32xf32, #tpu.memory_space<vmem>>, vector<1x1x32xf32>
    %10 = vector.shape_cast %9 : vector<1x1x32xf32> to vector<1x32xf32>
    %c0_11 = arith.constant 0 : index
    %c0_12 = arith.constant 0 : index
    %c0_13 = arith.constant 0 : index
    %11 = vector.load %arg1[%c0_11, %c0_12, %c0_13] : memref<8x1x16xf32, #tpu.memory_space<vmem>>, vector<1x1x16xf32>
    %12 = vector.shape_cast %11 : vector<1x1x16xf32> to vector<1x16xf32>
    %c0_14 = arith.constant 0 : index
    %c0_15 = arith.constant 0 : index
    %13 = vector.load %arg2[%c0_14, %c0_15] : memref<16x128xf32, #tpu.memory_space<vmem>>, vector<16x128xf32>
    %c0_16 = arith.constant 0 : index
    %c0_17 = arith.constant 0 : index
    %14 = vector.load %arg3[%c0_16, %c0_17] : memref<32x128xf32, #tpu.memory_space<vmem>>, vector<32x128xf32>
    %c0_18 = arith.constant 0 : index
    %c0_19 = arith.constant 0 : index
    %15 = vector.load %arg4[%c0_18, %c0_19] : memref<1x128xf32, #tpu.memory_space<vmem>>, vector<1x128xf32>
    %cst = arith.constant dense<0.000000e+00> : vector<1x128xf32>
    %16 = tpu.matmul %12, %13, %cst {dimension_numbers = #tpu.dot_dimension_numbers<[1], [0], [0], [1], [0, 0, 1, 1], [], []>} : vector<1x16xf32>, vector<16x128xf32>, vector<1x128xf32> -> vector<1x128xf32>
    %cst_20 = arith.constant dense<0.000000e+00> : vector<1x128xf32>
    %17 = tpu.matmul %4, %14, %cst_20 {dimension_numbers = #tpu.dot_dimension_numbers<[1], [0], [0], [1], [0, 0, 1, 1], [], []>} : vector<1x32xf32>, vector<32x128xf32>, vector<1x128xf32> -> vector<1x128xf32>
    %18 = arith.addf %16, %17 : vector<1x128xf32>
    %19 = arith.addf %18, %15 : vector<1x128xf32>
    %20 = vector.extract_strided_slice %19 {offsets = [0, 0], sizes = [1, 32], strides = [1, 1]} : vector<1x128xf32> to vector<1x32xf32>
    %21 = arith.negf %20 : vector<1x32xf32>
    %22 = math.exp %21 : vector<1x32xf32>
    %cst_21 = arith.constant 1.000000e+00 : f32
    %23 = vector.broadcast %cst_21 : f32 to vector<1x32xf32>
    %24 = arith.addf %23, %22 : vector<1x32xf32>
    %25 = arith.divf %23, %24 : vector<1x32xf32>
    %26 = vector.extract_strided_slice %19 {offsets = [0, 32], sizes = [1, 32], strides = [1, 1]} : vector<1x128xf32> to vector<1x32xf32>
    %27 = arith.negf %26 : vector<1x32xf32>
    %28 = math.exp %27 : vector<1x32xf32>
    %cst_22 = arith.constant 1.000000e+00 : f32
    %29 = vector.broadcast %cst_22 : f32 to vector<1x32xf32>
    %30 = arith.addf %29, %28 : vector<1x32xf32>
    %31 = arith.divf %29, %30 : vector<1x32xf32>
    %32 = vector.extract_strided_slice %19 {offsets = [0, 64], sizes = [1, 32], strides = [1, 1]} : vector<1x128xf32> to vector<1x32xf32>
    %33 = math.tanh %32 : vector<1x32xf32>
    %34 = vector.extract_strided_slice %19 {offsets = [0, 96], sizes = [1, 32], strides = [1, 1]} : vector<1x128xf32> to vector<1x32xf32>
    %35 = arith.negf %34 : vector<1x32xf32>
    %36 = math.exp %35 : vector<1x32xf32>
    %cst_23 = arith.constant 1.000000e+00 : f32
    %37 = vector.broadcast %cst_23 : f32 to vector<1x32xf32>
    %38 = arith.addf %37, %36 : vector<1x32xf32>
    %39 = arith.divf %37, %38 : vector<1x32xf32>
    %40 = arith.mulf %31, %8 : vector<1x32xf32>
    %41 = arith.mulf %25, %33 : vector<1x32xf32>
    %42 = arith.addf %40, %41 : vector<1x32xf32>
    %43 = math.tanh %42 : vector<1x32xf32>
    %44 = arith.mulf %39, %43 : vector<1x32xf32>
    %c0_24 = arith.constant 0 : index
    %c0_25 = arith.constant 0 : index
    %45 = vector.load %arg5[%c0_24, %c0_25] : memref<32x128xf32, #tpu.memory_space<vmem>>, vector<32x128xf32>
    %c0_26 = arith.constant 0 : index
    %c0_27 = arith.constant 0 : index
    %46 = vector.load %arg6[%c0_26, %c0_27] : memref<32x128xf32, #tpu.memory_space<vmem>>, vector<32x128xf32>
    %c0_28 = arith.constant 0 : index
    %c0_29 = arith.constant 0 : index
    %47 = vector.load %arg7[%c0_28, %c0_29] : memref<1x128xf32, #tpu.memory_space<vmem>>, vector<1x128xf32>
    %cst_30 = arith.constant dense<0.000000e+00> : vector<1x128xf32>
    %48 = tpu.matmul %44, %45, %cst_30 {dimension_numbers = #tpu.dot_dimension_numbers<[1], [0], [0], [1], [0, 0, 1, 1], [], []>} : vector<1x32xf32>, vector<32x128xf32>, vector<1x128xf32> -> vector<1x128xf32>
    %cst_31 = arith.constant dense<0.000000e+00> : vector<1x128xf32>
    %49 = tpu.matmul %6, %46, %cst_31 {dimension_numbers = #tpu.dot_dimension_numbers<[1], [0], [0], [1], [0, 0, 1, 1], [], []>} : vector<1x32xf32>, vector<32x128xf32>, vector<1x128xf32> -> vector<1x128xf32>
    %50 = arith.addf %48, %49 : vector<1x128xf32>
    %51 = arith.addf %50, %47 : vector<1x128xf32>
    %52 = vector.extract_strided_slice %51 {offsets = [0, 0], sizes = [1, 32], strides = [1, 1]} : vector<1x128xf32> to vector<1x32xf32>
    %53 = arith.negf %52 : vector<1x32xf32>
    %54 = math.exp %53 : vector<1x32xf32>
    %cst_32 = arith.constant 1.000000e+00 : f32
    %55 = vector.broadcast %cst_32 : f32 to vector<1x32xf32>
    %56 = arith.addf %55, %54 : vector<1x32xf32>
    %57 = arith.divf %55, %56 : vector<1x32xf32>
    %58 = vector.extract_strided_slice %51 {offsets = [0, 32], sizes = [1, 32], strides = [1, 1]} : vector<1x128xf32> to vector<1x32xf32>
    %59 = arith.negf %58 : vector<1x32xf32>
    %60 = math.exp %59 : vector<1x32xf32>
    %cst_33 = arith.constant 1.000000e+00 : f32
    %61 = vector.broadcast %cst_33 : f32 to vector<1x32xf32>
    %62 = arith.addf %61, %60 : vector<1x32xf32>
    %63 = arith.divf %61, %62 : vector<1x32xf32>
    %64 = vector.extract_strided_slice %51 {offsets = [0, 64], sizes = [1, 32], strides = [1, 1]} : vector<1x128xf32> to vector<1x32xf32>
    %65 = math.tanh %64 : vector<1x32xf32>
    %66 = vector.extract_strided_slice %51 {offsets = [0, 96], sizes = [1, 32], strides = [1, 1]} : vector<1x128xf32> to vector<1x32xf32>
    %67 = arith.negf %66 : vector<1x32xf32>
    %68 = math.exp %67 : vector<1x32xf32>
    %cst_34 = arith.constant 1.000000e+00 : f32
    %69 = vector.broadcast %cst_34 : f32 to vector<1x32xf32>
    %70 = arith.addf %69, %68 : vector<1x32xf32>
    %71 = arith.divf %69, %70 : vector<1x32xf32>
    %72 = arith.mulf %63, %10 : vector<1x32xf32>
    %73 = arith.mulf %57, %65 : vector<1x32xf32>
    %74 = arith.addf %72, %73 : vector<1x32xf32>
    %75 = math.tanh %74 : vector<1x32xf32>
    %76 = arith.mulf %71, %75 : vector<1x32xf32>
    %c0_35 = arith.constant 0 : index
    %c0_36 = arith.constant 0 : index
    %c0_37 = arith.constant 0 : index
    %77 = vector.load %arg8[%c0_35, %c0_36, %c0_37] : memref<8x1x32xf32, #tpu.memory_space<vmem>>, vector<1x1x32xf32>
    %78 = vector.shape_cast %77 : vector<1x1x32xf32> to vector<1x32xf32>
    %79 = vector.shape_cast %76 : vector<1x32xf32> to vector<1x1x32xf32>
    tpu.vector_store %arg8[%c0_35, %c0_36, %c0_37], %79 {strides = array<i32>} : memref<8x1x32xf32, #tpu.memory_space<vmem>>, vector<1x1x32xf32>,
    %c1_38 = arith.constant 1 : index
    %c0_39 = arith.constant 0 : index
    %c0_40 = arith.constant 0 : index
    %80 = vector.load %arg1[%c1_38, %c0_39, %c0_40] : memref<8x1x16xf32, #tpu.memory_space<vmem>>, vector<1x1x16xf32>
    %81 = vector.shape_cast %80 : vector<1x1x16xf32> to vector<1x16xf32>
    %c0_41 = arith.constant 0 : index
    %c0_42 = arith.constant 0 : index
    %82 = vector.load %arg2[%c0_41, %c0_42] : memref<16x128xf32, #tpu.memory_space<vmem>>, vector<16x128xf32>
    %c0_43 = arith.constant 0 : index
    %c0_44 = arith.constant 0 : index
    %83 = vector.load %arg3[%c0_43, %c0_44] : memref<32x128xf32, #tpu.memory_space<vmem>>, vector<32x128xf32>
    %c0_45 = arith.constant 0 : index
    %c0_46 = arith.constant 0 : index
    %84 = vector.load %arg4[%c0_45, %c0_46] : memref<1x128xf32, #tpu.memory_space<vmem>>, vector<1x128xf32>
    %cst_47 = arith.constant dense<0.000000e+00> : vector<1x128xf32>
    %85 = tpu.matmul %81, %82, %cst_47 {dimension_numbers = #tpu.dot_dimension_numbers<[1], [0], [0], [1], [0, 0, 1, 1], [], []>} : vector<1x16xf32>, vector<16x128xf32>, vector<1x128xf32> -> vector<1x128xf32>
    %cst_48 = arith.constant dense<0.000000e+00> : vector<1x128xf32>
    %86 = tpu.matmul %44, %83, %cst_48 {dimension_numbers = #tpu.dot_dimension_numbers<[1], [0], [0], [1], [0, 0, 1, 1], [], []>} : vector<1x32xf32>, vector<32x128xf32>, vector<1x128xf32> -> vector<1x128xf32>
    %87 = arith.addf %85, %86 : vector<1x128xf32>
    %88 = arith.addf %87, %84 : vector<1x128xf32>
    %89 = vector.extract_strided_slice %88 {offsets = [0, 0], sizes = [1, 32], strides = [1, 1]} : vector<1x128xf32> to vector<1x32xf32>
    %90 = arith.negf %89 : vector<1x32xf32>
    %91 = math.exp %90 : vector<1x32xf32>
    %cst_49 = arith.constant 1.000000e+00 : f32
    %92 = vector.broadcast %cst_49 : f32 to vector<1x32xf32>
    %93 = arith.addf %92, %91 : vector<1x32xf32>
    %94 = arith.divf %92, %93 : vector<1x32xf32>
    %95 = vector.extract_strided_slice %88 {offsets = [0, 32], sizes = [1, 32], strides = [1, 1]} : vector<1x128xf32> to vector<1x32xf32>
    %96 = arith.negf %95 : vector<1x32xf32>
    %97 = math.exp %96 : vector<1x32xf32>
    %cst_50 = arith.constant 1.000000e+00 : f32
    %98 = vector.broadcast %cst_50 : f32 to vector<1x32xf32>
    %99 = arith.addf %98, %97 : vector<1x32xf32>
    %100 = arith.divf %98, %99 : vector<1x32xf32>
    %101 = vector.extract_strided_slice %88 {offsets = [0, 64], sizes = [1, 32], strides = [1, 1]} : vector<1x128xf32> to vector<1x32xf32>
    %102 = math.tanh %101 : vector<1x32xf32>
    %103 = vector.extract_strided_slice %88 {offsets = [0, 96], sizes = [1, 32], strides = [1, 1]} : vector<1x128xf32> to vector<1x32xf32>
    %104 = arith.negf %103 : vector<1x32xf32>
    %105 = math.exp %104 : vector<1x32xf32>
    %cst_51 = arith.constant 1.000000e+00 : f32
    %106 = vector.broadcast %cst_51 : f32 to vector<1x32xf32>
    %107 = arith.addf %106, %105 : vector<1x32xf32>
    %108 = arith.divf %106, %107 : vector<1x32xf32>
    %109 = arith.mulf %100, %42 : vector<1x32xf32>
    %110 = arith.mulf %94, %102 : vector<1x32xf32>
    %111 = arith.addf %109, %110 : vector<1x32xf32>
    %112 = math.tanh %111 : vector<1x32xf32>
    %113 = arith.mulf %108, %112 : vector<1x32xf32>
    %c0_52 = arith.constant 0 : index
    %c0_53 = arith.constant 0 : index
    %114 = vector.load %arg5[%c0_52, %c0_53] : memref<32x128xf32, #tpu.memory_space<vmem>>, vector<32x128xf32>
    %c0_54 = arith.constant 0 : index
    %c0_55 = arith.constant 0 : index
    %115 = vector.load %arg6[%c0_54, %c0_55] : memref<32x128xf32, #tpu.memory_space<vmem>>, vector<32x128xf32>
    %c0_56 = arith.constant 0 : index
    %c0_57 = arith.constant 0 : index
    %116 = vector.load %arg7[%c0_56, %c0_57] : memref<1x128xf32, #tpu.memory_space<vmem>>, vector<1x128xf32>
    %cst_58 = arith.constant dense<0.000000e+00> : vector<1x128xf32>
    %117 = tpu.matmul %113, %114, %cst_58 {dimension_numbers = #tpu.dot_dimension_numbers<[1], [0], [0], [1], [0, 0, 1, 1], [], []>} : vector<1x32xf32>, vector<32x128xf32>, vector<1x128xf32> -> vector<1x128xf32>
    %cst_59 = arith.constant dense<0.000000e+00> : vector<1x128xf32>
    %118 = tpu.matmul %76, %115, %cst_59 {dimension_numbers = #tpu.dot_dimension_numbers<[1], [0], [0], [1], [0, 0, 1, 1], [], []>} : vector<1x32xf32>, vector<32x128xf32>, vector<1x128xf32> -> vector<1x128xf32>
    %119 = arith.addf %117, %118 : vector<1x128xf32>
    %120 = arith.addf %119, %116 : vector<1x128xf32>
    %121 = vector.extract_strided_slice %120 {offsets = [0, 0], sizes = [1, 32], strides = [1, 1]} : vector<1x128xf32> to vector<1x32xf32>
    %122 = arith.negf %121 : vector<1x32xf32>
    %123 = math.exp %122 : vector<1x32xf32>
    %cst_60 = arith.constant 1.000000e+00 : f32
    %124 = vector.broadcast %cst_60 : f32 to vector<1x32xf32>
    %125 = arith.addf %124, %123 : vector<1x32xf32>
    %126 = arith.divf %124, %125 : vector<1x32xf32>
    %127 = vector.extract_strided_slice %120 {offsets = [0, 32], sizes = [1, 32], strides = [1, 1]} : vector<1x128xf32> to vector<1x32xf32>
    %128 = arith.negf %127 : vector<1x32xf32>
    %129 = math.exp %128 : vector<1x32xf32>
    %cst_61 = arith.constant 1.000000e+00 : f32
    %130 = vector.broadcast %cst_61 : f32 to vector<1x32xf32>
    %131 = arith.addf %130, %129 : vector<1x32xf32>
    %132 = arith.divf %130, %131 : vector<1x32xf32>
    %133 = vector.extract_strided_slice %120 {offsets = [0, 64], sizes = [1, 32], strides = [1, 1]} : vector<1x128xf32> to vector<1x32xf32>
    %134 = math.tanh %133 : vector<1x32xf32>
    %135 = vector.extract_strided_slice %120 {offsets = [0, 96], sizes = [1, 32], strides = [1, 1]} : vector<1x128xf32> to vector<1x32xf32>
    %136 = arith.negf %135 : vector<1x32xf32>
    %137 = math.exp %136 : vector<1x32xf32>
    %cst_62 = arith.constant 1.000000e+00 : f32
    %138 = vector.broadcast %cst_62 : f32 to vector<1x32xf32>
    %139 = arith.addf %138, %137 : vector<1x32xf32>
    %140 = arith.divf %138, %139 : vector<1x32xf32>
    %141 = arith.mulf %132, %74 : vector<1x32xf32>
    %142 = arith.mulf %126, %134 : vector<1x32xf32>
    %143 = arith.addf %141, %142 : vector<1x32xf32>
    %144 = math.tanh %143 : vector<1x32xf32>
    %145 = arith.mulf %140, %144 : vector<1x32xf32>
    %c1_63 = arith.constant 1 : index
    %c0_64 = arith.constant 0 : index
    %c0_65 = arith.constant 0 : index
    %146 = vector.load %arg8[%c1_63, %c0_64, %c0_65] : memref<8x1x32xf32, #tpu.memory_space<vmem>>, vector<1x1x32xf32>
    %147 = vector.shape_cast %146 : vector<1x1x32xf32> to vector<1x32xf32>
    %148 = vector.shape_cast %145 : vector<1x32xf32> to vector<1x1x32xf32>
    tpu.vector_store %arg8[%c1_63, %c0_64, %c0_65], %148 {strides = array<i32>} : memref<8x1x32xf32, #tpu.memory_space<vmem>>, vector<1x1x32xf32>,
    %c2 = arith.constant 2 : index
    %c0_66 = arith.constant 0 : index
    %c0_67 = arith.constant 0 : index
    %149 = vector.load %arg1[%c2, %c0_66, %c0_67] : memref<8x1x16xf32, #tpu.memory_space<vmem>>, vector<1x1x16xf32>
    %150 = vector.shape_cast %149 : vector<1x1x16xf32> to vector<1x16xf32>
    %c0_68 = arith.constant 0 : index
    %c0_69 = arith.constant 0 : index
    %151 = vector.load %arg2[%c0_68, %c0_69] : memref<16x128xf32, #tpu.memory_space<vmem>>, vector<16x128xf32>
    %c0_70 = arith.constant 0 : index
    %c0_71 = arith.constant 0 : index
    %152 = vector.load %arg3[%c0_70, %c0_71] : memref<32x128xf32, #tpu.memory_space<vmem>>, vector<32x128xf32>
    %c0_72 = arith.constant 0 : index
    %c0_73 = arith.constant 0 : index
    %153 = vector.load %arg4[%c0_72, %c0_73] : memref<1x128xf32, #tpu.memory_space<vmem>>, vector<1x128xf32>
    %cst_74 = arith.constant dense<0.000000e+00> : vector<1x128xf32>
    %154 = tpu.matmul %150, %151, %cst_74 {dimension_numbers = #tpu.dot_dimension_numbers<[1], [0], [0], [1], [0, 0, 1, 1], [], []>} : vector<1x16xf32>, vector<16x128xf32>, vector<1x128xf32> -> vector<1x128xf32>
    %cst_75 = arith.constant dense<0.000000e+00> : vector<1x128xf32>
    %155 = tpu.matmul %113, %152, %cst_75 {dimension_numbers = #tpu.dot_dimension_numbers<[1], [0], [0], [1], [0, 0, 1, 1], [], []>} : vector<1x32xf32>, vector<32x128xf32>, vector<1x128xf32> -> vector<1x128xf32>
    %156 = arith.addf %154, %155 : vector<1x128xf32>
    %157 = arith.addf %156, %153 : vector<1x128xf32>
    %158 = vector.extract_strided_slice %157 {offsets = [0, 0], sizes = [1, 32], strides = [1, 1]} : vector<1x128xf32> to vector<1x32xf32>
    %159 = arith.negf %158 : vector<1x32xf32>
    %160 = math.exp %159 : vector<1x32xf32>
    %cst_76 = arith.constant 1.000000e+00 : f32
    %161 = vector.broadcast %cst_76 : f32 to vector<1x32xf32>
    %162 = arith.addf %161, %160 : vector<1x32xf32>
    %163 = arith.divf %161, %162 : vector<1x32xf32>
    %164 = vector.extract_strided_slice %157 {offsets = [0, 32], sizes = [1, 32], strides = [1, 1]} : vector<1x128xf32> to vector<1x32xf32>
    %165 = arith.negf %164 : vector<1x32xf32>
    %166 = math.exp %165 : vector<1x32xf32>
    %cst_77 = arith.constant 1.000000e+00 : f32
    %167 = vector.broadcast %cst_77 : f32 to vector<1x32xf32>
    %168 = arith.addf %167, %166 : vector<1x32xf32>
    %169 = arith.divf %167, %168 : vector<1x32xf32>
    %170 = vector.extract_strided_slice %157 {offsets = [0, 64], sizes = [1, 32], strides = [1, 1]} : vector<1x128xf32> to vector<1x32xf32>
    %171 = math.tanh %170 : vector<1x32xf32>
    %172 = vector.extract_strided_slice %157 {offsets = [0, 96], sizes = [1, 32], strides = [1, 1]} : vector<1x128xf32> to vector<1x32xf32>
    %173 = arith.negf %172 : vector<1x32xf32>
    %174 = math.exp %173 : vector<1x32xf32>
    %cst_78 = arith.constant 1.000000e+00 : f32
    %175 = vector.broadcast %cst_78 : f32 to vector<1x32xf32>
    %176 = arith.addf %175, %174 : vector<1x32xf32>
    %177 = arith.divf %175, %176 : vector<1x32xf32>
    %178 = arith.mulf %169, %111 : vector<1x32xf32>
    %179 = arith.mulf %163, %171 : vector<1x32xf32>
    %180 = arith.addf %178, %179 : vector<1x32xf32>
    %181 = math.tanh %180 : vector<1x32xf32>
    %182 = arith.mulf %177, %181 : vector<1x32xf32>
    %c0_79 = arith.constant 0 : index
    %c0_80 = arith.constant 0 : index
    %183 = vector.load %arg5[%c0_79, %c0_80] : memref<32x128xf32, #tpu.memory_space<vmem>>, vector<32x128xf32>
    %c0_81 = arith.constant 0 : index
    %c0_82 = arith.constant 0 : index
    %184 = vector.load %arg6[%c0_81, %c0_82] : memref<32x128xf32, #tpu.memory_space<vmem>>, vector<32x128xf32>
    %c0_83 = arith.constant 0 : index
    %c0_84 = arith.constant 0 : index
    %185 = vector.load %arg7[%c0_83, %c0_84] : memref<1x128xf32, #tpu.memory_space<vmem>>, vector<1x128xf32>
    %cst_85 = arith.constant dense<0.000000e+00> : vector<1x128xf32>
    %186 = tpu.matmul %182, %183, %cst_85 {dimension_numbers = #tpu.dot_dimension_numbers<[1], [0], [0], [1], [0, 0, 1, 1], [], []>} : vector<1x32xf32>, vector<32x128xf32>, vector<1x128xf32> -> vector<1x128xf32>
    %cst_86 = arith.constant dense<0.000000e+00> : vector<1x128xf32>
    %187 = tpu.matmul %145, %184, %cst_86 {dimension_numbers = #tpu.dot_dimension_numbers<[1], [0], [0], [1], [0, 0, 1, 1], [], []>} : vector<1x32xf32>, vector<32x128xf32>, vector<1x128xf32> -> vector<1x128xf32>
    %188 = arith.addf %186, %187 : vector<1x128xf32>
    %189 = arith.addf %188, %185 : vector<1x128xf32>
    %190 = vector.extract_strided_slice %189 {offsets = [0, 0], sizes = [1, 32], strides = [1, 1]} : vector<1x128xf32> to vector<1x32xf32>
    %191 = arith.negf %190 : vector<1x32xf32>
    %192 = math.exp %191 : vector<1x32xf32>
    %cst_87 = arith.constant 1.000000e+00 : f32
    %193 = vector.broadcast %cst_87 : f32 to vector<1x32xf32>
    %194 = arith.addf %193, %192 : vector<1x32xf32>
    %195 = arith.divf %193, %194 : vector<1x32xf32>
    %196 = vector.extract_strided_slice %189 {offsets = [0, 32], sizes = [1, 32], strides = [1, 1]} : vector<1x128xf32> to vector<1x32xf32>
    %197 = arith.negf %196 : vector<1x32xf32>
    %198 = math.exp %197 : vector<1x32xf32>
    %cst_88 = arith.constant 1.000000e+00 : f32
    %199 = vector.broadcast %cst_88 : f32 to vector<1x32xf32>
    %200 = arith.addf %199, %198 : vector<1x32xf32>
    %201 = arith.divf %199, %200 : vector<1x32xf32>
    %202 = vector.extract_strided_slice %189 {offsets = [0, 64], sizes = [1, 32], strides = [1, 1]} : vector<1x128xf32> to vector<1x32xf32>
    %203 = math.tanh %202 : vector<1x32xf32>
    %204 = vector.extract_strided_slice %189 {offsets = [0, 96], sizes = [1, 32], strides = [1, 1]} : vector<1x128xf32> to vector<1x32xf32>
    %205 = arith.negf %204 : vector<1x32xf32>
    %206 = math.exp %205 : vector<1x32xf32>
    %cst_89 = arith.constant 1.000000e+00 : f32
    %207 = vector.broadcast %cst_89 : f32 to vector<1x32xf32>
    %208 = arith.addf %207, %206 : vector<1x32xf32>
    %209 = arith.divf %207, %208 : vector<1x32xf32>
    %210 = arith.mulf %201, %143 : vector<1x32xf32>
    %211 = arith.mulf %195, %203 : vector<1x32xf32>
    %212 = arith.addf %210, %211 : vector<1x32xf32>
    %213 = math.tanh %212 : vector<1x32xf32>
    %214 = arith.mulf %209, %213 : vector<1x32xf32>
    %c2_90 = arith.constant 2 : index
    %c0_91 = arith.constant 0 : index
    %c0_92 = arith.constant 0 : index
    %215 = vector.load %arg8[%c2_90, %c0_91, %c0_92] : memref<8x1x32xf32, #tpu.memory_space<vmem>>, vector<1x1x32xf32>
    %216 = vector.shape_cast %215 : vector<1x1x32xf32> to vector<1x32xf32>
    %217 = vector.shape_cast %214 : vector<1x32xf32> to vector<1x1x32xf32>
    tpu.vector_store %arg8[%c2_90, %c0_91, %c0_92], %217 {strides = array<i32>} : memref<8x1x32xf32, #tpu.memory_space<vmem>>, vector<1x1x32xf32>,
    %c3 = arith.constant 3 : index
    %c0_93 = arith.constant 0 : index
    %c0_94 = arith.constant 0 : index
    %218 = vector.load %arg1[%c3, %c0_93, %c0_94] : memref<8x1x16xf32, #tpu.memory_space<vmem>>, vector<1x1x16xf32>
    %219 = vector.shape_cast %218 : vector<1x1x16xf32> to vector<1x16xf32>
    %c0_95 = arith.constant 0 : index
    %c0_96 = arith.constant 0 : index
    %220 = vector.load %arg2[%c0_95, %c0_96] : memref<16x128xf32, #tpu.memory_space<vmem>>, vector<16x128xf32>
    %c0_97 = arith.constant 0 : index
    %c0_98 = arith.constant 0 : index
    %221 = vector.load %arg3[%c0_97, %c0_98] : memref<32x128xf32, #tpu.memory_space<vmem>>, vector<32x128xf32>
    %c0_99 = arith.constant 0 : index
    %c0_100 = arith.constant 0 : index
    %222 = vector.load %arg4[%c0_99, %c0_100] : memref<1x128xf32, #tpu.memory_space<vmem>>, vector<1x128xf32>
    %cst_101 = arith.constant dense<0.000000e+00> : vector<1x128xf32>
    %223 = tpu.matmul %219, %220, %cst_101 {dimension_numbers = #tpu.dot_dimension_numbers<[1], [0], [0], [1], [0, 0, 1, 1], [], []>} : vector<1x16xf32>, vector<16x128xf32>, vector<1x128xf32> -> vector<1x128xf32>
    %cst_102 = arith.constant dense<0.000000e+00> : vector<1x128xf32>
    %224 = tpu.matmul %182, %221, %cst_102 {dimension_numbers = #tpu.dot_dimension_numbers<[1], [0], [0], [1], [0, 0, 1, 1], [], []>} : vector<1x32xf32>, vector<32x128xf32>, vector<1x128xf32> -> vector<1x128xf32>
    %225 = arith.addf %223, %224 : vector<1x128xf32>
    %226 = arith.addf %225, %222 : vector<1x128xf32>
    %227 = vector.extract_strided_slice %226 {offsets = [0, 0], sizes = [1, 32], strides = [1, 1]} : vector<1x128xf32> to vector<1x32xf32>
    %228 = arith.negf %227 : vector<1x32xf32>
    %229 = math.exp %228 : vector<1x32xf32>
    %cst_103 = arith.constant 1.000000e+00 : f32
    %230 = vector.broadcast %cst_103 : f32 to vector<1x32xf32>
    %231 = arith.addf %230, %229 : vector<1x32xf32>
    %232 = arith.divf %230, %231 : vector<1x32xf32>
    %233 = vector.extract_strided_slice %226 {offsets = [0, 32], sizes = [1, 32], strides = [1, 1]} : vector<1x128xf32> to vector<1x32xf32>
    %234 = arith.negf %233 : vector<1x32xf32>
    %235 = math.exp %234 : vector<1x32xf32>
    %cst_104 = arith.constant 1.000000e+00 : f32
    %236 = vector.broadcast %cst_104 : f32 to vector<1x32xf32>
    %237 = arith.addf %236, %235 : vector<1x32xf32>
    %238 = arith.divf %236, %237 : vector<1x32xf32>
    %239 = vector.extract_strided_slice %226 {offsets = [0, 64], sizes = [1, 32], strides = [1, 1]} : vector<1x128xf32> to vector<1x32xf32>
    %240 = math.tanh %239 : vector<1x32xf32>
    %241 = vector.extract_strided_slice %226 {offsets = [0, 96], sizes = [1, 32], strides = [1, 1]} : vector<1x128xf32> to vector<1x32xf32>
    %242 = arith.negf %241 : vector<1x32xf32>
    %243 = math.exp %242 : vector<1x32xf32>
    %cst_105 = arith.constant 1.000000e+00 : f32
    %244 = vector.broadcast %cst_105 : f32 to vector<1x32xf32>
    %245 = arith.addf %244, %243 : vector<1x32xf32>
    %246 = arith.divf %244, %245 : vector<1x32xf32>
    %247 = arith.mulf %238, %180 : vector<1x32xf32>
    %248 = arith.mulf %232, %240 : vector<1x32xf32>
    %249 = arith.addf %247, %248 : vector<1x32xf32>
    %250 = math.tanh %249 : vector<1x32xf32>
    %251 = arith.mulf %246, %250 : vector<1x32xf32>
    %c0_106 = arith.constant 0 : index
    %c0_107 = arith.constant 0 : index
    %252 = vector.load %arg5[%c0_106, %c0_107] : memref<32x128xf32, #tpu.memory_space<vmem>>, vector<32x128xf32>
    %c0_108 = arith.constant 0 : index
    %c0_109 = arith.constant 0 : index
    %253 = vector.load %arg6[%c0_108, %c0_109] : memref<32x128xf32, #tpu.memory_space<vmem>>, vector<32x128xf32>
    %c0_110 = arith.constant 0 : index
    %c0_111 = arith.constant 0 : index
    %254 = vector.load %arg7[%c0_110, %c0_111] : memref<1x128xf32, #tpu.memory_space<vmem>>, vector<1x128xf32>
    %cst_112 = arith.constant dense<0.000000e+00> : vector<1x128xf32>
    %255 = tpu.matmul %251, %252, %cst_112 {dimension_numbers = #tpu.dot_dimension_numbers<[1], [0], [0], [1], [0, 0, 1, 1], [], []>} : vector<1x32xf32>, vector<32x128xf32>, vector<1x128xf32> -> vector<1x128xf32>
    %cst_113 = arith.constant dense<0.000000e+00> : vector<1x128xf32>
    %256 = tpu.matmul %214, %253, %cst_113 {dimension_numbers = #tpu.dot_dimension_numbers<[1], [0], [0], [1], [0, 0, 1, 1], [], []>} : vector<1x32xf32>, vector<32x128xf32>, vector<1x128xf32> -> vector<1x128xf32>
    %257 = arith.addf %255, %256 : vector<1x128xf32>
    %258 = arith.addf %257, %254 : vector<1x128xf32>
    %259 = vector.extract_strided_slice %258 {offsets = [0, 0], sizes = [1, 32], strides = [1, 1]} : vector<1x128xf32> to vector<1x32xf32>
    %260 = arith.negf %259 : vector<1x32xf32>
    %261 = math.exp %260 : vector<1x32xf32>
    %cst_114 = arith.constant 1.000000e+00 : f32
    %262 = vector.broadcast %cst_114 : f32 to vector<1x32xf32>
    %263 = arith.addf %262, %261 : vector<1x32xf32>
    %264 = arith.divf %262, %263 : vector<1x32xf32>
    %265 = vector.extract_strided_slice %258 {offsets = [0, 32], sizes = [1, 32], strides = [1, 1]} : vector<1x128xf32> to vector<1x32xf32>
    %266 = arith.negf %265 : vector<1x32xf32>
    %267 = math.exp %266 : vector<1x32xf32>
    %cst_115 = arith.constant 1.000000e+00 : f32
    %268 = vector.broadcast %cst_115 : f32 to vector<1x32xf32>
    %269 = arith.addf %268, %267 : vector<1x32xf32>
    %270 = arith.divf %268, %269 : vector<1x32xf32>
    %271 = vector.extract_strided_slice %258 {offsets = [0, 64], sizes = [1, 32], strides = [1, 1]} : vector<1x128xf32> to vector<1x32xf32>
    %272 = math.tanh %271 : vector<1x32xf32>
    %273 = vector.extract_strided_slice %258 {offsets = [0, 96], sizes = [1, 32], strides = [1, 1]} : vector<1x128xf32> to vector<1x32xf32>
    %274 = arith.negf %273 : vector<1x32xf32>
    %275 = math.exp %274 : vector<1x32xf32>
    %cst_116 = arith.constant 1.000000e+00 : f32
    %276 = vector.broadcast %cst_116 : f32 to vector<1x32xf32>
    %277 = arith.addf %276, %275 : vector<1x32xf32>
    %278 = arith.divf %276, %277 : vector<1x32xf32>
    %279 = arith.mulf %270, %212 : vector<1x32xf32>
    %280 = arith.mulf %264, %272 : vector<1x32xf32>
    %281 = arith.addf %279, %280 : vector<1x32xf32>
    %282 = math.tanh %281 : vector<1x32xf32>
    %283 = arith.mulf %278, %282 : vector<1x32xf32>
    %c3_117 = arith.constant 3 : index
    %c0_118 = arith.constant 0 : index
    %c0_119 = arith.constant 0 : index
    %284 = vector.load %arg8[%c3_117, %c0_118, %c0_119] : memref<8x1x32xf32, #tpu.memory_space<vmem>>, vector<1x1x32xf32>
    %285 = vector.shape_cast %284 : vector<1x1x32xf32> to vector<1x32xf32>
    %286 = vector.shape_cast %283 : vector<1x32xf32> to vector<1x1x32xf32>
    tpu.vector_store %arg8[%c3_117, %c0_118, %c0_119], %286 {strides = array<i32>} : memref<8x1x32xf32, #tpu.memory_space<vmem>>, vector<1x1x32xf32>,
    %c4 = arith.constant 4 : index
    %c0_120 = arith.constant 0 : index
    %c0_121 = arith.constant 0 : index
    %287 = vector.load %arg1[%c4, %c0_120, %c0_121] : memref<8x1x16xf32, #tpu.memory_space<vmem>>, vector<1x1x16xf32>
    %288 = vector.shape_cast %287 : vector<1x1x16xf32> to vector<1x16xf32>
    %c0_122 = arith.constant 0 : index
    %c0_123 = arith.constant 0 : index
    %289 = vector.load %arg2[%c0_122, %c0_123] : memref<16x128xf32, #tpu.memory_space<vmem>>, vector<16x128xf32>
    %c0_124 = arith.constant 0 : index
    %c0_125 = arith.constant 0 : index
    %290 = vector.load %arg3[%c0_124, %c0_125] : memref<32x128xf32, #tpu.memory_space<vmem>>, vector<32x128xf32>
    %c0_126 = arith.constant 0 : index
    %c0_127 = arith.constant 0 : index
    %291 = vector.load %arg4[%c0_126, %c0_127] : memref<1x128xf32, #tpu.memory_space<vmem>>, vector<1x128xf32>
    %cst_128 = arith.constant dense<0.000000e+00> : vector<1x128xf32>
    %292 = tpu.matmul %288, %289, %cst_128 {dimension_numbers = #tpu.dot_dimension_numbers<[1], [0], [0], [1], [0, 0, 1, 1], [], []>} : vector<1x16xf32>, vector<16x128xf32>, vector<1x128xf32> -> vector<1x128xf32>
    %cst_129 = arith.constant dense<0.000000e+00> : vector<1x128xf32>
    %293 = tpu.matmul %251, %290, %cst_129 {dimension_numbers = #tpu.dot_dimension_numbers<[1], [0], [0], [1], [0, 0, 1, 1], [], []>} : vector<1x32xf32>, vector<32x128xf32>, vector<1x128xf32> -> vector<1x128xf32>
    %294 = arith.addf %292, %293 : vector<1x128xf32>
    %295 = arith.addf %294, %291 : vector<1x128xf32>
    %296 = vector.extract_strided_slice %295 {offsets = [0, 0], sizes = [1, 32], strides = [1, 1]} : vector<1x128xf32> to vector<1x32xf32>
    %297 = arith.negf %296 : vector<1x32xf32>
    %298 = math.exp %297 : vector<1x32xf32>
    %cst_130 = arith.constant 1.000000e+00 : f32
    %299 = vector.broadcast %cst_130 : f32 to vector<1x32xf32>
    %300 = arith.addf %299, %298 : vector<1x32xf32>
    %301 = arith.divf %299, %300 : vector<1x32xf32>
    %302 = vector.extract_strided_slice %295 {offsets = [0, 32], sizes = [1, 32], strides = [1, 1]} : vector<1x128xf32> to vector<1x32xf32>
    %303 = arith.negf %302 : vector<1x32xf32>
    %304 = math.exp %303 : vector<1x32xf32>
    %cst_131 = arith.constant 1.000000e+00 : f32
    %305 = vector.broadcast %cst_131 : f32 to vector<1x32xf32>
    %306 = arith.addf %305, %304 : vector<1x32xf32>
    %307 = arith.divf %305, %306 : vector<1x32xf32>
    %308 = vector.extract_strided_slice %295 {offsets = [0, 64], sizes = [1, 32], strides = [1, 1]} : vector<1x128xf32> to vector<1x32xf32>
    %309 = math.tanh %308 : vector<1x32xf32>
    %310 = vector.extract_strided_slice %295 {offsets = [0, 96], sizes = [1, 32], strides = [1, 1]} : vector<1x128xf32> to vector<1x32xf32>
    %311 = arith.negf %310 : vector<1x32xf32>
    %312 = math.exp %311 : vector<1x32xf32>
    %cst_132 = arith.constant 1.000000e+00 : f32
    %313 = vector.broadcast %cst_132 : f32 to vector<1x32xf32>
    %314 = arith.addf %313, %312 : vector<1x32xf32>
    %315 = arith.divf %313, %314 : vector<1x32xf32>
    %316 = arith.mulf %307, %249 : vector<1x32xf32>
    %317 = arith.mulf %301, %309 : vector<1x32xf32>
    %318 = arith.addf %316, %317 : vector<1x32xf32>
    %319 = math.tanh %318 : vector<1x32xf32>
    %320 = arith.mulf %315, %319 : vector<1x32xf32>
    %c0_133 = arith.constant 0 : index
    %c0_134 = arith.constant 0 : index
    %321 = vector.load %arg5[%c0_133, %c0_134] : memref<32x128xf32, #tpu.memory_space<vmem>>, vector<32x128xf32>
    %c0_135 = arith.constant 0 : index
    %c0_136 = arith.constant 0 : index
    %322 = vector.load %arg6[%c0_135, %c0_136] : memref<32x128xf32, #tpu.memory_space<vmem>>, vector<32x128xf32>
    %c0_137 = arith.constant 0 : index
    %c0_138 = arith.constant 0 : index
    %323 = vector.load %arg7[%c0_137, %c0_138] : memref<1x128xf32, #tpu.memory_space<vmem>>, vector<1x128xf32>
    %cst_139 = arith.constant dense<0.000000e+00> : vector<1x128xf32>
    %324 = tpu.matmul %320, %321, %cst_139 {dimension_numbers = #tpu.dot_dimension_numbers<[1], [0], [0], [1], [0, 0, 1, 1], [], []>} : vector<1x32xf32>, vector<32x128xf32>, vector<1x128xf32> -> vector<1x128xf32>
    %cst_140 = arith.constant dense<0.000000e+00> : vector<1x128xf32>
    %325 = tpu.matmul %283, %322, %cst_140 {dimension_numbers = #tpu.dot_dimension_numbers<[1], [0], [0], [1], [0, 0, 1, 1], [], []>} : vector<1x32xf32>, vector<32x128xf32>, vector<1x128xf32> -> vector<1x128xf32>
    %326 = arith.addf %324, %325 : vector<1x128xf32>
    %327 = arith.addf %326, %323 : vector<1x128xf32>
    %328 = vector.extract_strided_slice %327 {offsets = [0, 0], sizes = [1, 32], strides = [1, 1]} : vector<1x128xf32> to vector<1x32xf32>
    %329 = arith.negf %328 : vector<1x32xf32>
    %330 = math.exp %329 : vector<1x32xf32>
    %cst_141 = arith.constant 1.000000e+00 : f32
    %331 = vector.broadcast %cst_141 : f32 to vector<1x32xf32>
    %332 = arith.addf %331, %330 : vector<1x32xf32>
    %333 = arith.divf %331, %332 : vector<1x32xf32>
    %334 = vector.extract_strided_slice %327 {offsets = [0, 32], sizes = [1, 32], strides = [1, 1]} : vector<1x128xf32> to vector<1x32xf32>
    %335 = arith.negf %334 : vector<1x32xf32>
    %336 = math.exp %335 : vector<1x32xf32>
    %cst_142 = arith.constant 1.000000e+00 : f32
    %337 = vector.broadcast %cst_142 : f32 to vector<1x32xf32>
    %338 = arith.addf %337, %336 : vector<1x32xf32>
    %339 = arith.divf %337, %338 : vector<1x32xf32>
    %340 = vector.extract_strided_slice %327 {offsets = [0, 64], sizes = [1, 32], strides = [1, 1]} : vector<1x128xf32> to vector<1x32xf32>
    %341 = math.tanh %340 : vector<1x32xf32>
    %342 = vector.extract_strided_slice %327 {offsets = [0, 96], sizes = [1, 32], strides = [1, 1]} : vector<1x128xf32> to vector<1x32xf32>
    %343 = arith.negf %342 : vector<1x32xf32>
    %344 = math.exp %343 : vector<1x32xf32>
    %cst_143 = arith.constant 1.000000e+00 : f32
    %345 = vector.broadcast %cst_143 : f32 to vector<1x32xf32>
    %346 = arith.addf %345, %344 : vector<1x32xf32>
    %347 = arith.divf %345, %346 : vector<1x32xf32>
    %348 = arith.mulf %339, %281 : vector<1x32xf32>
    %349 = arith.mulf %333, %341 : vector<1x32xf32>
    %350 = arith.addf %348, %349 : vector<1x32xf32>
    %351 = math.tanh %350 : vector<1x32xf32>
    %352 = arith.mulf %347, %351 : vector<1x32xf32>
    %c4_144 = arith.constant 4 : index
    %c0_145 = arith.constant 0 : index
    %c0_146 = arith.constant 0 : index
    %353 = vector.load %arg8[%c4_144, %c0_145, %c0_146] : memref<8x1x32xf32, #tpu.memory_space<vmem>>, vector<1x1x32xf32>
    %354 = vector.shape_cast %353 : vector<1x1x32xf32> to vector<1x32xf32>
    %355 = vector.shape_cast %352 : vector<1x32xf32> to vector<1x1x32xf32>
    tpu.vector_store %arg8[%c4_144, %c0_145, %c0_146], %355 {strides = array<i32>} : memref<8x1x32xf32, #tpu.memory_space<vmem>>, vector<1x1x32xf32>,
    %c5 = arith.constant 5 : index
    %c0_147 = arith.constant 0 : index
    %c0_148 = arith.constant 0 : index
    %356 = vector.load %arg1[%c5, %c0_147, %c0_148] : memref<8x1x16xf32, #tpu.memory_space<vmem>>, vector<1x1x16xf32>
    %357 = vector.shape_cast %356 : vector<1x1x16xf32> to vector<1x16xf32>
    %c0_149 = arith.constant 0 : index
    %c0_150 = arith.constant 0 : index
    %358 = vector.load %arg2[%c0_149, %c0_150] : memref<16x128xf32, #tpu.memory_space<vmem>>, vector<16x128xf32>
    %c0_151 = arith.constant 0 : index
    %c0_152 = arith.constant 0 : index
    %359 = vector.load %arg3[%c0_151, %c0_152] : memref<32x128xf32, #tpu.memory_space<vmem>>, vector<32x128xf32>
    %c0_153 = arith.constant 0 : index
    %c0_154 = arith.constant 0 : index
    %360 = vector.load %arg4[%c0_153, %c0_154] : memref<1x128xf32, #tpu.memory_space<vmem>>, vector<1x128xf32>
    %cst_155 = arith.constant dense<0.000000e+00> : vector<1x128xf32>
    %361 = tpu.matmul %357, %358, %cst_155 {dimension_numbers = #tpu.dot_dimension_numbers<[1], [0], [0], [1], [0, 0, 1, 1], [], []>} : vector<1x16xf32>, vector<16x128xf32>, vector<1x128xf32> -> vector<1x128xf32>
    %cst_156 = arith.constant dense<0.000000e+00> : vector<1x128xf32>
    %362 = tpu.matmul %320, %359, %cst_156 {dimension_numbers = #tpu.dot_dimension_numbers<[1], [0], [0], [1], [0, 0, 1, 1], [], []>} : vector<1x32xf32>, vector<32x128xf32>, vector<1x128xf32> -> vector<1x128xf32>
    %363 = arith.addf %361, %362 : vector<1x128xf32>
    %364 = arith.addf %363, %360 : vector<1x128xf32>
    %365 = vector.extract_strided_slice %364 {offsets = [0, 0], sizes = [1, 32], strides = [1, 1]} : vector<1x128xf32> to vector<1x32xf32>
    %366 = arith.negf %365 : vector<1x32xf32>
    %367 = math.exp %366 : vector<1x32xf32>
    %cst_157 = arith.constant 1.000000e+00 : f32
    %368 = vector.broadcast %cst_157 : f32 to vector<1x32xf32>
    %369 = arith.addf %368, %367 : vector<1x32xf32>
    %370 = arith.divf %368, %369 : vector<1x32xf32>
    %371 = vector.extract_strided_slice %364 {offsets = [0, 32], sizes = [1, 32], strides = [1, 1]} : vector<1x128xf32> to vector<1x32xf32>
    %372 = arith.negf %371 : vector<1x32xf32>
    %373 = math.exp %372 : vector<1x32xf32>
    %cst_158 = arith.constant 1.000000e+00 : f32
    %374 = vector.broadcast %cst_158 : f32 to vector<1x32xf32>
    %375 = arith.addf %374, %373 : vector<1x32xf32>
    %376 = arith.divf %374, %375 : vector<1x32xf32>
    %377 = vector.extract_strided_slice %364 {offsets = [0, 64], sizes = [1, 32], strides = [1, 1]} : vector<1x128xf32> to vector<1x32xf32>
    %378 = math.tanh %377 : vector<1x32xf32>
    %379 = vector.extract_strided_slice %364 {offsets = [0, 96], sizes = [1, 32], strides = [1, 1]} : vector<1x128xf32> to vector<1x32xf32>
    %380 = arith.negf %379 : vector<1x32xf32>
    %381 = math.exp %380 : vector<1x32xf32>
    %cst_159 = arith.constant 1.000000e+00 : f32
    %382 = vector.broadcast %cst_159 : f32 to vector<1x32xf32>
    %383 = arith.addf %382, %381 : vector<1x32xf32>
    %384 = arith.divf %382, %383 : vector<1x32xf32>
    %385 = arith.mulf %376, %318 : vector<1x32xf32>
    %386 = arith.mulf %370, %378 : vector<1x32xf32>
    %387 = arith.addf %385, %386 : vector<1x32xf32>
    %388 = math.tanh %387 : vector<1x32xf32>
    %389 = arith.mulf %384, %388 : vector<1x32xf32>
    %c0_160 = arith.constant 0 : index
    %c0_161 = arith.constant 0 : index
    %390 = vector.load %arg5[%c0_160, %c0_161] : memref<32x128xf32, #tpu.memory_space<vmem>>, vector<32x128xf32>
    %c0_162 = arith.constant 0 : index
    %c0_163 = arith.constant 0 : index
    %391 = vector.load %arg6[%c0_162, %c0_163] : memref<32x128xf32, #tpu.memory_space<vmem>>, vector<32x128xf32>
    %c0_164 = arith.constant 0 : index
    %c0_165 = arith.constant 0 : index
    %392 = vector.load %arg7[%c0_164, %c0_165] : memref<1x128xf32, #tpu.memory_space<vmem>>, vector<1x128xf32>
    %cst_166 = arith.constant dense<0.000000e+00> : vector<1x128xf32>
    %393 = tpu.matmul %389, %390, %cst_166 {dimension_numbers = #tpu.dot_dimension_numbers<[1], [0], [0], [1], [0, 0, 1, 1], [], []>} : vector<1x32xf32>, vector<32x128xf32>, vector<1x128xf32> -> vector<1x128xf32>
    %cst_167 = arith.constant dense<0.000000e+00> : vector<1x128xf32>
    %394 = tpu.matmul %352, %391, %cst_167 {dimension_numbers = #tpu.dot_dimension_numbers<[1], [0], [0], [1], [0, 0, 1, 1], [], []>} : vector<1x32xf32>, vector<32x128xf32>, vector<1x128xf32> -> vector<1x128xf32>
    %395 = arith.addf %393, %394 : vector<1x128xf32>
    %396 = arith.addf %395, %392 : vector<1x128xf32>
    %397 = vector.extract_strided_slice %396 {offsets = [0, 0], sizes = [1, 32], strides = [1, 1]} : vector<1x128xf32> to vector<1x32xf32>
    %398 = arith.negf %397 : vector<1x32xf32>
    %399 = math.exp %398 : vector<1x32xf32>
    %cst_168 = arith.constant 1.000000e+00 : f32
    %400 = vector.broadcast %cst_168 : f32 to vector<1x32xf32>
    %401 = arith.addf %400, %399 : vector<1x32xf32>
    %402 = arith.divf %400, %401 : vector<1x32xf32>
    %403 = vector.extract_strided_slice %396 {offsets = [0, 32], sizes = [1, 32], strides = [1, 1]} : vector<1x128xf32> to vector<1x32xf32>
    %404 = arith.negf %403 : vector<1x32xf32>
    %405 = math.exp %404 : vector<1x32xf32>
    %cst_169 = arith.constant 1.000000e+00 : f32
    %406 = vector.broadcast %cst_169 : f32 to vector<1x32xf32>
    %407 = arith.addf %406, %405 : vector<1x32xf32>
    %408 = arith.divf %406, %407 : vector<1x32xf32>
    %409 = vector.extract_strided_slice %396 {offsets = [0, 64], sizes = [1, 32], strides = [1, 1]} : vector<1x128xf32> to vector<1x32xf32>
    %410 = math.tanh %409 : vector<1x32xf32>
    %411 = vector.extract_strided_slice %396 {offsets = [0, 96], sizes = [1, 32], strides = [1, 1]} : vector<1x128xf32> to vector<1x32xf32>
    %412 = arith.negf %411 : vector<1x32xf32>
    %413 = math.exp %412 : vector<1x32xf32>
    %cst_170 = arith.constant 1.000000e+00 : f32
    %414 = vector.broadcast %cst_170 : f32 to vector<1x32xf32>
    %415 = arith.addf %414, %413 : vector<1x32xf32>
    %416 = arith.divf %414, %415 : vector<1x32xf32>
    %417 = arith.mulf %408, %350 : vector<1x32xf32>
    %418 = arith.mulf %402, %410 : vector<1x32xf32>
    %419 = arith.addf %417, %418 : vector<1x32xf32>
    %420 = math.tanh %419 : vector<1x32xf32>
    %421 = arith.mulf %416, %420 : vector<1x32xf32>
    %c5_171 = arith.constant 5 : index
    %c0_172 = arith.constant 0 : index
    %c0_173 = arith.constant 0 : index
    %422 = vector.load %arg8[%c5_171, %c0_172, %c0_173] : memref<8x1x32xf32, #tpu.memory_space<vmem>>, vector<1x1x32xf32>
    %423 = vector.shape_cast %422 : vector<1x1x32xf32> to vector<1x32xf32>
    %424 = vector.shape_cast %421 : vector<1x32xf32> to vector<1x1x32xf32>
    tpu.vector_store %arg8[%c5_171, %c0_172, %c0_173], %424 {strides = array<i32>} : memref<8x1x32xf32, #tpu.memory_space<vmem>>, vector<1x1x32xf32>,
    %c6 = arith.constant 6 : index
    %c0_174 = arith.constant 0 : index
    %c0_175 = arith.constant 0 : index
    %425 = vector.load %arg1[%c6, %c0_174, %c0_175] : memref<8x1x16xf32, #tpu.memory_space<vmem>>, vector<1x1x16xf32>
    %426 = vector.shape_cast %425 : vector<1x1x16xf32> to vector<1x16xf32>
    %c0_176 = arith.constant 0 : index
    %c0_177 = arith.constant 0 : index
    %427 = vector.load %arg2[%c0_176, %c0_177] : memref<16x128xf32, #tpu.memory_space<vmem>>, vector<16x128xf32>
    %c0_178 = arith.constant 0 : index
    %c0_179 = arith.constant 0 : index
    %428 = vector.load %arg3[%c0_178, %c0_179] : memref<32x128xf32, #tpu.memory_space<vmem>>, vector<32x128xf32>
    %c0_180 = arith.constant 0 : index
    %c0_181 = arith.constant 0 : index
    %429 = vector.load %arg4[%c0_180, %c0_181] : memref<1x128xf32, #tpu.memory_space<vmem>>, vector<1x128xf32>
    %cst_182 = arith.constant dense<0.000000e+00> : vector<1x128xf32>
    %430 = tpu.matmul %426, %427, %cst_182 {dimension_numbers = #tpu.dot_dimension_numbers<[1], [0], [0], [1], [0, 0, 1, 1], [], []>} : vector<1x16xf32>, vector<16x128xf32>, vector<1x128xf32> -> vector<1x128xf32>
    %cst_183 = arith.constant dense<0.000000e+00> : vector<1x128xf32>
    %431 = tpu.matmul %389, %428, %cst_183 {dimension_numbers = #tpu.dot_dimension_numbers<[1], [0], [0], [1], [0, 0, 1, 1], [], []>} : vector<1x32xf32>, vector<32x128xf32>, vector<1x128xf32> -> vector<1x128xf32>
    %432 = arith.addf %430, %431 : vector<1x128xf32>
    %433 = arith.addf %432, %429 : vector<1x128xf32>
    %434 = vector.extract_strided_slice %433 {offsets = [0, 0], sizes = [1, 32], strides = [1, 1]} : vector<1x128xf32> to vector<1x32xf32>
    %435 = arith.negf %434 : vector<1x32xf32>
    %436 = math.exp %435 : vector<1x32xf32>
    %cst_184 = arith.constant 1.000000e+00 : f32
    %437 = vector.broadcast %cst_184 : f32 to vector<1x32xf32>
    %438 = arith.addf %437, %436 : vector<1x32xf32>
    %439 = arith.divf %437, %438 : vector<1x32xf32>
    %440 = vector.extract_strided_slice %433 {offsets = [0, 32], sizes = [1, 32], strides = [1, 1]} : vector<1x128xf32> to vector<1x32xf32>
    %441 = arith.negf %440 : vector<1x32xf32>
    %442 = math.exp %441 : vector<1x32xf32>
    %cst_185 = arith.constant 1.000000e+00 : f32
    %443 = vector.broadcast %cst_185 : f32 to vector<1x32xf32>
    %444 = arith.addf %443, %442 : vector<1x32xf32>
    %445 = arith.divf %443, %444 : vector<1x32xf32>
    %446 = vector.extract_strided_slice %433 {offsets = [0, 64], sizes = [1, 32], strides = [1, 1]} : vector<1x128xf32> to vector<1x32xf32>
    %447 = math.tanh %446 : vector<1x32xf32>
    %448 = vector.extract_strided_slice %433 {offsets = [0, 96], sizes = [1, 32], strides = [1, 1]} : vector<1x128xf32> to vector<1x32xf32>
    %449 = arith.negf %448 : vector<1x32xf32>
    %450 = math.exp %449 : vector<1x32xf32>
    %cst_186 = arith.constant 1.000000e+00 : f32
    %451 = vector.broadcast %cst_186 : f32 to vector<1x32xf32>
    %452 = arith.addf %451, %450 : vector<1x32xf32>
    %453 = arith.divf %451, %452 : vector<1x32xf32>
    %454 = arith.mulf %445, %387 : vector<1x32xf32>
    %455 = arith.mulf %439, %447 : vector<1x32xf32>
    %456 = arith.addf %454, %455 : vector<1x32xf32>
    %457 = math.tanh %456 : vector<1x32xf32>
    %458 = arith.mulf %453, %457 : vector<1x32xf32>
    %c0_187 = arith.constant 0 : index
    %c0_188 = arith.constant 0 : index
    %459 = vector.load %arg5[%c0_187, %c0_188] : memref<32x128xf32, #tpu.memory_space<vmem>>, vector<32x128xf32>
    %c0_189 = arith.constant 0 : index
    %c0_190 = arith.constant 0 : index
    %460 = vector.load %arg6[%c0_189, %c0_190] : memref<32x128xf32, #tpu.memory_space<vmem>>, vector<32x128xf32>
    %c0_191 = arith.constant 0 : index
    %c0_192 = arith.constant 0 : index
    %461 = vector.load %arg7[%c0_191, %c0_192] : memref<1x128xf32, #tpu.memory_space<vmem>>, vector<1x128xf32>
    %cst_193 = arith.constant dense<0.000000e+00> : vector<1x128xf32>
    %462 = tpu.matmul %458, %459, %cst_193 {dimension_numbers = #tpu.dot_dimension_numbers<[1], [0], [0], [1], [0, 0, 1, 1], [], []>} : vector<1x32xf32>, vector<32x128xf32>, vector<1x128xf32> -> vector<1x128xf32>
    %cst_194 = arith.constant dense<0.000000e+00> : vector<1x128xf32>
    %463 = tpu.matmul %421, %460, %cst_194 {dimension_numbers = #tpu.dot_dimension_numbers<[1], [0], [0], [1], [0, 0, 1, 1], [], []>} : vector<1x32xf32>, vector<32x128xf32>, vector<1x128xf32> -> vector<1x128xf32>
    %464 = arith.addf %462, %463 : vector<1x128xf32>
    %465 = arith.addf %464, %461 : vector<1x128xf32>
    %466 = vector.extract_strided_slice %465 {offsets = [0, 0], sizes = [1, 32], strides = [1, 1]} : vector<1x128xf32> to vector<1x32xf32>
    %467 = arith.negf %466 : vector<1x32xf32>
    %468 = math.exp %467 : vector<1x32xf32>
    %cst_195 = arith.constant 1.000000e+00 : f32
    %469 = vector.broadcast %cst_195 : f32 to vector<1x32xf32>
    %470 = arith.addf %469, %468 : vector<1x32xf32>
    %471 = arith.divf %469, %470 : vector<1x32xf32>
    %472 = vector.extract_strided_slice %465 {offsets = [0, 32], sizes = [1, 32], strides = [1, 1]} : vector<1x128xf32> to vector<1x32xf32>
    %473 = arith.negf %472 : vector<1x32xf32>
    %474 = math.exp %473 : vector<1x32xf32>
    %cst_196 = arith.constant 1.000000e+00 : f32
    %475 = vector.broadcast %cst_196 : f32 to vector<1x32xf32>
    %476 = arith.addf %475, %474 : vector<1x32xf32>
    %477 = arith.divf %475, %476 : vector<1x32xf32>
    %478 = vector.extract_strided_slice %465 {offsets = [0, 64], sizes = [1, 32], strides = [1, 1]} : vector<1x128xf32> to vector<1x32xf32>
    %479 = math.tanh %478 : vector<1x32xf32>
    %480 = vector.extract_strided_slice %465 {offsets = [0, 96], sizes = [1, 32], strides = [1, 1]} : vector<1x128xf32> to vector<1x32xf32>
    %481 = arith.negf %480 : vector<1x32xf32>
    %482 = math.exp %481 : vector<1x32xf32>
    %cst_197 = arith.constant 1.000000e+00 : f32
    %483 = vector.broadcast %cst_197 : f32 to vector<1x32xf32>
    %484 = arith.addf %483, %482 : vector<1x32xf32>
    %485 = arith.divf %483, %484 : vector<1x32xf32>
    %486 = arith.mulf %477, %419 : vector<1x32xf32>
    %487 = arith.mulf %471, %479 : vector<1x32xf32>
    %488 = arith.addf %486, %487 : vector<1x32xf32>
    %489 = math.tanh %488 : vector<1x32xf32>
    %490 = arith.mulf %485, %489 : vector<1x32xf32>
    %c6_198 = arith.constant 6 : index
    %c0_199 = arith.constant 0 : index
    %c0_200 = arith.constant 0 : index
    %491 = vector.load %arg8[%c6_198, %c0_199, %c0_200] : memref<8x1x32xf32, #tpu.memory_space<vmem>>, vector<1x1x32xf32>
    %492 = vector.shape_cast %491 : vector<1x1x32xf32> to vector<1x32xf32>
    %493 = vector.shape_cast %490 : vector<1x32xf32> to vector<1x1x32xf32>
    tpu.vector_store %arg8[%c6_198, %c0_199, %c0_200], %493 {strides = array<i32>} : memref<8x1x32xf32, #tpu.memory_space<vmem>>, vector<1x1x32xf32>,
    %c7 = arith.constant 7 : index
    %c0_201 = arith.constant 0 : index
    %c0_202 = arith.constant 0 : index
    %494 = vector.load %arg1[%c7, %c0_201, %c0_202] : memref<8x1x16xf32, #tpu.memory_space<vmem>>, vector<1x1x16xf32>
    %495 = vector.shape_cast %494 : vector<1x1x16xf32> to vector<1x16xf32>
    %c0_203 = arith.constant 0 : index
    %c0_204 = arith.constant 0 : index
    %496 = vector.load %arg2[%c0_203, %c0_204] : memref<16x128xf32, #tpu.memory_space<vmem>>, vector<16x128xf32>
    %c0_205 = arith.constant 0 : index
    %c0_206 = arith.constant 0 : index
    %497 = vector.load %arg3[%c0_205, %c0_206] : memref<32x128xf32, #tpu.memory_space<vmem>>, vector<32x128xf32>
    %c0_207 = arith.constant 0 : index
    %c0_208 = arith.constant 0 : index
    %498 = vector.load %arg4[%c0_207, %c0_208] : memref<1x128xf32, #tpu.memory_space<vmem>>, vector<1x128xf32>
    %cst_209 = arith.constant dense<0.000000e+00> : vector<1x128xf32>
    %499 = tpu.matmul %495, %496, %cst_209 {dimension_numbers = #tpu.dot_dimension_numbers<[1], [0], [0], [1], [0, 0, 1, 1], [], []>} : vector<1x16xf32>, vector<16x128xf32>, vector<1x128xf32> -> vector<1x128xf32>
    %cst_210 = arith.constant dense<0.000000e+00> : vector<1x128xf32>
    %500 = tpu.matmul %458, %497, %cst_210 {dimension_numbers = #tpu.dot_dimension_numbers<[1], [0], [0], [1], [0, 0, 1, 1], [], []>} : vector<1x32xf32>, vector<32x128xf32>, vector<1x128xf32> -> vector<1x128xf32>
    %501 = arith.addf %499, %500 : vector<1x128xf32>
    %502 = arith.addf %501, %498 : vector<1x128xf32>
    %503 = vector.extract_strided_slice %502 {offsets = [0, 0], sizes = [1, 32], strides = [1, 1]} : vector<1x128xf32> to vector<1x32xf32>
    %504 = arith.negf %503 : vector<1x32xf32>
    %505 = math.exp %504 : vector<1x32xf32>
    %cst_211 = arith.constant 1.000000e+00 : f32
    %506 = vector.broadcast %cst_211 : f32 to vector<1x32xf32>
    %507 = arith.addf %506, %505 : vector<1x32xf32>
    %508 = arith.divf %506, %507 : vector<1x32xf32>
    %509 = vector.extract_strided_slice %502 {offsets = [0, 32], sizes = [1, 32], strides = [1, 1]} : vector<1x128xf32> to vector<1x32xf32>
    %510 = arith.negf %509 : vector<1x32xf32>
    %511 = math.exp %510 : vector<1x32xf32>
    %cst_212 = arith.constant 1.000000e+00 : f32
    %512 = vector.broadcast %cst_212 : f32 to vector<1x32xf32>
    %513 = arith.addf %512, %511 : vector<1x32xf32>
    %514 = arith.divf %512, %513 : vector<1x32xf32>
    %515 = vector.extract_strided_slice %502 {offsets = [0, 64], sizes = [1, 32], strides = [1, 1]} : vector<1x128xf32> to vector<1x32xf32>
    %516 = math.tanh %515 : vector<1x32xf32>
    %517 = vector.extract_strided_slice %502 {offsets = [0, 96], sizes = [1, 32], strides = [1, 1]} : vector<1x128xf32> to vector<1x32xf32>
    %518 = arith.negf %517 : vector<1x32xf32>
    %519 = math.exp %518 : vector<1x32xf32>
    %cst_213 = arith.constant 1.000000e+00 : f32
    %520 = vector.broadcast %cst_213 : f32 to vector<1x32xf32>
    %521 = arith.addf %520, %519 : vector<1x32xf32>
    %522 = arith.divf %520, %521 : vector<1x32xf32>
    %523 = arith.mulf %514, %456 : vector<1x32xf32>
    %524 = arith.mulf %508, %516 : vector<1x32xf32>
    %525 = arith.addf %523, %524 : vector<1x32xf32>
    %526 = math.tanh %525 : vector<1x32xf32>
    %527 = arith.mulf %522, %526 : vector<1x32xf32>
    %c0_214 = arith.constant 0 : index
    %c0_215 = arith.constant 0 : index
    %528 = vector.load %arg5[%c0_214, %c0_215] : memref<32x128xf32, #tpu.memory_space<vmem>>, vector<32x128xf32>
    %c0_216 = arith.constant 0 : index
    %c0_217 = arith.constant 0 : index
    %529 = vector.load %arg6[%c0_216, %c0_217] : memref<32x128xf32, #tpu.memory_space<vmem>>, vector<32x128xf32>
    %c0_218 = arith.constant 0 : index
    %c0_219 = arith.constant 0 : index
    %530 = vector.load %arg7[%c0_218, %c0_219] : memref<1x128xf32, #tpu.memory_space<vmem>>, vector<1x128xf32>
    %cst_220 = arith.constant dense<0.000000e+00> : vector<1x128xf32>
    %531 = tpu.matmul %527, %528, %cst_220 {dimension_numbers = #tpu.dot_dimension_numbers<[1], [0], [0], [1], [0, 0, 1, 1], [], []>} : vector<1x32xf32>, vector<32x128xf32>, vector<1x128xf32> -> vector<1x128xf32>
    %cst_221 = arith.constant dense<0.000000e+00> : vector<1x128xf32>
    %532 = tpu.matmul %490, %529, %cst_221 {dimension_numbers = #tpu.dot_dimension_numbers<[1], [0], [0], [1], [0, 0, 1, 1], [], []>} : vector<1x32xf32>, vector<32x128xf32>, vector<1x128xf32> -> vector<1x128xf32>
    %533 = arith.addf %531, %532 : vector<1x128xf32>
    %534 = arith.addf %533, %530 : vector<1x128xf32>
    %535 = vector.extract_strided_slice %534 {offsets = [0, 0], sizes = [1, 32], strides = [1, 1]} : vector<1x128xf32> to vector<1x32xf32>
    %536 = arith.negf %535 : vector<1x32xf32>
    %537 = math.exp %536 : vector<1x32xf32>
    %cst_222 = arith.constant 1.000000e+00 : f32
    %538 = vector.broadcast %cst_222 : f32 to vector<1x32xf32>
    %539 = arith.addf %538, %537 : vector<1x32xf32>
    %540 = arith.divf %538, %539 : vector<1x32xf32>
    %541 = vector.extract_strided_slice %534 {offsets = [0, 32], sizes = [1, 32], strides = [1, 1]} : vector<1x128xf32> to vector<1x32xf32>
    %542 = arith.negf %541 : vector<1x32xf32>
    %543 = math.exp %542 : vector<1x32xf32>
    %cst_223 = arith.constant 1.000000e+00 : f32
    %544 = vector.broadcast %cst_223 : f32 to vector<1x32xf32>
    %545 = arith.addf %544, %543 : vector<1x32xf32>
    %546 = arith.divf %544, %545 : vector<1x32xf32>
    %547 = vector.extract_strided_slice %534 {offsets = [0, 64], sizes = [1, 32], strides = [1, 1]} : vector<1x128xf32> to vector<1x32xf32>
    %548 = math.tanh %547 : vector<1x32xf32>
    %549 = vector.extract_strided_slice %534 {offsets = [0, 96], sizes = [1, 32], strides = [1, 1]} : vector<1x128xf32> to vector<1x32xf32>
    %550 = arith.negf %549 : vector<1x32xf32>
    %551 = math.exp %550 : vector<1x32xf32>
    %cst_224 = arith.constant 1.000000e+00 : f32
    %552 = vector.broadcast %cst_224 : f32 to vector<1x32xf32>
    %553 = arith.addf %552, %551 : vector<1x32xf32>
    %554 = arith.divf %552, %553 : vector<1x32xf32>
    %555 = arith.mulf %546, %488 : vector<1x32xf32>
    %556 = arith.mulf %540, %548 : vector<1x32xf32>
    %557 = arith.addf %555, %556 : vector<1x32xf32>
    %558 = math.tanh %557 : vector<1x32xf32>
    %559 = arith.mulf %554, %558 : vector<1x32xf32>
    %c7_225 = arith.constant 7 : index
    %c0_226 = arith.constant 0 : index
    %c0_227 = arith.constant 0 : index
    %560 = vector.load %arg8[%c7_225, %c0_226, %c0_227] : memref<8x1x32xf32, #tpu.memory_space<vmem>>, vector<1x1x32xf32>
    %561 = vector.shape_cast %560 : vector<1x1x32xf32> to vector<1x32xf32>
    %562 = vector.shape_cast %559 : vector<1x32xf32> to vector<1x1x32xf32>
    tpu.vector_store %arg8[%c7_225, %c0_226, %c0_227], %562 {strides = array<i32>} : memref<8x1x32xf32, #tpu.memory_space<vmem>>, vector<1x1x32xf32>,
    %c0_228 = arith.constant 0 : index
    %c0_229 = arith.constant 0 : index
    %c0_230 = arith.constant 0 : index
    %563 = vector.load %arg9[%c0_228, %c0_229, %c0_230] : memref<2x1x32xf32, #tpu.memory_space<vmem>>, vector<1x1x32xf32>
    %564 = vector.shape_cast %563 : vector<1x1x32xf32> to vector<1x32xf32>
    %565 = vector.shape_cast %527 : vector<1x32xf32> to vector<1x1x32xf32>
    tpu.vector_store %arg9[%c0_228, %c0_229, %c0_230], %565 {strides = array<i32>} : memref<2x1x32xf32, #tpu.memory_space<vmem>>, vector<1x1x32xf32>,
    %c0_231 = arith.constant 0 : index
    %c0_232 = arith.constant 0 : index
    %c0_233 = arith.constant 0 : index
    %566 = vector.load %arg10[%c0_231, %c0_232, %c0_233] : memref<2x1x32xf32, #tpu.memory_space<vmem>>, vector<1x1x32xf32>
    %567 = vector.shape_cast %566 : vector<1x1x32xf32> to vector<1x32xf32>
    %568 = vector.shape_cast %525 : vector<1x32xf32> to vector<1x1x32xf32>
    tpu.vector_store %arg10[%c0_231, %c0_232, %c0_233], %568 {strides = array<i32>} : memref<2x1x32xf32, #tpu.memory_space<vmem>>, vector<1x1x32xf32>,
    %c1_234 = arith.constant 1 : index
    %c0_235 = arith.constant 0 : index
    %c0_236 = arith.constant 0 : index
    %569 = vector.load %arg9[%c1_234, %c0_235, %c0_236] : memref<2x1x32xf32, #tpu.memory_space<vmem>>, vector<1x1x32xf32>
    %570 = vector.shape_cast %569 : vector<1x1x32xf32> to vector<1x32xf32>
    %571 = vector.shape_cast %559 : vector<1x32xf32> to vector<1x1x32xf32>
    tpu.vector_store %arg9[%c1_234, %c0_235, %c0_236], %571 {strides = array<i32>} : memref<2x1x32xf32, #tpu.memory_space<vmem>>, vector<1x1x32xf32>,
    %c1_237 = arith.constant 1 : index
    %c0_238 = arith.constant 0 : index
    %c0_239 = arith.constant 0 : index
    %572 = vector.load %arg10[%c1_237, %c0_238, %c0_239] : memref<2x1x32xf32, #tpu.memory_space<vmem>>, vector<1x1x32xf32>
    %573 = vector.shape_cast %572 : vector<1x1x32xf32> to vector<1x32xf32>
    %574 = vector.shape_cast %557 : vector<1x32xf32> to vector<1x1x32xf32>
    tpu.vector_store %arg10[%c1_237, %c0_238, %c0_239], %574 {strides = array<i32>} : memref<2x1x32xf32, #tpu.memory_space<vmem>>, vector<1x1x32xf32>,
    return
  }
  func.func @transform_0(%arg0: i32) -> (i32, i32, i32) {
    %c0_i32 = arith.constant 0 : i32
    %c0_i32_0 = arith.constant 0 : i32
    %c0_i32_1 = arith.constant 0 : i32
    return %arg0, %c0_i32, %c0_i32_0 : i32, i32, i32
  }
  func.func @transform_1(%arg0: i32) -> (i32, i32) {
    %c0_i32 = arith.constant 0 : i32
    %c0_i32_0 = arith.constant 0 : i32
    %c0_i32_1 = arith.constant 0 : i32
    return %c0_i32, %c0_i32_0 : i32, i32
  }
  func.func @transform_2(%arg0: i32) -> (i32, i32) {
    %c0_i32 = arith.constant 0 : i32
    %c0_i32_0 = arith.constant 0 : i32
    %c0_i32_1 = arith.constant 0 : i32
    return %c0_i32, %c0_i32_0 : i32, i32
  }
  func.func @transform_3(%arg0: i32) -> (i32, i32) {
    %c0_i32 = arith.constant 0 : i32
    %c0_i32_0 = arith.constant 0 : i32
    %c0_i32_1 = arith.constant 0 : i32
    return %c0_i32, %c0_i32_0 : i32, i32
  }
  func.func @transform_4(%arg0: i32) -> (i32, i32) {
    %c0_i32 = arith.constant 0 : i32
    %c0_i32_0 = arith.constant 0 : i32
    %c0_i32_1 = arith.constant 0 : i32
    return %c0_i32, %c0_i32_0 : i32, i32
  }
  func.func @transform_5(%arg0: i32) -> (i32, i32) {
    %c0_i32 = arith.constant 0 : i32
    %c0_i32_0 = arith.constant 0 : i32
    %c0_i32_1 = arith.constant 0 : i32
    return %c0_i32, %c0_i32_0 : i32, i32
  }
  func.func @transform_6(%arg0: i32) -> (i32, i32) {
    %c0_i32 = arith.constant 0 : i32
    %c0_i32_0 = arith.constant 0 : i32
    %c0_i32_1 = arith.constant 0 : i32
    return %c0_i32, %c0_i32_0 : i32, i32
  }
  func.func @transform_7(%arg0: i32) -> (i32, i32, i32) {
    %c0_i32 = arith.constant 0 : i32
    %c0_i32_0 = arith.constant 0 : i32
    %c0_i32_1 = arith.constant 0 : i32
    return %arg0, %c0_i32, %c0_i32_0 : i32, i32, i32
  }
}

</mosaic_0001>

<llo_original>
// kernel: tpu_custom_call.1
$region0: #{tpu_custom_call.1}
  #allocation0 [shape = 'u32[]', space=smem, size = 0x4, offset = 0x4, fixed_abs, tag = 'smem constant byte address 0x4 - core index']
  #allocation1 [shape = 'u32[144,128]{1,0:T(1,128)}', space=vmem, size = 0x12000, scoped, tag = 'internal scratch']
  #allocation2 [shape = 'f32[2,1,32]{2,1,0:T(1,128)}', space=vmem, size = 0x400, scoped, tag = 'scratch operand']
  #allocation3 [shape = 'f32[2,1,32]{2,1,0:T(1,128)}', space=vmem, size = 0x400, scoped, tag = 'scratch operand']
  %s0 = inlined_call_operand.hbm [shape: f32[8,1,16], index: 0, kind: input, shape index: {}]
  %s1 = inlined_call_operand.hbm [shape: f32[16,128], index: 1, kind: input, shape index: {}]
  %s2 = inlined_call_operand.hbm [shape: f32[32,128], index: 2, kind: input, shape index: {}]
  %s3 = inlined_call_operand.vmem [shape: f32[1,128], index: 3, kind: input, shape index: {}]
  %s4 = inlined_call_operand.hbm [shape: f32[32,128], index: 4, kind: input, shape index: {}]
  %s5 = inlined_call_operand.hbm [shape: f32[32,128], index: 5, kind: input, shape index: {}]
  %s6 = inlined_call_operand.vmem [shape: f32[1,128], index: 6, kind: input, shape index: {}]
  %s7 = inlined_call_operand.hbm [shape: f32[8,1,32], index: 7, kind: output, shape index: {}]
  %s8 = sld [smem:[#allocation0]]
  $region62: #{tpu_custom_call.1} parent=0
    _
  %s10 = ssub.s32 1, %s8
  %s11 = scalar_select 0, %s10, %s8
  $region1: #{tpu_custom_call.1} parent=0
    #allocation4 [shape = 'u8[4096]{0}', space=vmem, size = 0x1000, scoped, tag = 'input window, operand 0, single buffered']
    #allocation5 [shape = 's32[1]{0}', space=sflag, size = 0x4, scoped, tag = 'scoped memory for tpu_custom_call.1']
    #allocation6 [shape = 's32[1]{0}', space=sflag, size = 0x4, scoped, tag = 'scoped memory for tpu_custom_call.1']
    #allocation7 [shape = 'u8[8192]{0}', space=vmem, size = 0x2000, scoped, tag = 'input window, operand 1, single buffered']
    #allocation8 [shape = 's32[1]{0}', space=sflag, size = 0x4, scoped, tag = 'scoped memory for tpu_custom_call.1']
    #allocation9 [shape = 'u8[16384]{0}', space=vmem, size = 0x4000, scoped, tag = 'input window, operand 2, single buffered']
    #allocation10 [shape = 'u8[16384]{0}', space=vmem, size = 0x4000, scoped, tag = 'input window, operand 4, single buffered']
    #allocation11 [shape = 's32[1]{0}', space=sflag, size = 0x4, scoped, tag = 'scoped memory for tpu_custom_call.1']
    #allocation12 [shape = 'u8[16384]{0}', space=vmem, size = 0x4000, scoped, tag = 'input window, operand 5, single buffered']
    #allocation13 [shape = 'u8[4096]{0}', space=vmem, size = 0x1000, scoped, tag = 'output window, operand 0, single buffered']
    %12 = vsyncpa [#allocation5], 0
    %13 = vsyncpa [#allocation8], 0
    %14 = vsyncpa [#allocation11], 0
    %15 = vsyncpa [#allocation6], 0
    // Predicated region
    $region2: #{tpu_custom_call.1} parent=1 // pred_check
      _
    $region3: #{tpu_custom_call.1} parent=1 // pred_check_branch
      %17 = sbr.rel (0) target = $region5
    $region4: #{tpu_custom_call.1} parent=1 // pred_region
      %s19 = ssub.s32 128, 128
      %20 = vsyncadd [#allocation5], %s19
      %s21 = sshll.u32 [#allocation4], 4
      %s22 = int_to_ptr.vmem [resolvable:$true] %s21
      %27 = dma.hbm_to_vmem [thread:$0]  %s0, 128, %s22, [#allocation5], 16, 16, 1
    $region5: #{tpu_custom_call.1} parent=1 // pred_fallthru
      _
    // Predicated region
    $region6: #{tpu_custom_call.1} parent=1 // pred_check
      _
    $region7: #{tpu_custom_call.1} parent=1 // pred_check_branch
      %29 = sbr.rel (0) target = $region9
    $region8: #{tpu_custom_call.1} parent=1 // pred_region
      %s31 = ssub.s32 256, 256
      %32 = vsyncadd [#allocation8], %s31
      %s33 = sshll.u32 [#allocation7], 4
      %s34 = int_to_ptr.vmem [resolvable:$true] %s33
      %39 = dma.hbm_to_vmem [thread:$0]  %s1, 256, %s34, [#allocation8], 128, 128, 8
    $region9: #{tpu_custom_call.1} parent=1 // pred_fallthru
      _
    // Predicated region
    $region10: #{tpu_custom_call.1} parent=1 // pred_check
      _
    $region11: #{tpu_custom_call.1} parent=1 // pred_check_branch
      %41 = sbr.rel (0) target = $region13
    $region12: #{tpu_custom_call.1} parent=1 // pred_region
      %s43 = ssub.s32 512, 512
      %44 = vsyncadd [#allocation8], %s43
      %s45 = sshll.u32 [#allocation9], 4
      %s46 = int_to_ptr.vmem [resolvable:$true] %s45
      %51 = dma.hbm_to_vmem [thread:$0]  %s2, 512, %s46, [#allocation8], 128, 128, 8
    $region13: #{tpu_custom_call.1} parent=1 // pred_fallthru
      _
    // Predicated region
    $region14: #{tpu_custom_call.1} parent=1 // pred_check
      _
    $region15: #{tpu_custom_call.1} parent=1 // pred_check_branch
      %53 = sbr.rel (0) target = $region17
    $region16: #{tpu_custom_call.1} parent=1 // pred_region
      _
    $region17: #{tpu_custom_call.1} parent=1 // pred_fallthru
      _
    // Predicated region
    $region18: #{tpu_custom_call.1} parent=1 // pred_check
      _
    $region19: #{tpu_custom_call.1} parent=1 // pred_check_branch
      %55 = sbr.rel (0) target = $region21
    $region20: #{tpu_custom_call.1} parent=1 // pred_region
      %s57 = ssub.s32 512, 512
      %58 = vsyncadd [#allocation11], %s57
      %s59 = sshll.u32 [#allocation10], 4
      %s60 = int_to_ptr.vmem [resolvable:$true] %s59
      %65 = dma.hbm_to_vmem [thread:$0]  %s4, 512, %s60, [#allocation11], 128, 128, 8
    $region21: #{tpu_custom_call.1} parent=1 // pred_fallthru
      _
    // Predicated region
    $region22: #{tpu_custom_call.1} parent=1 // pred_check
      _
    $region23: #{tpu_custom_call.1} parent=1 // pred_check_branch
      %67 = sbr.rel (0) target = $region25
    $region24: #{tpu_custom_call.1} parent=1 // pred_region
      %s69 = ssub.s32 512, 512
      %70 = vsyncadd [#allocation11], %s69
      %s71 = sshll.u32 [#allocation12], 4
      %s72 = int_to_ptr.vmem [resolvable:$true] %s71
      %77 = dma.hbm_to_vmem [thread:$0]  %s5, 512, %s72, [#allocation11], 128, 128, 8
    $region25: #{tpu_custom_call.1} parent=1 // pred_fallthru
      _
    // Predicated region
    $region26: #{tpu_custom_call.1} parent=1 // pred_check
      _
    $region27: #{tpu_custom_call.1} parent=1 // pred_check_branch
      %79 = sbr.rel (0) target = $region29
    $region28: #{tpu_custom_call.1} parent=1 // pred_region
      _
    $region29: #{tpu_custom_call.1} parent=1 // pred_fallthru
      _
    // Predicated region
    $region30: #{tpu_custom_call.1} parent=1 // pred_check
      _
    $region31: #{tpu_custom_call.1} parent=1 // pred_check_branch
      %81 = sbr.rel (0) target = $region33
    $region32: #{tpu_custom_call.1} parent=1 // pred_region
      %82 = dma.done [#allocation5], 128
    $region33: #{tpu_custom_call.1} parent=1 // pred_fallthru
      _
    // Predicated region
    $region34: #{tpu_custom_call.1} parent=1 // pred_check
      _
    $region35: #{tpu_custom_call.1} parent=1 // pred_check_branch
      %84 = sbr.rel (0) target = $region37
    $region36: #{tpu_custom_call.1} parent=1 // pred_region
      %85 = dma.done [#allocation8], 256
    $region37: #{tpu_custom_call.1} parent=1 // pred_fallthru
      _
    // Predicated region
    $region38: #{tpu_custom_call.1} parent=1 // pred_check
      _
    $region39: #{tpu_custom_call.1} parent=1 // pred_check_branch
      %87 = sbr.rel (0) target = $region41
    $region40: #{tpu_custom_call.1} parent=1 // pred_region
      %88 = dma.done [#allocation8], 512
    $region41: #{tpu_custom_call.1} parent=1 // pred_fallthru
      _
    // Predicated region
    $region42: #{tpu_custom_call.1} parent=1 // pred_check
      _
    $region43: #{tpu_custom_call.1} parent=1 // pred_check_branch
      %90 = sbr.rel (0) target = $region45
    $region44: #{tpu_custom_call.1} parent=1 // pred_region
      %91 = dma.done [#allocation11], 512
    $region45: #{tpu_custom_call.1} parent=1 // pred_fallthru
      _
    // Predicated region
    $region46: #{tpu_custom_call.1} parent=1 // pred_check
      _
    $region47: #{tpu_custom_call.1} parent=1 // pred_check_branch
      %93 = sbr.rel (0) target = $region49
    $region48: #{tpu_custom_call.1} parent=1 // pred_region
      %94 = dma.done [#allocation11], 512
    $region49: #{tpu_custom_call.1} parent=1 // pred_fallthru
      _
    %p95 = scmp.eq.s32.totalorder 0, 0
    // Predicated region
    $region50: #{tpu_custom_call.1} parent=1 // pred_check
      %p96 = pneg %p95
    $region51: #{tpu_custom_call.1} parent=1 // pred_check_branch
      %98 = sbr.rel (%p96) target = $region53
    $region52: #{tpu_custom_call.1} parent=1 // pred_region
      %vm99 = vcmask 253952
      %100 = vst.msk [vmem:[#allocation2] sm:$0x1] %vm99, 0.0
      %101 = vst.msk [vmem:[#allocation2 + $0x1] sm:$0x1] %vm99, 0.0
      %102 = vst.msk [vmem:[#allocation3] sm:$0x1] %vm99, 0.0
      %103 = vst.msk [vmem:[#allocation3 + $0x1] sm:$0x1] %vm99, 0.0
    $region53: #{tpu_custom_call.1} parent=1 // pred_fallthru
      _
    %v104 = vld [vmem:[#allocation2] sm:$0x1]
    %s105 = scalar_lea.vmem [#allocation2], 1
    %v106 = vld [vmem:[%s105] sm:$0x1]
    %v107 = vld [vmem:[#allocation3] sm:$0x1]
    %s108 = scalar_lea.vmem [#allocation3], 1
    %v109 = vld [vmem:[%s108] sm:$0x1]
    %v110 = vld [vmem:[#allocation4] sm:$0x1]
    %v111 = vld [vmem:[#allocation7] sm:$0xff]
    %v112 = vld [vmem:[#allocation7 + $0x8] sm:$0xff]
    %v113 = vld [vmem:[#allocation9] sm:$0xff]
    %v114 = vld [vmem:[#allocation9 + $0x8] sm:$0xff]
    %v115 = vld [vmem:[#allocation9 + $0x10] sm:$0xff]
    %v116 = vld [vmem:[#allocation9 + $0x18] sm:$0xff]
    %v117 = vld [vmem:[%s3] sm:$0x1]
    %vm118 = vcmask 261120
    %v120 = vsel %vm118, %v104, 0
    %122 = vmatprep.subr.mxu0 0.0
    %123 = vmatpush1.msra.mxu0 %v113
    %124 = vmatprep.subr.mxu0 0.0
    %125 = vmatpush1.msra.mxu0 %v114
    %126 = vmatprep.subr.mxu0 0.0
    %127 = vmatpush1.msra.mxu0 %v115
    %128 = vmatprep.subr.mxu0 0.0
    %129 = vmatpush1.msra.mxu0 %v116
    %130 = vmatprep.subr.mxu0 0.0
    %131 = vmatpush1.msra.mxu0 0.0
    %132 = vmatprep.subr.mxu0 0.0
    %133 = vmatpush1.msra.mxu0 0.0
    %134 = vmatprep.subr.mxu0 0.0
    %135 = vmatpush1.msra.mxu0 0.0
    %136 = vmatprep.subr.mxu0 0.0
    %137 = vmatpush1.msra.mxu0 0.0
    %138 = vmatprep.subr.mxu0 0.0
    %139 = vmatpush1.msra.mxu0 0.0
    %140 = vmatprep.subr.mxu0 0.0
    %141 = vmatpush1.msra.mxu0 0.0
    %142 = vmatprep.subr.mxu0 0.0
    %143 = vmatpush1.msra.mxu0 0.0
    %144 = vmatprep.subr.mxu0 0.0
    %145 = vmatpush1.msra.mxu0 0.0
    %146 = vmatprep.subr.mxu0 0.0
    %147 = vmatpush1.msra.mxu0 0.0
    %148 = vmatprep.subr.mxu0 0.0
    %149 = vmatpush1.msra.mxu0 0.0
    %150 = vmatprep.subr.mxu0 0.0
    %151 = vmatpush1.msra.mxu0 0.0
    %152 = vmatprep.subr.mxu0 0.0
    %153 = vmatpush1.msra.mxu0 0.0
    %154 = vmatprep.subr.mxu0 0.0
    %155 = vmatpush1.msra.mxu0 0.0
    %156 = vmatprep.subr.mxu0 0.0
    %157 = vmatpush1.msra.mxu0 0.0
    %158 = vmatprep.subr.mxu0 0.0
    %159 = vmatpush1.msra.mxu0 0.0
    %160 = vmatprep.subr.mxu0 0.0
    %161 = vmatpush1.msra.mxu0 0.0
    %162 = vmatprep.subr.mxu0 0.0
    %163 = vmatpush1.msra.mxu0 0.0
    %164 = vmatprep.subr.mxu0 0.0
    %165 = vmatpush1.msra.mxu0 0.0
    %166 = vmatprep.subr.mxu0 0.0
    %167 = vmatpush1.msra.mxu0 0.0
    %168 = vmatprep.subr.mxu0 0.0
    %169 = vmatpush1.msra.mxu0 0.0
    %170 = vmatprep.subr.mxu0 0.0
    %171 = vmatpush1.msra.mxu0 0.0
    %172 = vmatprep.subr.mxu0 0.0
    %173 = vmatpush1.msra.mxu0 0.0
    %174 = vmatprep.subr.mxu0 0.0
    %175 = vmatpush1.msra.mxu0 0.0
    %176 = vmatprep.subr.mxu0 0.0
    %177 = vmatpush1.msra.mxu0 0.0
    %178 = vmatprep.subr.mxu0 0.0
    %179 = vmatpush1.msra.mxu0 0.0
    %180 = vmatprep.subr.mxu0 0.0
    %181 = vmatpush1.msra.mxu0 0.0
    %182 = vmatprep.subr.mxu0 0.0
    %183 = vmatpush1.msra.mxu0 0.0
    %184 = vmatprep.subr.mxu0 0.0
    %185 = vmatpush1.msra.mxu0 0.0
    %186 = vmatprep.mubr.f32.mxu0 0.0
    %187 = vmatmul.mubr.f32.gmra.mrb[0].mxu0 %v120
    %v188 = vpop.f32.mrb[0].mxu0
    %v189 = vadd.f32 0.0, %v188
    %v190 = vpop.f32.mrb[0].mxu0
    %191 = vdwg.mxu0
    %vm192 = vcmask 130048
    %v194 = vsel %vm192, %v110, 0
    %196 = vmatprep.subr.mxu0 0.0
    %197 = vmatpush1.msra.mxu0 %v111
    %198 = vmatprep.subr.mxu0 0.0
    %199 = vmatpush1.msra.mxu0 %v112
    %200 = vmatprep.subr.mxu0 0.0
    %201 = vmatpush1.msra.mxu0 0.0
    %202 = vmatprep.subr.mxu0 0.0
    %203 = vmatpush1.msra.mxu0 0.0
    %204 = vmatprep.subr.mxu0 0.0
    %205 = vmatpush1.msra.mxu0 0.0
    %206 = vmatprep.subr.mxu0 0.0
    %207 = vmatpush1.msra.mxu0 0.0
    %208 = vmatprep.subr.mxu0 0.0
    %209 = vmatpush1.msra.mxu0 0.0
    %210 = vmatprep.subr.mxu0 0.0
    %211 = vmatpush1.msra.mxu0 0.0
    %212 = vmatprep.subr.mxu0 0.0
    %213 = vmatpush1.msra.mxu0 0.0
    %214 = vmatprep.subr.mxu0 0.0
    %215 = vmatpush1.msra.mxu0 0.0
    %216 = vmatprep.subr.mxu0 0.0
    %217 = vmatpush1.msra.mxu0 0.0
    %218 = vmatprep.subr.mxu0 0.0
    %219 = vmatpush1.msra.mxu0 0.0
    %220 = vmatprep.subr.mxu0 0.0
    %221 = vmatpush1.msra.mxu0 0.0
    %222 = vmatprep.subr.mxu0 0.0
    %223 = vmatpush1.msra.mxu0 0.0
    %224 = vmatprep.subr.mxu0 0.0
    %225 = vmatpush1.msra.mxu0 0.0
    %226 = vmatprep.subr.mxu0 0.0
    %227 = vmatpush1.msra.mxu0 0.0
    %228 = vmatprep.subr.mxu0 0.0
    %229 = vmatpush1.msra.mxu0 0.0
    %230 = vmatprep.subr.mxu0 0.0
    %231 = vmatpush1.msra.mxu0 0.0
    %232 = vmatprep.subr.mxu0 0.0
    %233 = vmatpush1.msra.mxu0 0.0
    %234 = vmatprep.subr.mxu0 0.0
    %235 = vmatpush1.msra.mxu0 0.0
    %236 = vmatprep.subr.mxu0 0.0
    %237 = vmatpush1.msra.mxu0 0.0
    %238 = vmatprep.subr.mxu0 0.0
    %239 = vmatpush1.msra.mxu0 0.0
    %240 = vmatprep.subr.mxu0 0.0
    %241 = vmatpush1.msra.mxu0 0.0
    %242 = vmatprep.subr.mxu0 0.0
    %243 = vmatpush1.msra.mxu0 0.0
    %244 = vmatprep.subr.mxu0 0.0
    %245 = vmatpush1.msra.mxu0 0.0
    %246 = vmatprep.subr.mxu0 0.0
    %247 = vmatpush1.msra.mxu0 0.0
    %248 = vmatprep.subr.mxu0 0.0
    %249 = vmatpush1.msra.mxu0 0.0
    %250 = vmatprep.subr.mxu0 0.0
    %251 = vmatpush1.msra.mxu0 0.0
    %252 = vmatprep.subr.mxu0 0.0
    %253 = vmatpush1.msra.mxu0 0.0
    %254 = vmatprep.subr.mxu0 0.0
    %255 = vmatpush1.msra.mxu0 0.0
    %256 = vmatprep.subr.mxu0 0.0
    %257 = vmatpush1.msra.mxu0 0.0
    %258 = vmatprep.subr.mxu0 0.0
    %259 = vmatpush1.msra.mxu0 0.0
    %260 = vmatprep.mubr.f32.mxu0 0.0
    %261 = vmatmul.mubr.f32.gmra.mrb[0].mxu0 %v194
    %v262 = vpop.f32.mrb[0].mxu0
    %v263 = vadd.f32 %v189, %v262
    %v264 = vpop.f32.mrb[0].mxu0
    %265 = vdwg.mxu0
    %v266 = vadd.f32 %v263, %v117
    %v267 = vxor.u32 %v266, 2147483648
    %v268 = vmul.f32 %v267, 1.442695
    %v269 = vpow.pop %v268
    %v270 = vadd.f32 %v269, 1.0
    %v271 = vrcp.pop %v270
    %v272 = vmul.f32 1.0, %v271
    %v273 = vtanh.pop %v266
    %v275 = vlaneseq
    %v276 = vshrl.u32 %v275, 7
    %v277 = vsub.s32 0, %v276
    %v278 = vrot.slane %v107, %v277
    %279 = vrot.lane.b32.xlu0 %v278, 32
    %v280 = vpop.permute.xlu0 %279
    %v282 = vmul.f32 %v272, %v280
    %284 = vrot.lane.b32.xlu0 %v273, 64
    %v285 = vpop.permute.xlu0 %284
    %v287 = vmul.f32 %v272, %v285
    %289 = vrot.lane.b32.xlu0 %v287, 32
    %v290 = vpop.permute.xlu0 %289
    %v292 = vadd.f32 %v282, %v290
    %v293 = vtanh.pop %v292
    %295 = vrot.lane.b32.xlu0 %v293, 64
    %v296 = vpop.permute.xlu0 %295
    %v298 = vmul.f32 %v272, %v296
    %v299 = vld [vmem:[#allocation10] sm:$0xff]
    %v300 = vld [vmem:[#allocation10 + $0x8] sm:$0xff]
    %v301 = vld [vmem:[#allocation10 + $0x10] sm:$0xff]
    %v302 = vld [vmem:[#allocation10 + $0x18] sm:$0xff]
    %v303 = vld [vmem:[#allocation12] sm:$0xff]
    %v304 = vld [vmem:[#allocation12 + $0x8] sm:$0xff]
    %v305 = vld [vmem:[#allocation12 + $0x10] sm:$0xff]
    %v306 = vld [vmem:[#allocation12 + $0x18] sm:$0xff]
    %v307 = vld [vmem:[%s6] sm:$0x1]
    %v309 = vsel %vm118, %v106, 0
    %311 = vmatprep.subr.mxu0 0.0
    %312 = vmatpush1.msra.mxu0 %v303
    %313 = vmatprep.subr.mxu0 0.0
    %314 = vmatpush1.msra.mxu0 %v304
    %315 = vmatprep.subr.mxu0 0.0
    %316 = vmatpush1.msra.mxu0 %v305
    %317 = vmatprep.subr.mxu0 0.0
    %318 = vmatpush1.msra.mxu0 %v306
    %319 = vmatprep.subr.mxu0 0.0
    %320 = vmatpush1.msra.mxu0 0.0
    %321 = vmatprep.subr.mxu0 0.0
    %322 = vmatpush1.msra.mxu0 0.0
    %323 = vmatprep.subr.mxu0 0.0
    %324 = vmatpush1.msra.mxu0 0.0
    %325 = vmatprep.subr.mxu0 0.0
    %326 = vmatpush1.msra.mxu0 0.0
    %327 = vmatprep.subr.mxu0 0.0
    %328 = vmatpush1.msra.mxu0 0.0
    %329 = vmatprep.subr.mxu0 0.0
    %330 = vmatpush1.msra.mxu0 0.0
    %331 = vmatprep.subr.mxu0 0.0
    %332 = vmatpush1.msra.mxu0 0.0
    %333 = vmatprep.subr.mxu0 0.0
    %334 = vmatpush1.msra.mxu0 0.0
    %335 = vmatprep.subr.mxu0 0.0
    %336 = vmatpush1.msra.mxu0 0.0
    %337 = vmatprep.subr.mxu0 0.0
    %338 = vmatpush1.msra.mxu0 0.0
    %339 = vmatprep.subr.mxu0 0.0
    %340 = vmatpush1.msra.mxu0 0.0
    %341 = vmatprep.subr.mxu0 0.0
    %342 = vmatpush1.msra.mxu0 0.0
    %343 = vmatprep.subr.mxu0 0.0
    %344 = vmatpush1.msra.mxu0 0.0
    %345 = vmatprep.subr.mxu0 0.0
    %346 = vmatpush1.msra.mxu0 0.0
    %347 = vmatprep.subr.mxu0 0.0
    %348 = vmatpush1.msra.mxu0 0.0
    %349 = vmatprep.subr.mxu0 0.0
    %350 = vmatpush1.msra.mxu0 0.0
    %351 = vmatprep.subr.mxu0 0.0
    %352 = vmatpush1.msra.mxu0 0.0
    %353 = vmatprep.subr.mxu0 0.0
    %354 = vmatpush1.msra.mxu0 0.0
    %355 = vmatprep.subr.mxu0 0.0
    %356 = vmatpush1.msra.mxu0 0.0
    %357 = vmatprep.subr.mxu0 0.0
    %358 = vmatpush1.msra.mxu0 0.0
    %359 = vmatprep.subr.mxu0 0.0
    %360 = vmatpush1.msra.mxu0 0.0
    %361 = vmatprep.subr.mxu0 0.0
    %362 = vmatpush1.msra.mxu0 0.0
    %363 = vmatprep.subr.mxu0 0.0
    %364 = vmatpush1.msra.mxu0 0.0
    %365 = vmatprep.subr.mxu0 0.0
    %366 = vmatpush1.msra.mxu0 0.0
    %367 = vmatprep.subr.mxu0 0.0
    %368 = vmatpush1.msra.mxu0 0.0
    %369 = vmatprep.subr.mxu0 0.0
    %370 = vmatpush1.msra.mxu0 0.0
    %371 = vmatprep.subr.mxu0 0.0
    %372 = vmatpush1.msra.mxu0 0.0
    %373 = vmatprep.subr.mxu0 0.0
    %374 = vmatpush1.msra.mxu0 0.0
    %375 = vmatprep.mubr.f32.mxu0 0.0
    %376 = vmatmul.mubr.f32.gmra.mrb[0].mxu0 %v309
    %v377 = vpop.f32.mrb[0].mxu0
    %v378 = vadd.f32 0.0, %v377
    %v379 = vpop.f32.mrb[0].mxu0
    %380 = vdwg.mxu0
    %382 = vrot.lane.b32.xlu0 %v298, 32
    %v383 = vpop.permute.xlu0 %382
    %v384 = vsel %vm118, %v383, 0
    %386 = vmatprep.subr.mxu0 0.0
    %387 = vmatpush1.msra.mxu0 %v299
    %388 = vmatprep.subr.mxu0 0.0
    %389 = vmatpush1.msra.mxu0 %v300
    %390 = vmatprep.subr.mxu0 0.0
    %391 = vmatpush1.msra.mxu0 %v301
    %392 = vmatprep.subr.mxu0 0.0
    %393 = vmatpush1.msra.mxu0 %v302
    %394 = vmatprep.subr.mxu0 0.0
    %395 = vmatpush1.msra.mxu0 0.0
    %396 = vmatprep.subr.mxu0 0.0
    %397 = vmatpush1.msra.mxu0 0.0
    %398 = vmatprep.subr.mxu0 0.0
    %399 = vmatpush1.msra.mxu0 0.0
    %400 = vmatprep.subr.mxu0 0.0
    %401 = vmatpush1.msra.mxu0 0.0
    %402 = vmatprep.subr.mxu0 0.0
    %403 = vmatpush1.msra.mxu0 0.0
    %404 = vmatprep.subr.mxu0 0.0
    %405 = vmatpush1.msra.mxu0 0.0
    %406 = vmatprep.subr.mxu0 0.0
    %407 = vmatpush1.msra.mxu0 0.0
    %408 = vmatprep.subr.mxu0 0.0
    %409 = vmatpush1.msra.mxu0 0.0
    %410 = vmatprep.subr.mxu0 0.0
    %411 = vmatpush1.msra.mxu0 0.0
    %412 = vmatprep.subr.mxu0 0.0
    %413 = vmatpush1.msra.mxu0 0.0
    %414 = vmatprep.subr.mxu0 0.0
    %415 = vmatpush1.msra.mxu0 0.0
    %416 = vmatprep.subr.mxu0 0.0
    %417 = vmatpush1.msra.mxu0 0.0
    %418 = vmatprep.subr.mxu0 0.0
    %419 = vmatpush1.msra.mxu0 0.0
    %420 = vmatprep.subr.mxu0 0.0
    %421 = vmatpush1.msra.mxu0 0.0
    %422 = vmatprep.subr.mxu0 0.0
    %423 = vmatpush1.msra.mxu0 0.0
    %424 = vmatprep.subr.mxu0 0.0
    %425 = vmatpush1.msra.mxu0 0.0
    %426 = vmatprep.subr.mxu0 0.0
    %427 = vmatpush1.msra.mxu0 0.0
    %428 = vmatprep.subr.mxu0 0.0
    %429 = vmatpush1.msra.mxu0 0.0
    %430 = vmatprep.subr.mxu0 0.0
    %431 = vmatpush1.msra.mxu0 0.0
    %432 = vmatprep.subr.mxu0 0.0
    %433 = vmatpush1.msra.mxu0 0.0
    %434 = vmatprep.subr.mxu0 0.0
    %435 = vmatpush1.msra.mxu0 0.0
    %436 = vmatprep.subr.mxu0 0.0
    %437 = vmatpush1.msra.mxu0 0.0
    %438 = vmatprep.subr.mxu0 0.0
    %439 = vmatpush1.msra.mxu0 0.0
    %440 = vmatprep.subr.mxu0 0.0
    %441 = vmatpush1.msra.mxu0 0.0
    %442 = vmatprep.subr.mxu0 0.0
    %443 = vmatpush1.msra.mxu0 0.0
    %444 = vmatprep.subr.mxu0 0.0
    %445 = vmatpush1.msra.mxu0 0.0
    %446 = vmatprep.subr.mxu0 0.0
    %447 = vmatpush1.msra.mxu0 0.0
    %448 = vmatprep.subr.mxu0 0.0
    %449 = vmatpush1.msra.mxu0 0.0
    %450 = vmatprep.mubr.f32.mxu0 0.0
    %451 = vmatmul.mubr.f32.gmra.mrb[0].mxu0 %v384
    %v452 = vpop.f32.mrb[0].mxu0
    %v453 = vadd.f32 %v378, %v452
    %v454 = vpop.f32.mrb[0].mxu0
    %455 = vdwg.mxu0
    %v456 = vadd.f32 %v453, %v307
    %v457 = vxor.u32 %v456, 2147483648
    %v458 = vmul.f32 %v457, 1.442695
    %v459 = vpow.pop %v458
    %v460 = vadd.f32 %v459, 1.0
    %v461 = vrcp.pop %v460
    %v462 = vmul.f32 1.0, %v461
    %v463 = vtanh.pop %v456
    %v465 = vlaneseq
    %v466 = vshrl.u32 %v465, 7
    %v467 = vsub.s32 0, %v466
    %v468 = vrot.slane %v109, %v467
    %469 = vrot.lane.b32.xlu0 %v468, 32
    %v470 = vpop.permute.xlu0 %469
    %v472 = vmul.f32 %v462, %v470
    %474 = vrot.lane.b32.xlu0 %v463, 64
    %v475 = vpop.permute.xlu0 %474
    %v477 = vmul.f32 %v462, %v475
    %479 = vrot.lane.b32.xlu0 %v477, 32
    %v480 = vpop.permute.xlu0 %479
    %v482 = vadd.f32 %v472, %v480
    %v483 = vtanh.pop %v482
    %485 = vrot.lane.b32.xlu0 %v483, 64
    %v486 = vpop.permute.xlu0 %485
    %v488 = vmul.f32 %v462, %v486
    %490 = vrot.lane.b32.xlu0 %v488, 32
    %v491 = vpop.permute.xlu0 %490
    %vm493 = vcmask 253952
    %494 = vst.msk [vmem:[#allocation13] sm:$0x1] %vm493, %v491
    %s495 = scalar_lea.vmem [#allocation4], 1
    %v496 = vld [vmem:[%s495] sm:$0x1]
    %v497 = vld [vmem:[#allocation7] sm:$0xff]
    %v498 = vld [vmem:[#allocation7 + $0x8] sm:$0xff]
    %v499 = vld [vmem:[#allocation9] sm:$0xff]
    %v500 = vld [vmem:[#allocation9 + $0x8] sm:$0xff]
    %v501 = vld [vmem:[#allocation9 + $0x10] sm:$0xff]
    %v502 = vld [vmem:[#allocation9 + $0x18] sm:$0xff]
    %v503 = vld [vmem:[%s3] sm:$0x1]
    %504 = vmatprep.subr.mxu0 0.0
    %505 = vmatpush1.msra.mxu0 %v499
    %506 = vmatprep.subr.mxu0 0.0
    %507 = vmatpush1.msra.mxu0 %v500
    %508 = vmatprep.subr.mxu0 0.0
    %509 = vmatpush1.msra.mxu0 %v501
    %510 = vmatprep.subr.mxu0 0.0
    %511 = vmatpush1.msra.mxu0 %v502
    %512 = vmatprep.subr.mxu0 0.0
    %513 = vmatpush1.msra.mxu0 0.0
    %514 = vmatprep.subr.mxu0 0.0
    %515 = vmatpush1.msra.mxu0 0.0
    %516 = vmatprep.subr.mxu0 0.0
    %517 = vmatpush1.msra.mxu0 0.0
    %518 = vmatprep.subr.mxu0 0.0
    %519 = vmatpush1.msra.mxu0 0.0
    %520 = vmatprep.subr.mxu0 0.0
    %521 = vmatpush1.msra.mxu0 0.0
    %522 = vmatprep.subr.mxu0 0.0
    %523 = vmatpush1.msra.mxu0 0.0
    %524 = vmatprep.subr.mxu0 0.0
    %525 = vmatpush1.msra.mxu0 0.0
    %526 = vmatprep.subr.mxu0 0.0
    %527 = vmatpush1.msra.mxu0 0.0
    %528 = vmatprep.subr.mxu0 0.0
    %529 = vmatpush1.msra.mxu0 0.0
    %530 = vmatprep.subr.mxu0 0.0
    %531 = vmatpush1.msra.mxu0 0.0
    %532 = vmatprep.subr.mxu0 0.0
    %533 = vmatpush1.msra.mxu0 0.0
    %534 = vmatprep.subr.mxu0 0.0
    %535 = vmatpush1.msra.mxu0 0.0
    %536 = vmatprep.subr.mxu0 0.0
    %537 = vmatpush1.msra.mxu0 0.0
    %538 = vmatprep.subr.mxu0 0.0
    %539 = vmatpush1.msra.mxu0 0.0
    %540 = vmatprep.subr.mxu0 0.0
    %541 = vmatpush1.msra.mxu0 0.0
    %542 = vmatprep.subr.mxu0 0.0
    %543 = vmatpush1.msra.mxu0 0.0
    %544 = vmatprep.subr.mxu0 0.0
    %545 = vmatpush1.msra.mxu0 0.0
    %546 = vmatprep.subr.mxu0 0.0
    %547 = vmatpush1.msra.mxu0 0.0
    %548 = vmatprep.subr.mxu0 0.0
    %549 = vmatpush1.msra.mxu0 0.0
    %550 = vmatprep.subr.mxu0 0.0
    %551 = vmatpush1.msra.mxu0 0.0
    %552 = vmatprep.subr.mxu0 0.0
    %553 = vmatpush1.msra.mxu0 0.0
    %554 = vmatprep.subr.mxu0 0.0
    %555 = vmatpush1.msra.mxu0 0.0
    %556 = vmatprep.subr.mxu0 0.0
    %557 = vmatpush1.msra.mxu0 0.0
    %558 = vmatprep.subr.mxu0 0.0
    %559 = vmatpush1.msra.mxu0 0.0
    %560 = vmatprep.subr.mxu0 0.0
    %561 = vmatpush1.msra.mxu0 0.0
    %562 = vmatprep.subr.mxu0 0.0
    %563 = vmatpush1.msra.mxu0 0.0
    %564 = vmatprep.subr.mxu0 0.0
    %565 = vmatpush1.msra.mxu0 0.0
    %566 = vmatprep.subr.mxu0 0.0
    %567 = vmatpush1.msra.mxu0 0.0
    %568 = vmatprep.mubr.f32.mxu0 0.0
    %569 = vmatmul.mubr.f32.gmra.mrb[0].mxu0 %v384
    %v570 = vpop.f32.mrb[0].mxu0
    %v571 = vadd.f32 0.0, %v570
    %v572 = vpop.f32.mrb[0].mxu0
    %573 = vdwg.mxu0
    %v575 = vsel %vm192, %v496, 0
    %577 = vmatprep.subr.mxu0 0.0
    %578 = vmatpush1.msra.mxu0 %v497
    %579 = vmatprep.subr.mxu0 0.0
    %580 = vmatpush1.msra.mxu0 %v498
    %581 = vmatprep.subr.mxu0 0.0
    %582 = vmatpush1.msra.mxu0 0.0
    %583 = vmatprep.subr.mxu0 0.0
    %584 = vmatpush1.msra.mxu0 0.0
    %585 = vmatprep.subr.mxu0 0.0
    %586 = vmatpush1.msra.mxu0 0.0
    %587 = vmatprep.subr.mxu0 0.0
    %588 = vmatpush1.msra.mxu0 0.0
    %589 = vmatprep.subr.mxu0 0.0
    %590 = vmatpush1.msra.mxu0 0.0
    %591 = vmatprep.subr.mxu0 0.0
    %592 = vmatpush1.msra.mxu0 0.0
    %593 = vmatprep.subr.mxu0 0.0
    %594 = vmatpush1.msra.mxu0 0.0
    %595 = vmatprep.subr.mxu0 0.0
    %596 = vmatpush1.msra.mxu0 0.0
    %597 = vmatprep.subr.mxu0 0.0
    %598 = vmatpush1.msra.mxu0 0.0
    %599 = vmatprep.subr.mxu0 0.0
    %600 = vmatpush1.msra.mxu0 0.0
    %601 = vmatprep.subr.mxu0 0.0
    %602 = vmatpush1.msra.mxu0 0.0
    %603 = vmatprep.subr.mxu0 0.0
    %604 = vmatpush1.msra.mxu0 0.0
    %605 = vmatprep.subr.mxu0 0.0
    %606 = vmatpush1.msra.mxu0 0.0
    %607 = vmatprep.subr.mxu0 0.0
    %608 = vmatpush1.msra.mxu0 0.0
    %609 = vmatprep.subr.mxu0 0.0
    %610 = vmatpush1.msra.mxu0 0.0
    %611 = vmatprep.subr.mxu0 0.0
    %612 = vmatpush1.msra.mxu0 0.0
    %613 = vmatprep.subr.mxu0 0.0
    %614 = vmatpush1.msra.mxu0 0.0
    %615 = vmatprep.subr.mxu0 0.0
    %616 = vmatpush1.msra.mxu0 0.0
    %617 = vmatprep.subr.mxu0 0.0
    %618 = vmatpush1.msra.mxu0 0.0
    %619 = vmatprep.subr.mxu0 0.0
    %620 = vmatpush1.msra.mxu0 0.0
    %621 = vmatprep.subr.mxu0 0.0
    %622 = vmatpush1.msra.mxu0 0.0
    %623 = vmatprep.subr.mxu0 0.0
    %624 = vmatpush1.msra.mxu0 0.0
    %625 = vmatprep.subr.mxu0 0.0
    %626 = vmatpush1.msra.mxu0 0.0
    %627 = vmatprep.subr.mxu0 0.0
    %628 = vmatpush1.msra.mxu0 0.0
    %629 = vmatprep.subr.mxu0 0.0
    %630 = vmatpush1.msra.mxu0 0.0
    %631 = vmatprep.subr.mxu0 0.0
    %632 = vmatpush1.msra.mxu0 0.0
    %633 = vmatprep.subr.mxu0 0.0
    %634 = vmatpush1.msra.mxu0 0.0
    %635 = vmatprep.subr.mxu0 0.0
    %636 = vmatpush1.msra.mxu0 0.0
    %637 = vmatprep.subr.mxu0 0.0
    %638 = vmatpush1.msra.mxu0 0.0
    %639 = vmatprep.subr.mxu0 0.0
    %640 = vmatpush1.msra.mxu0 0.0
    %641 = vmatprep.mubr.f32.mxu0 0.0
    %642 = vmatmul.mubr.f32.gmra.mrb[0].mxu0 %v575
    %v643 = vpop.f32.mrb[0].mxu0
    %v644 = vadd.f32 %v571, %v643
    %v645 = vpop.f32.mrb[0].mxu0
    %646 = vdwg.mxu0
    %v647 = vadd.f32 %v644, %v503
    %v648 = vxor.u32 %v647, 2147483648
    %v649 = vmul.f32 %v648, 1.442695
    %v650 = vpow.pop %v649
    %v651 = vadd.f32 %v650, 1.0
    %v652 = vrcp.pop %v651
    %v653 = vmul.f32 1.0, %v652
    %v654 = vtanh.pop %v647
    %v655 = vmul.f32 %v653, %v292
    %657 = vrot.lane.b32.xlu0 %v654, 64
    %v658 = vpop.permute.xlu0 %657
    %v660 = vmul.f32 %v653, %v658
    %662 = vrot.lane.b32.xlu0 %v660, 32
    %v663 = vpop.permute.xlu0 %662
    %v665 = vadd.f32 %v655, %v663
    %v666 = vtanh.pop %v665
    %668 = vrot.lane.b32.xlu0 %v666, 64
    %v669 = vpop.permute.xlu0 %668
    %v671 = vmul.f32 %v653, %v669
    %v672 = vld [vmem:[#allocation10] sm:$0xff]
    %v673 = vld [vmem:[#allocation10 + $0x8] sm:$0xff]
    %v674 = vld [vmem:[#allocation10 + $0x10] sm:$0xff]
    %v675 = vld [vmem:[#allocation10 + $0x18] sm:$0xff]
    %v676 = vld [vmem:[#allocation12] sm:$0xff]
    %v677 = vld [vmem:[#allocation12 + $0x8] sm:$0xff]
    %v678 = vld [vmem:[#allocation12 + $0x10] sm:$0xff]
    %v679 = vld [vmem:[#allocation12 + $0x18] sm:$0xff]
    %v680 = vld [vmem:[%s6] sm:$0x1]
    %v681 = vsel %vm118, %v491, 0
    %683 = vmatprep.subr.mxu0 0.0
    %684 = vmatpush1.msra.mxu0 %v676
    %685 = vmatprep.subr.mxu0 0.0
    %686 = vmatpush1.msra.mxu0 %v677
    %687 = vmatprep.subr.mxu0 0.0
    %688 = vmatpush1.msra.mxu0 %v678
    %689 = vmatprep.subr.mxu0 0.0
    %690 = vmatpush1.msra.mxu0 %v679
    %691 = vmatprep.subr.mxu0 0.0
    %692 = vmatpush1.msra.mxu0 0.0
    %693 = vmatprep.subr.mxu0 0.0
    %694 = vmatpush1.msra.mxu0 0.0
    %695 = vmatprep.subr.mxu0 0.0
    %696 = vmatpush1.msra.mxu0 0.0
    %697 = vmatprep.subr.mxu0 0.0
    %698 = vmatpush1.msra.mxu0 0.0
    %699 = vmatprep.subr.mxu0 0.0
    %700 = vmatpush1.msra.mxu0 0.0
    %701 = vmatprep.subr.mxu0 0.0
    %702 = vmatpush1.msra.mxu0 0.0
    %703 = vmatprep.subr.mxu0 0.0
    %704 = vmatpush1.msra.mxu0 0.0
    %705 = vmatprep.subr.mxu0 0.0
    %706 = vmatpush1.msra.mxu0 0.0
    %707 = vmatprep.subr.mxu0 0.0
    %708 = vmatpush1.msra.mxu0 0.0
    %709 = vmatprep.subr.mxu0 0.0
    %710 = vmatpush1.msra.mxu0 0.0
    %711 = vmatprep.subr.mxu0 0.0
    %712 = vmatpush1.msra.mxu0 0.0
    %713 = vmatprep.subr.mxu0 0.0
    %714 = vmatpush1.msra.mxu0 0.0
    %715 = vmatprep.subr.mxu0 0.0
    %716 = vmatpush1.msra.mxu0 0.0
    %717 = vmatprep.subr.mxu0 0.0
    %718 = vmatpush1.msra.mxu0 0.0
    %719 = vmatprep.subr.mxu0 0.0
    %720 = vmatpush1.msra.mxu0 0.0
    %721 = vmatprep.subr.mxu0 0.0
    %722 = vmatpush1.msra.mxu0 0.0
    %723 = vmatprep.subr.mxu0 0.0
    %724 = vmatpush1.msra.mxu0 0.0
    %725 = vmatprep.subr.mxu0 0.0
    %726 = vmatpush1.msra.mxu0 0.0
    %727 = vmatprep.subr.mxu0 0.0
    %728 = vmatpush1.msra.mxu0 0.0
    %729 = vmatprep.subr.mxu0 0.0
    %730 = vmatpush1.msra.mxu0 0.0
    %731 = vmatprep.subr.mxu0 0.0
    %732 = vmatpush1.msra.mxu0 0.0
    %733 = vmatprep.subr.mxu0 0.0
    %734 = vmatpush1.msra.mxu0 0.0
    %735 = vmatprep.subr.mxu0 0.0
    %736 = vmatpush1.msra.mxu0 0.0
    %737 = vmatprep.subr.mxu0 0.0
    %738 = vmatpush1.msra.mxu0 0.0
    %739 = vmatprep.subr.mxu0 0.0
    %740 = vmatpush1.msra.mxu0 0.0
    %741 = vmatprep.subr.mxu0 0.0
    %742 = vmatpush1.msra.mxu0 0.0
    %743 = vmatprep.subr.mxu0 0.0
    %744 = vmatpush1.msra.mxu0 0.0
    %745 = vmatprep.subr.mxu0 0.0
    %746 = vmatpush1.msra.mxu0 0.0
    %747 = vmatprep.mubr.f32.mxu0 0.0
    %748 = vmatmul.mubr.f32.gmra.mrb[0].mxu0 %v681
    %v749 = vpop.f32.mrb[0].mxu0
    %v750 = vadd.f32 0.0, %v749
    %v751 = vpop.f32.mrb[0].mxu0
    %752 = vdwg.mxu0
    %754 = vrot.lane.b32.xlu0 %v671, 32
    %v755 = vpop.permute.xlu0 %754
    %v756 = vsel %vm118, %v755, 0
    %758 = vmatprep.subr.mxu0 0.0
    %759 = vmatpush1.msra.mxu0 %v672
    %760 = vmatprep.subr.mxu0 0.0
    %761 = vmatpush1.msra.mxu0 %v673
    %762 = vmatprep.subr.mxu0 0.0
    %763 = vmatpush1.msra.mxu0 %v674
    %764 = vmatprep.subr.mxu0 0.0
    %765 = vmatpush1.msra.mxu0 %v675
    %766 = vmatprep.subr.mxu0 0.0
    %767 = vmatpush1.msra.mxu0 0.0
    %768 = vmatprep.subr.mxu0 0.0
    %769 = vmatpush1.msra.mxu0 0.0
    %770 = vmatprep.subr.mxu0 0.0
    %771 = vmatpush1.msra.mxu0 0.0
    %772 = vmatprep.subr.mxu0 0.0
    %773 = vmatpush1.msra.mxu0 0.0
    %774 = vmatprep.subr.mxu0 0.0
    %775 = vmatpush1.msra.mxu0 0.0
    %776 = vmatprep.subr.mxu0 0.0
    %777 = vmatpush1.msra.mxu0 0.0
    %778 = vmatprep.subr.mxu0 0.0
    %779 = vmatpush1.msra.mxu0 0.0
    %780 = vmatprep.subr.mxu0 0.0
    %781 = vmatpush1.msra.mxu0 0.0
    %782 = vmatprep.subr.mxu0 0.0
    %783 = vmatpush1.msra.mxu0 0.0
    %784 = vmatprep.subr.mxu0 0.0
    %785 = vmatpush1.msra.mxu0 0.0
    %786 = vmatprep.subr.mxu0 0.0
    %787 = vmatpush1.msra.mxu0 0.0
    %788 = vmatprep.subr.mxu0 0.0
    %789 = vmatpush1.msra.mxu0 0.0
    %790 = vmatprep.subr.mxu0 0.0
    %791 = vmatpush1.msra.mxu0 0.0
    %792 = vmatprep.subr.mxu0 0.0
    %793 = vmatpush1.msra.mxu0 0.0
    %794 = vmatprep.subr.mxu0 0.0
    %795 = vmatpush1.msra.mxu0 0.0
    %796 = vmatprep.subr.mxu0 0.0
    %797 = vmatpush1.msra.mxu0 0.0
    %798 = vmatprep.subr.mxu0 0.0
    %799 = vmatpush1.msra.mxu0 0.0
    %800 = vmatprep.subr.mxu0 0.0
    %801 = vmatpush1.msra.mxu0 0.0
    %802 = vmatprep.subr.mxu0 0.0
    %803 = vmatpush1.msra.mxu0 0.0
    %804 = vmatprep.subr.mxu0 0.0
    %805 = vmatpush1.msra.mxu0 0.0
    %806 = vmatprep.subr.mxu0 0.0
    %807 = vmatpush1.msra.mxu0 0.0
    %808 = vmatprep.subr.mxu0 0.0
    %809 = vmatpush1.msra.mxu0 0.0
    %810 = vmatprep.subr.mxu0 0.0
    %811 = vmatpush1.msra.mxu0 0.0
    %812 = vmatprep.subr.mxu0 0.0
    %813 = vmatpush1.msra.mxu0 0.0
    %814 = vmatprep.subr.mxu0 0.0
    %815 = vmatpush1.msra.mxu0 0.0
    %816 = vmatprep.subr.mxu0 0.0
    %817 = vmatpush1.msra.mxu0 0.0
    %818 = vmatprep.subr.mxu0 0.0
    %819 = vmatpush1.msra.mxu0 0.0
    %820 = vmatprep.subr.mxu0 0.0
    %821 = vmatpush1.msra.mxu0 0.0
    %822 = vmatprep.mubr.f32.mxu0 0.0
    %823 = vmatmul.mubr.f32.gmra.mrb[0].mxu0 %v756
    %v824 = vpop.f32.mrb[0].mxu0
    %v825 = vadd.f32 %v750, %v824
    %v826 = vpop.f32.mrb[0].mxu0
    %827 = vdwg.mxu0
    %v828 = vadd.f32 %v825, %v680
    %v829 = vxor.u32 %v828, 2147483648
    %v830 = vmul.f32 %v829, 1.442695
    %v831 = vpow.pop %v830
    %v832 = vadd.f32 %v831, 1.0
    %v833 = vrcp.pop %v832
    %v834 = vmul.f32 1.0, %v833
    %v835 = vtanh.pop %v828
    %v836 = vmul.f32 %v834, %v482
    %838 = vrot.lane.b32.xlu0 %v835, 64
    %v839 = vpop.permute.xlu0 %838
    %v841 = vmul.f32 %v834, %v839
    %843 = vrot.lane.b32.xlu0 %v841, 32
    %v844 = vpop.permute.xlu0 %843
    %v846 = vadd.f32 %v836, %v844
    %v847 = vtanh.pop %v846
    %849 = vrot.lane.b32.xlu0 %v847, 64
    %v850 = vpop.permute.xlu0 %849
    %v852 = vmul.f32 %v834, %v850
    %854 = vrot.lane.b32.xlu0 %v852, 32
    %v855 = vpop.permute.xlu0 %854
    %s857 = scalar_lea.vmem [#allocation13], 1
    %858 = vst.msk [vmem:[%s857] sm:$0x1] %vm493, %v855
    %s859 = scalar_lea.vmem [#allocation4], 2
    %v860 = vld [vmem:[%s859] sm:$0x1]
    %v861 = vld [vmem:[#allocation7] sm:$0xff]
    %v862 = vld [vmem:[#allocation7 + $0x8] sm:$0xff]
    %v863 = vld [vmem:[#allocation9] sm:$0xff]
    %v864 = vld [vmem:[#allocation9 + $0x8] sm:$0xff]
    %v865 = vld [vmem:[#allocation9 + $0x10] sm:$0xff]
    %v866 = vld [vmem:[#allocation9 + $0x18] sm:$0xff]
    %v867 = vld [vmem:[%s3] sm:$0x1]
    %868 = vmatprep.subr.mxu0 0.0
    %869 = vmatpush1.msra.mxu0 %v863
    %870 = vmatprep.subr.mxu0 0.0
    %871 = vmatpush1.msra.mxu0 %v864
    %872 = vmatprep.subr.mxu0 0.0
    %873 = vmatpush1.msra.mxu0 %v865
    %874 = vmatprep.subr.mxu0 0.0
    %875 = vmatpush1.msra.mxu0 %v866
    %876 = vmatprep.subr.mxu0 0.0
    %877 = vmatpush1.msra.mxu0 0.0
    %878 = vmatprep.subr.mxu0 0.0
    %879 = vmatpush1.msra.mxu0 0.0
    %880 = vmatprep.subr.mxu0 0.0
    %881 = vmatpush1.msra.mxu0 0.0
    %882 = vmatprep.subr.mxu0 0.0
    %883 = vmatpush1.msra.mxu0 0.0
    %884 = vmatprep.subr.mxu0 0.0
    %885 = vmatpush1.msra.mxu0 0.0
    %886 = vmatprep.subr.mxu0 0.0
    %887 = vmatpush1.msra.mxu0 0.0
    %888 = vmatprep.subr.mxu0 0.0
    %889 = vmatpush1.msra.mxu0 0.0
    %890 = vmatprep.subr.mxu0 0.0
    %891 = vmatpush1.msra.mxu0 0.0
    %892 = vmatprep.subr.mxu0 0.0
    %893 = vmatpush1.msra.mxu0 0.0
    %894 = vmatprep.subr.mxu0 0.0
    %895 = vmatpush1.msra.mxu0 0.0
    %896 = vmatprep.subr.mxu0 0.0
    %897 = vmatpush1.msra.mxu0 0.0
    %898 = vmatprep.subr.mxu0 0.0
    %899 = vmatpush1.msra.mxu0 0.0
    %900 = vmatprep.subr.mxu0 0.0
    %901 = vmatpush1.msra.mxu0 0.0
    %902 = vmatprep.subr.mxu0 0.0
    %903 = vmatpush1.msra.mxu0 0.0
    %904 = vmatprep.subr.mxu0 0.0
    %905 = vmatpush1.msra.mxu0 0.0
    %906 = vmatprep.subr.mxu0 0.0
    %907 = vmatpush1.msra.mxu0 0.0
    %908 = vmatprep.subr.mxu0 0.0
    %909 = vmatpush1.msra.mxu0 0.0
    %910 = vmatprep.subr.mxu0 0.0
    %911 = vmatpush1.msra.mxu0 0.0
    %912 = vmatprep.subr.mxu0 0.0
    %913 = vmatpush1.msra.mxu0 0.0
    %914 = vmatprep.subr.mxu0 0.0
    %915 = vmatpush1.msra.mxu0 0.0
    %916 = vmatprep.subr.mxu0 0.0
    %917 = vmatpush1.msra.mxu0 0.0
    %918 = vmatprep.subr.mxu0 0.0
    %919 = vmatpush1.msra.mxu0 0.0
    %920 = vmatprep.subr.mxu0 0.0
    %921 = vmatpush1.msra.mxu0 0.0
    %922 = vmatprep.subr.mxu0 0.0
    %923 = vmatpush1.msra.mxu0 0.0
    %924 = vmatprep.subr.mxu0 0.0
    %925 = vmatpush1.msra.mxu0 0.0
    %926 = vmatprep.subr.mxu0 0.0
    %927 = vmatpush1.msra.mxu0 0.0
    %928 = vmatprep.subr.mxu0 0.0
    %929 = vmatpush1.msra.mxu0 0.0
    %930 = vmatprep.subr.mxu0 0.0
    %931 = vmatpush1.msra.mxu0 0.0
    %932 = vmatprep.mubr.f32.mxu0 0.0
    %933 = vmatmul.mubr.f32.gmra.mrb[0].mxu0 %v756
    %v934 = vpop.f32.mrb[0].mxu0
    %v935 = vadd.f32 0.0, %v934
    %v936 = vpop.f32.mrb[0].mxu0
    %937 = vdwg.mxu0
    %v939 = vsel %vm192, %v860, 0
    %941 = vmatprep.subr.mxu0 0.0
    %942 = vmatpush1.msra.mxu0 %v861
    %943 = vmatprep.subr.mxu0 0.0
    %944 = vmatpush1.msra.mxu0 %v862
    %945 = vmatprep.subr.mxu0 0.0
    %946 = vmatpush1.msra.mxu0 0.0
    %947 = vmatprep.subr.mxu0 0.0
    %948 = vmatpush1.msra.mxu0 0.0
    %949 = vmatprep.subr.mxu0 0.0
    %950 = vmatpush1.msra.mxu0 0.0
    %951 = vmatprep.subr.mxu0 0.0
    %952 = vmatpush1.msra.mxu0 0.0
    %953 = vmatprep.subr.mxu0 0.0
    %954 = vmatpush1.msra.mxu0 0.0
    %955 = vmatprep.subr.mxu0 0.0
    %956 = vmatpush1.msra.mxu0 0.0
    %957 = vmatprep.subr.mxu0 0.0
    %958 = vmatpush1.msra.mxu0 0.0
    %959 = vmatprep.subr.mxu0 0.0
    %960 = vmatpush1.msra.mxu0 0.0
    %961 = vmatprep.subr.mxu0 0.0
    %962 = vmatpush1.msra.mxu0 0.0
    %963 = vmatprep.subr.mxu0 0.0
    %964 = vmatpush1.msra.mxu0 0.0
    %965 = vmatprep.subr.mxu0 0.0
    %966 = vmatpush1.msra.mxu0 0.0
    %967 = vmatprep.subr.mxu0 0.0
    %968 = vmatpush1.msra.mxu0 0.0
    %969 = vmatprep.subr.mxu0 0.0
    %970 = vmatpush1.msra.mxu0 0.0
    %971 = vmatprep.subr.mxu0 0.0
    %972 = vmatpush1.msra.mxu0 0.0
    %973 = vmatprep.subr.mxu0 0.0
    %974 = vmatpush1.msra.mxu0 0.0
    %975 = vmatprep.subr.mxu0 0.0
    %976 = vmatpush1.msra.mxu0 0.0
    %977 = vmatprep.subr.mxu0 0.0
    %978 = vmatpush1.msra.mxu0 0.0
    %979 = vmatprep.subr.mxu0 0.0
    %980 = vmatpush1.msra.mxu0 0.0
    %981 = vmatprep.subr.mxu0 0.0
    %982 = vmatpush1.msra.mxu0 0.0
    %983 = vmatprep.subr.mxu0 0.0
    %984 = vmatpush1.msra.mxu0 0.0
    %985 = vmatprep.subr.mxu0 0.0
    %986 = vmatpush1.msra.mxu0 0.0
    %987 = vmatprep.subr.mxu0 0.0
    %988 = vmatpush1.msra.mxu0 0.0
    %989 = vmatprep.subr.mxu0 0.0
    %990 = vmatpush1.msra.mxu0 0.0
    %991 = vmatprep.subr.mxu0 0.0
    %992 = vmatpush1.msra.mxu0 0.0
    %993 = vmatprep.subr.mxu0 0.0
    %994 = vmatpush1.msra.mxu0 0.0
    %995 = vmatprep.subr.mxu0 0.0
    %996 = vmatpush1.msra.mxu0 0.0
    %997 = vmatprep.subr.mxu0 0.0
    %998 = vmatpush1.msra.mxu0 0.0
    %999 = vmatprep.subr.mxu0 0.0
    %1000 = vmatpush1.msra.mxu0 0.0
    %1001 = vmatprep.subr.mxu0 0.0
    %1002 = vmatpush1.msra.mxu0 0.0
    %1003 = vmatprep.subr.mxu0 0.0
    %1004 = vmatpush1.msra.mxu0 0.0
    %1005 = vmatprep.mubr.f32.mxu0 0.0
    %1006 = vmatmul.mubr.f32.gmra.mrb[0].mxu0 %v939
    %v1007 = vpop.f32.mrb[0].mxu0
    %v1008 = vadd.f32 %v935, %v1007
    %v1009 = vpop.f32.mrb[0].mxu0
    %1010 = vdwg.mxu0
    %v1011 = vadd.f32 %v1008, %v867
    %v1012 = vxor.u32 %v1011, 2147483648
    %v1013 = vmul.f32 %v1012, 1.442695
    %v1014 = vpow.pop %v1013
    %v1015 = vadd.f32 %v1014, 1.0
    %v1016 = vrcp.pop %v1015
    %v1017 = vmul.f32 1.0, %v1016
    %v1018 = vtanh.pop %v1011
    %v1019 = vmul.f32 %v1017, %v665
    %1021 = vrot.lane.b32.xlu0 %v1018, 64
    %v1022 = vpop.permute.xlu0 %1021
    %v1024 = vmul.f32 %v1017, %v1022
    %1026 = vrot.lane.b32.xlu0 %v1024, 32
    %v1027 = vpop.permute.xlu0 %1026
    %v1029 = vadd.f32 %v1019, %v1027
    %v1030 = vtanh.pop %v1029
    %1032 = vrot.lane.b32.xlu0 %v1030, 64
    %v1033 = vpop.permute.xlu0 %1032
    %v1035 = vmul.f32 %v1017, %v1033
    %v1036 = vld [vmem:[#allocation10] sm:$0xff]
    %v1037 = vld [vmem:[#allocation10 + $0x8] sm:$0xff]
    %v1038 = vld [vmem:[#allocation10 + $0x10] sm:$0xff]
    %v1039 = vld [vmem:[#allocation10 + $0x18] sm:$0xff]
    %v1040 = vld [vmem:[#allocation12] sm:$0xff]
    %v1041 = vld [vmem:[#allocation12 + $0x8] sm:$0xff]
    %v1042 = vld [vmem:[#allocation12 + $0x10] sm:$0xff]
    %v1043 = vld [vmem:[#allocation12 + $0x18] sm:$0xff]
    %v1044 = vld [vmem:[%s6] sm:$0x1]
    %v1045 = vsel %vm118, %v855, 0
    %1047 = vmatprep.subr.mxu0 0.0
    %1048 = vmatpush1.msra.mxu0 %v1040
    %1049 = vmatprep.subr.mxu0 0.0
    %1050 = vmatpush1.msra.mxu0 %v1041
    %1051 = vmatprep.subr.mxu0 0.0
    %1052 = vmatpush1.msra.mxu0 %v1042
    %1053 = vmatprep.subr.mxu0 0.0
    %1054 = vmatpush1.msra.mxu0 %v1043
    %1055 = vmatprep.subr.mxu0 0.0
    %1056 = vmatpush1.msra.mxu0 0.0
    %1057 = vmatprep.subr.mxu0 0.0
    %1058 = vmatpush1.msra.mxu0 0.0
    %1059 = vmatprep.subr.mxu0 0.0
    %1060 = vmatpush1.msra.mxu0 0.0
    %1061 = vmatprep.subr.mxu0 0.0
    %1062 = vmatpush1.msra.mxu0 0.0
    %1063 = vmatprep.subr.mxu0 0.0
    %1064 = vmatpush1.msra.mxu0 0.0
    %1065 = vmatprep.subr.mxu0 0.0
    %1066 = vmatpush1.msra.mxu0 0.0
    %1067 = vmatprep.subr.mxu0 0.0
    %1068 = vmatpush1.msra.mxu0 0.0
    %1069 = vmatprep.subr.mxu0 0.0
    %1070 = vmatpush1.msra.mxu0 0.0
    %1071 = vmatprep.subr.mxu0 0.0
    %1072 = vmatpush1.msra.mxu0 0.0
    %1073 = vmatprep.subr.mxu0 0.0
    %1074 = vmatpush1.msra.mxu0 0.0
    %1075 = vmatprep.subr.mxu0 0.0
    %1076 = vmatpush1.msra.mxu0 0.0
    %1077 = vmatprep.subr.mxu0 0.0
    %1078 = vmatpush1.msra.mxu0 0.0
    %1079 = vmatprep.subr.mxu0 0.0
    %1080 = vmatpush1.msra.mxu0 0.0
    %1081 = vmatprep.subr.mxu0 0.0
    %1082 = vmatpush1.msra.mxu0 0.0
    %1083 = vmatprep.subr.mxu0 0.0
    %1084 = vmatpush1.msra.mxu0 0.0
    %1085 = vmatprep.subr.mxu0 0.0
    %1086 = vmatpush1.msra.mxu0 0.0
    %1087 = vmatprep.subr.mxu0 0.0
    %1088 = vmatpush1.msra.mxu0 0.0
    %1089 = vmatprep.subr.mxu0 0.0
    %1090 = vmatpush1.msra.mxu0 0.0
    %1091 = vmatprep.subr.mxu0 0.0
    %1092 = vmatpush1.msra.mxu0 0.0
    %1093 = vmatprep.subr.mxu0 0.0
    %1094 = vmatpush1.msra.mxu0 0.0
    %1095 = vmatprep.subr.mxu0 0.0
    %1096 = vmatpush1.msra.mxu0 0.0
    %1097 = vmatprep.subr.mxu0 0.0
    %1098 = vmatpush1.msra.mxu0 0.0
    %1099 = vmatprep.subr.mxu0 0.0
    %1100 = vmatpush1.msra.mxu0 0.0
    %1101 = vmatprep.subr.mxu0 0.0
    %1102 = vmatpush1.msra.mxu0 0.0
    %1103 = vmatprep.subr.mxu0 0.0
    %1104 = vmatpush1.msra.mxu0 0.0
    %1105 = vmatprep.subr.mxu0 0.0
    %1106 = vmatpush1.msra.mxu0 0.0
    %1107 = vmatprep.subr.mxu0 0.0
    %1108 = vmatpush1.msra.mxu0 0.0
    %1109 = vmatprep.subr.mxu0 0.0
    %1110 = vmatpush1.msra.mxu0 0.0
    %1111 = vmatprep.mubr.f32.mxu0 0.0
    %1112 = vmatmul.mubr.f32.gmra.mrb[0].mxu0 %v1045
    %v1113 = vpop.f32.mrb[0].mxu0
    %v1114 = vadd.f32 0.0, %v1113
    %v1115 = vpop.f32.mrb[0].mxu0
    %1116 = vdwg.mxu0
    %1118 = vrot.lane.b32.xlu0 %v1035, 32
    %v1119 = vpop.permute.xlu0 %1118
    %v1120 = vsel %vm118, %v1119, 0
    %1122 = vmatprep.subr.mxu0 0.0
    %1123 = vmatpush1.msra.mxu0 %v1036
    %1124 = vmatprep.subr.mxu0 0.0
    %1125 = vmatpush1.msra.mxu0 %v1037
    %1126 = vmatprep.subr.mxu0 0.0
    %1127 = vmatpush1.msra.mxu0 %v1038
    %1128 = vmatprep.subr.mxu0 0.0
    %1129 = vmatpush1.msra.mxu0 %v1039
    %1130 = vmatprep.subr.mxu0 0.0
    %1131 = vmatpush1.msra.mxu0 0.0
    %1132 = vmatprep.subr.mxu0 0.0
    %1133 = vmatpush1.msra.mxu0 0.0
    %1134 = vmatprep.subr.mxu0 0.0
    %1135 = vmatpush1.msra.mxu0 0.0
    %1136 = vmatprep.subr.mxu0 0.0
    %1137 = vmatpush1.msra.mxu0 0.0
    %1138 = vmatprep.subr.mxu0 0.0
    %1139 = vmatpush1.msra.mxu0 0.0
    %1140 = vmatprep.subr.mxu0 0.0
    %1141 = vmatpush1.msra.mxu0 0.0
    %1142 = vmatprep.subr.mxu0 0.0
    %1143 = vmatpush1.msra.mxu0 0.0
    %1144 = vmatprep.subr.mxu0 0.0
    %1145 = vmatpush1.msra.mxu0 0.0
    %1146 = vmatprep.subr.mxu0 0.0
    %1147 = vmatpush1.msra.mxu0 0.0
    %1148 = vmatprep.subr.mxu0 0.0
    %1149 = vmatpush1.msra.mxu0 0.0
    %1150 = vmatprep.subr.mxu0 0.0
    %1151 = vmatpush1.msra.mxu0 0.0
    %1152 = vmatprep.subr.mxu0 0.0
    %1153 = vmatpush1.msra.mxu0 0.0
    %1154 = vmatprep.subr.mxu0 0.0
    %1155 = vmatpush1.msra.mxu0 0.0
    %1156 = vmatprep.subr.mxu0 0.0
    %1157 = vmatpush1.msra.mxu0 0.0
    %1158 = vmatprep.subr.mxu0 0.0
    %1159 = vmatpush1.msra.mxu0 0.0
    %1160 = vmatprep.subr.mxu0 0.0
    %1161 = vmatpush1.msra.mxu0 0.0
    %1162 = vmatprep.subr.mxu0 0.0
    %1163 = vmatpush1.msra.mxu0 0.0
    %1164 = vmatprep.subr.mxu0 0.0
    %1165 = vmatpush1.msra.mxu0 0.0
    %1166 = vmatprep.subr.mxu0 0.0
    %1167 = vmatpush1.msra.mxu0 0.0
    %1168 = vmatprep.subr.mxu0 0.0
    %1169 = vmatpush1.msra.mxu0 0.0
    %1170 = vmatprep.subr.mxu0 0.0
    %1171 = vmatpush1.msra.mxu0 0.0
    %1172 = vmatprep.subr.mxu0 0.0
    %1173 = vmatpush1.msra.mxu0 0.0
    %1174 = vmatprep.subr.mxu0 0.0
    %1175 = vmatpush1.msra.mxu0 0.0
    %1176 = vmatprep.subr.mxu0 0.0
    %1177 = vmatpush1.msra.mxu0 0.0
    %1178 = vmatprep.subr.mxu0 0.0
    %1179 = vmatpush1.msra.mxu0 0.0
    %1180 = vmatprep.subr.mxu0 0.0
    %1181 = vmatpush1.msra.mxu0 0.0
    %1182 = vmatprep.subr.mxu0 0.0
    %1183 = vmatpush1.msra.mxu0 0.0
    %1184 = vmatprep.subr.mxu0 0.0
    %1185 = vmatpush1.msra.mxu0 0.0
    %1186 = vmatprep.mubr.f32.mxu0 0.0
    %1187 = vmatmul.mubr.f32.gmra.mrb[0].mxu0 %v1120
    %v1188 = vpop.f32.mrb[0].mxu0
    %v1189 = vadd.f32 %v1114, %v1188
    %v1190 = vpop.f32.mrb[0].mxu0
    %1191 = vdwg.mxu0
    %v1192 = vadd.f32 %v1189, %v1044
    %v1193 = vxor.u32 %v1192, 2147483648
    %v1194 = vmul.f32 %v1193, 1.442695
    %v1195 = vpow.pop %v1194
    %v1196 = vadd.f32 %v1195, 1.0
    %v1197 = vrcp.pop %v1196
    %v1198 = vmul.f32 1.0, %v1197
    %v1199 = vtanh.pop %v1192
    %v1200 = vmul.f32 %v1198, %v846
    %1202 = vrot.lane.b32.xlu0 %v1199, 64
    %v1203 = vpop.permute.xlu0 %1202
    %v1205 = vmul.f32 %v1198, %v1203
    %1207 = vrot.lane.b32.xlu0 %v1205, 32
    %v1208 = vpop.permute.xlu0 %1207
    %v1210 = vadd.f32 %v1200, %v1208
    %v1211 = vtanh.pop %v1210
    %1213 = vrot.lane.b32.xlu0 %v1211, 64
    %v1214 = vpop.permute.xlu0 %1213
    %v1216 = vmul.f32 %v1198, %v1214
    %1218 = vrot.lane.b32.xlu0 %v1216, 32
    %v1219 = vpop.permute.xlu0 %1218
    %s1221 = scalar_lea.vmem [#allocation13], 2
    %1222 = vst.msk [vmem:[%s1221] sm:$0x1] %vm493, %v1219
    %s1223 = scalar_lea.vmem [#allocation4], 3
    %v1224 = vld [vmem:[%s1223] sm:$0x1]
    %v1225 = vld [vmem:[#allocation7] sm:$0xff]
    %v1226 = vld [vmem:[#allocation7 + $0x8] sm:$0xff]
    %v1227 = vld [vmem:[#allocation9] sm:$0xff]
    %v1228 = vld [vmem:[#allocation9 + $0x8] sm:$0xff]
    %v1229 = vld [vmem:[#allocation9 + $0x10] sm:$0xff]
    %v1230 = vld [vmem:[#allocation9 + $0x18] sm:$0xff]
    %v1231 = vld [vmem:[%s3] sm:$0x1]
    %1232 = vmatprep.subr.mxu0 0.0
    %1233 = vmatpush1.msra.mxu0 %v1227
    %1234 = vmatprep.subr.mxu0 0.0
    %1235 = vmatpush1.msra.mxu0 %v1228
    %1236 = vmatprep.subr.mxu0 0.0
    %1237 = vmatpush1.msra.mxu0 %v1229
    %1238 = vmatprep.subr.mxu0 0.0
    %1239 = vmatpush1.msra.mxu0 %v1230
    %1240 = vmatprep.subr.mxu0 0.0
    %1241 = vmatpush1.msra.mxu0 0.0
    %1242 = vmatprep.subr.mxu0 0.0
    %1243 = vmatpush1.msra.mxu0 0.0
    %1244 = vmatprep.subr.mxu0 0.0
    %1245 = vmatpush1.msra.mxu0 0.0
    %1246 = vmatprep.subr.mxu0 0.0
    %1247 = vmatpush1.msra.mxu0 0.0
    %1248 = vmatprep.subr.mxu0 0.0
    %1249 = vmatpush1.msra.mxu0 0.0
    %1250 = vmatprep.subr.mxu0 0.0
    %1251 = vmatpush1.msra.mxu0 0.0
    %1252 = vmatprep.subr.mxu0 0.0
    %1253 = vmatpush1.msra.mxu0 0.0
    %1254 = vmatprep.subr.mxu0 0.0
    %1255 = vmatpush1.msra.mxu0 0.0
    %1256 = vmatprep.subr.mxu0 0.0
    %1257 = vmatpush1.msra.mxu0 0.0
    %1258 = vmatprep.subr.mxu0 0.0
    %1259 = vmatpush1.msra.mxu0 0.0
    %1260 = vmatprep.subr.mxu0 0.0
    %1261 = vmatpush1.msra.mxu0 0.0
    %1262 = vmatprep.subr.mxu0 0.0
    %1263 = vmatpush1.msra.mxu0 0.0
    %1264 = vmatprep.subr.mxu0 0.0
    %1265 = vmatpush1.msra.mxu0 0.0
    %1266 = vmatprep.subr.mxu0 0.0
    %1267 = vmatpush1.msra.mxu0 0.0
    %1268 = vmatprep.subr.mxu0 0.0
    %1269 = vmatpush1.msra.mxu0 0.0
    %1270 = vmatprep.subr.mxu0 0.0
    %1271 = vmatpush1.msra.mxu0 0.0
    %1272 = vmatprep.subr.mxu0 0.0
    %1273 = vmatpush1.msra.mxu0 0.0
    %1274 = vmatprep.subr.mxu0 0.0
    %1275 = vmatpush1.msra.mxu0 0.0
    %1276 = vmatprep.subr.mxu0 0.0
    %1277 = vmatpush1.msra.mxu0 0.0
    %1278 = vmatprep.subr.mxu0 0.0
    %1279 = vmatpush1.msra.mxu0 0.0
    %1280 = vmatprep.subr.mxu0 0.0
    %1281 = vmatpush1.msra.mxu0 0.0
    %1282 = vmatprep.subr.mxu0 0.0
    %1283 = vmatpush1.msra.mxu0 0.0
    %1284 = vmatprep.subr.mxu0 0.0
    %1285 = vmatpush1.msra.mxu0 0.0
    %1286 = vmatprep.subr.mxu0 0.0
    %1287 = vmatpush1.msra.mxu0 0.0
    %1288 = vmatprep.subr.mxu0 0.0
    %1289 = vmatpush1.msra.mxu0 0.0
    %1290 = vmatprep.subr.mxu0 0.0
    %1291 = vmatpush1.msra.mxu0 0.0
    %1292 = vmatprep.subr.mxu0 0.0
    %1293 = vmatpush1.msra.mxu0 0.0
    %1294 = vmatprep.subr.mxu0 0.0
    %1295 = vmatpush1.msra.mxu0 0.0
    %1296 = vmatprep.mubr.f32.mxu0 0.0
    %1297 = vmatmul.mubr.f32.gmra.mrb[0].mxu0 %v1120
    %v1298 = vpop.f32.mrb[0].mxu0
    %v1299 = vadd.f32 0.0, %v1298
    %v1300 = vpop.f32.mrb[0].mxu0
    %1301 = vdwg.mxu0
    %v1303 = vsel %vm192, %v1224, 0
    %1305 = vmatprep.subr.mxu0 0.0
    %1306 = vmatpush1.msra.mxu0 %v1225
    %1307 = vmatprep.subr.mxu0 0.0
    %1308 = vmatpush1.msra.mxu0 %v1226
    %1309 = vmatprep.subr.mxu0 0.0
    %1310 = vmatpush1.msra.mxu0 0.0
    %1311 = vmatprep.subr.mxu0 0.0
    %1312 = vmatpush1.msra.mxu0 0.0
    %1313 = vmatprep.subr.mxu0 0.0
    %1314 = vmatpush1.msra.mxu0 0.0
    %1315 = vmatprep.subr.mxu0 0.0
    %1316 = vmatpush1.msra.mxu0 0.0
    %1317 = vmatprep.subr.mxu0 0.0
    %1318 = vmatpush1.msra.mxu0 0.0
    %1319 = vmatprep.subr.mxu0 0.0
    %1320 = vmatpush1.msra.mxu0 0.0
    %1321 = vmatprep.subr.mxu0 0.0
    %1322 = vmatpush1.msra.mxu0 0.0
    %1323 = vmatprep.subr.mxu0 0.0
    %1324 = vmatpush1.msra.mxu0 0.0
    %1325 = vmatprep.subr.mxu0 0.0
    %1326 = vmatpush1.msra.mxu0 0.0
    %1327 = vmatprep.subr.mxu0 0.0
    %1328 = vmatpush1.msra.mxu0 0.0
    %1329 = vmatprep.subr.mxu0 0.0
    %1330 = vmatpush1.msra.mxu0 0.0
    %1331 = vmatprep.subr.mxu0 0.0
    %1332 = vmatpush1.msra.mxu0 0.0
    %1333 = vmatprep.subr.mxu0 0.0
    %1334 = vmatpush1.msra.mxu0 0.0
    %1335 = vmatprep.subr.mxu0 0.0
    %1336 = vmatpush1.msra.mxu0 0.0
    %1337 = vmatprep.subr.mxu0 0.0
    %1338 = vmatpush1.msra.mxu0 0.0
    %1339 = vmatprep.subr.mxu0 0.0
    %1340 = vmatpush1.msra.mxu0 0.0
    %1341 = vmatprep.subr.mxu0 0.0
    %1342 = vmatpush1.msra.mxu0 0.0
    %1343 = vmatprep.subr.mxu0 0.0
    %1344 = vmatpush1.msra.mxu0 0.0
    %1345 = vmatprep.subr.mxu0 0.0
    %1346 = vmatpush1.msra.mxu0 0.0
    %1347 = vmatprep.subr.mxu0 0.0
    %1348 = vmatpush1.msra.mxu0 0.0
    %1349 = vmatprep.subr.mxu0 0.0
    %1350 = vmatpush1.msra.mxu0 0.0
    %1351 = vmatprep.subr.mxu0 0.0
    %1352 = vmatpush1.msra.mxu0 0.0
    %1353 = vmatprep.subr.mxu0 0.0
    %1354 = vmatpush1.msra.mxu0 0.0
    %1355 = vmatprep.subr.mxu0 0.0
    %1356 = vmatpush1.msra.mxu0 0.0
    %1357 = vmatprep.subr.mxu0 0.0
    %1358 = vmatpush1.msra.mxu0 0.0
    %1359 = vmatprep.subr.mxu0 0.0
    %1360 = vmatpush1.msra.mxu0 0.0
    %1361 = vmatprep.subr.mxu0 0.0
    %1362 = vmatpush1.msra.mxu0 0.0
    %1363 = vmatprep.subr.mxu0 0.0
    %1364 = vmatpush1.msra.mxu0 0.0
    %1365 = vmatprep.subr.mxu0 0.0
    %1366 = vmatpush1.msra.mxu0 0.0
    %1367 = vmatprep.subr.mxu0 0.0
    %1368 = vmatpush1.msra.mxu0 0.0
    %1369 = vmatprep.mubr.f32.mxu0 0.0
    %1370 = vmatmul.mubr.f32.gmra.mrb[0].mxu0 %v1303
    %v1371 = vpop.f32.mrb[0].mxu0
    %v1372 = vadd.f32 %v1299, %v1371
    %v1373 = vpop.f32.mrb[0].mxu0
    %1374 = vdwg.mxu0
    %v1375 = vadd.f32 %v1372, %v1231
    %v1376 = vxor.u32 %v1375, 2147483648
    %v1377 = vmul.f32 %v1376, 1.442695
    %v1378 = vpow.pop %v1377
    %v1379 = vadd.f32 %v1378, 1.0
    %v1380 = vrcp.pop %v1379
    %v1381 = vmul.f32 1.0, %v1380
    %v1382 = vtanh.pop %v1375
    %v1383 = vmul.f32 %v1381, %v1029
    %1385 = vrot.lane.b32.xlu0 %v1382, 64
    %v1386 = vpop.permute.xlu0 %1385
    %v1388 = vmul.f32 %v1381, %v1386
    %1390 = vrot.lane.b32.xlu0 %v1388, 32
    %v1391 = vpop.permute.xlu0 %1390
    %v1393 = vadd.f32 %v1383, %v1391
    %v1394 = vtanh.pop %v1393
    %1396 = vrot.lane.b32.xlu0 %v1394, 64
    %v1397 = vpop.permute.xlu0 %1396
    %v1399 = vmul.f32 %v1381, %v1397
    %v1400 = vld [vmem:[#allocation10] sm:$0xff]
    %v1401 = vld [vmem:[#allocation10 + $0x8] sm:$0xff]
    %v1402 = vld [vmem:[#allocation10 + $0x10] sm:$0xff]
    %v1403 = vld [vmem:[#allocation10 + $0x18] sm:$0xff]
    %v1404 = vld [vmem:[#allocation12] sm:$0xff]
    %v1405 = vld [vmem:[#allocation12 + $0x8] sm:$0xff]
    %v1406 = vld [vmem:[#allocation12 + $0x10] sm:$0xff]
    %v1407 = vld [vmem:[#allocation12 + $0x18] sm:$0xff]
    %v1408 = vld [vmem:[%s6] sm:$0x1]
    %v1409 = vsel %vm118, %v1219, 0
    %1411 = vmatprep.subr.mxu0 0.0
    %1412 = vmatpush1.msra.mxu0 %v1404
    %1413 = vmatprep.subr.mxu0 0.0
    %1414 = vmatpush1.msra.mxu0 %v1405
    %1415 = vmatprep.subr.mxu0 0.0
    %1416 = vmatpush1.msra.mxu0 %v1406
    %1417 = vmatprep.subr.mxu0 0.0
    %1418 = vmatpush1.msra.mxu0 %v1407
    %1419 = vmatprep.subr.mxu0 0.0
    %1420 = vmatpush1.msra.mxu0 0.0
    %1421 = vmatprep.subr.mxu0 0.0
    %1422 = vmatpush1.msra.mxu0 0.0
    %1423 = vmatprep.subr.mxu0 0.0
    %1424 = vmatpush1.msra.mxu0 0.0
    %1425 = vmatprep.subr.mxu0 0.0
    %1426 = vmatpush1.msra.mxu0 0.0
    %1427 = vmatprep.subr.mxu0 0.0
    %1428 = vmatpush1.msra.mxu0 0.0
    %1429 = vmatprep.subr.mxu0 0.0
    %1430 = vmatpush1.msra.mxu0 0.0
    %1431 = vmatprep.subr.mxu0 0.0
    %1432 = vmatpush1.msra.mxu0 0.0
    %1433 = vmatprep.subr.mxu0 0.0
    %1434 = vmatpush1.msra.mxu0 0.0
    %1435 = vmatprep.subr.mxu0 0.0
    %1436 = vmatpush1.msra.mxu0 0.0
    %1437 = vmatprep.subr.mxu0 0.0
    %1438 = vmatpush1.msra.mxu0 0.0
    %1439 = vmatprep.subr.mxu0 0.0
    %1440 = vmatpush1.msra.mxu0 0.0
    %1441 = vmatprep.subr.mxu0 0.0
    %1442 = vmatpush1.msra.mxu0 0.0
    %1443 = vmatprep.subr.mxu0 0.0
    %1444 = vmatpush1.msra.mxu0 0.0
    %1445 = vmatprep.subr.mxu0 0.0
    %1446 = vmatpush1.msra.mxu0 0.0
    %1447 = vmatprep.subr.mxu0 0.0
    %1448 = vmatpush1.msra.mxu0 0.0
    %1449 = vmatprep.subr.mxu0 0.0
    %1450 = vmatpush1.msra.mxu0 0.0
    %1451 = vmatprep.subr.mxu0 0.0
    %1452 = vmatpush1.msra.mxu0 0.0
    %1453 = vmatprep.subr.mxu0 0.0
    %1454 = vmatpush1.msra.mxu0 0.0
    %1455 = vmatprep.subr.mxu0 0.0
    %1456 = vmatpush1.msra.mxu0 0.0
    %1457 = vmatprep.subr.mxu0 0.0
    %1458 = vmatpush1.msra.mxu0 0.0
    %1459 = vmatprep.subr.mxu0 0.0
    %1460 = vmatpush1.msra.mxu0 0.0
    %1461 = vmatprep.subr.mxu0 0.0
    %1462 = vmatpush1.msra.mxu0 0.0
    %1463 = vmatprep.subr.mxu0 0.0
    %1464 = vmatpush1.msra.mxu0 0.0
    %1465 = vmatprep.subr.mxu0 0.0
    %1466 = vmatpush1.msra.mxu0 0.0
    %1467 = vmatprep.subr.mxu0 0.0
    %1468 = vmatpush1.msra.mxu0 0.0
    %1469 = vmatprep.subr.mxu0 0.0
    %1470 = vmatpush1.msra.mxu0 0.0
    %1471 = vmatprep.subr.mxu0 0.0
    %1472 = vmatpush1.msra.mxu0 0.0
    %1473 = vmatprep.subr.mxu0 0.0
    %1474 = vmatpush1.msra.mxu0 0.0
    %1475 = vmatprep.mubr.f32.mxu0 0.0
    %1476 = vmatmul.mubr.f32.gmra.mrb[0].mxu0 %v1409
    %v1477 = vpop.f32.mrb[0].mxu0
    %v1478 = vadd.f32 0.0, %v1477
    %v1479 = vpop.f32.mrb[0].mxu0
    %1480 = vdwg.mxu0
    %1482 = vrot.lane.b32.xlu0 %v1399, 32
    %v1483 = vpop.permute.xlu0 %1482
    %v1484 = vsel %vm118, %v1483, 0
    %1486 = vmatprep.subr.mxu0 0.0
    %1487 = vmatpush1.msra.mxu0 %v1400
    %1488 = vmatprep.subr.mxu0 0.0
    %1489 = vmatpush1.msra.mxu0 %v1401
    %1490 = vmatprep.subr.mxu0 0.0
    %1491 = vmatpush1.msra.mxu0 %v1402
    %1492 = vmatprep.subr.mxu0 0.0
    %1493 = vmatpush1.msra.mxu0 %v1403
    %1494 = vmatprep.subr.mxu0 0.0
    %1495 = vmatpush1.msra.mxu0 0.0
    %1496 = vmatprep.subr.mxu0 0.0
    %1497 = vmatpush1.msra.mxu0 0.0
    %1498 = vmatprep.subr.mxu0 0.0
    %1499 = vmatpush1.msra.mxu0 0.0
    %1500 = vmatprep.subr.mxu0 0.0
    %1501 = vmatpush1.msra.mxu0 0.0
    %1502 = vmatprep.subr.mxu0 0.0
    %1503 = vmatpush1.msra.mxu0 0.0
    %1504 = vmatprep.subr.mxu0 0.0
    %1505 = vmatpush1.msra.mxu0 0.0
    %1506 = vmatprep.subr.mxu0 0.0
    %1507 = vmatpush1.msra.mxu0 0.0
    %1508 = vmatprep.subr.mxu0 0.0
    %1509 = vmatpush1.msra.mxu0 0.0
    %1510 = vmatprep.subr.mxu0 0.0
    %1511 = vmatpush1.msra.mxu0 0.0
    %1512 = vmatprep.subr.mxu0 0.0
    %1513 = vmatpush1.msra.mxu0 0.0
    %1514 = vmatprep.subr.mxu0 0.0
    %1515 = vmatpush1.msra.mxu0 0.0
    %1516 = vmatprep.subr.mxu0 0.0
    %1517 = vmatpush1.msra.mxu0 0.0
    %1518 = vmatprep.subr.mxu0 0.0
    %1519 = vmatpush1.msra.mxu0 0.0
    %1520 = vmatprep.subr.mxu0 0.0
    %1521 = vmatpush1.msra.mxu0 0.0
    %1522 = vmatprep.subr.mxu0 0.0
    %1523 = vmatpush1.msra.mxu0 0.0
    %1524 = vmatprep.subr.mxu0 0.0
    %1525 = vmatpush1.msra.mxu0 0.0
    %1526 = vmatprep.subr.mxu0 0.0
    %1527 = vmatpush1.msra.mxu0 0.0
    %1528 = vmatprep.subr.mxu0 0.0
    %1529 = vmatpush1.msra.mxu0 0.0
    %1530 = vmatprep.subr.mxu0 0.0
    %1531 = vmatpush1.msra.mxu0 0.0
    %1532 = vmatprep.subr.mxu0 0.0
    %1533 = vmatpush1.msra.mxu0 0.0
    %1534 = vmatprep.subr.mxu0 0.0
    %1535 = vmatpush1.msra.mxu0 0.0
    %1536 = vmatprep.subr.mxu0 0.0
    %1537 = vmatpush1.msra.mxu0 0.0
    %1538 = vmatprep.subr.mxu0 0.0
    %1539 = vmatpush1.msra.mxu0 0.0
    %1540 = vmatprep.subr.mxu0 0.0
    %1541 = vmatpush1.msra.mxu0 0.0
    %1542 = vmatprep.subr.mxu0 0.0
    %1543 = vmatpush1.msra.mxu0 0.0
    %1544 = vmatprep.subr.mxu0 0.0
    %1545 = vmatpush1.msra.mxu0 0.0
    %1546 = vmatprep.subr.mxu0 0.0
    %1547 = vmatpush1.msra.mxu0 0.0
    %1548 = vmatprep.subr.mxu0 0.0
    %1549 = vmatpush1.msra.mxu0 0.0
    %1550 = vmatprep.mubr.f32.mxu0 0.0
    %1551 = vmatmul.mubr.f32.gmra.mrb[0].mxu0 %v1484
    %v1552 = vpop.f32.mrb[0].mxu0
    %v1553 = vadd.f32 %v1478, %v1552
    %v1554 = vpop.f32.mrb[0].mxu0
    %1555 = vdwg.mxu0
    %v1556 = vadd.f32 %v1553, %v1408
    %v1557 = vxor.u32 %v1556, 2147483648
    %v1558 = vmul.f32 %v1557, 1.442695
    %v1559 = vpow.pop %v1558
    %v1560 = vadd.f32 %v1559, 1.0
    %v1561 = vrcp.pop %v1560
    %v1562 = vmul.f32 1.0, %v1561
    %v1563 = vtanh.pop %v1556
    %v1564 = vmul.f32 %v1562, %v1210
    %1566 = vrot.lane.b32.xlu0 %v1563, 64
    %v1567 = vpop.permute.xlu0 %1566
    %v1569 = vmul.f32 %v1562, %v1567
    %1571 = vrot.lane.b32.xlu0 %v1569, 32
    %v1572 = vpop.permute.xlu0 %1571
    %v1574 = vadd.f32 %v1564, %v1572
    %v1575 = vtanh.pop %v1574
    %1577 = vrot.lane.b32.xlu0 %v1575, 64
    %v1578 = vpop.permute.xlu0 %1577
    %v1580 = vmul.f32 %v1562, %v1578
    %1582 = vrot.lane.b32.xlu0 %v1580, 32
    %v1583 = vpop.permute.xlu0 %1582
    %s1585 = scalar_lea.vmem [#allocation13], 3
    %1586 = vst.msk [vmem:[%s1585] sm:$0x1] %vm493, %v1583
    %s1587 = scalar_lea.vmem [#allocation4], 4
    %v1588 = vld [vmem:[%s1587] sm:$0x1]
    %v1589 = vld [vmem:[#allocation7] sm:$0xff]
    %v1590 = vld [vmem:[#allocation7 + $0x8] sm:$0xff]
    %v1591 = vld [vmem:[#allocation9] sm:$0xff]
    %v1592 = vld [vmem:[#allocation9 + $0x8] sm:$0xff]
    %v1593 = vld [vmem:[#allocation9 + $0x10] sm:$0xff]
    %v1594 = vld [vmem:[#allocation9 + $0x18] sm:$0xff]
    %v1595 = vld [vmem:[%s3] sm:$0x1]
    %1596 = vmatprep.subr.mxu0 0.0
    %1597 = vmatpush1.msra.mxu0 %v1591
    %1598 = vmatprep.subr.mxu0 0.0
    %1599 = vmatpush1.msra.mxu0 %v1592
    %1600 = vmatprep.subr.mxu0 0.0
    %1601 = vmatpush1.msra.mxu0 %v1593
    %1602 = vmatprep.subr.mxu0 0.0
    %1603 = vmatpush1.msra.mxu0 %v1594
    %1604 = vmatprep.subr.mxu0 0.0
    %1605 = vmatpush1.msra.mxu0 0.0
    %1606 = vmatprep.subr.mxu0 0.0
    %1607 = vmatpush1.msra.mxu0 0.0
    %1608 = vmatprep.subr.mxu0 0.0
    %1609 = vmatpush1.msra.mxu0 0.0
    %1610 = vmatprep.subr.mxu0 0.0
    %1611 = vmatpush1.msra.mxu0 0.0
    %1612 = vmatprep.subr.mxu0 0.0
    %1613 = vmatpush1.msra.mxu0 0.0
    %1614 = vmatprep.subr.mxu0 0.0
    %1615 = vmatpush1.msra.mxu0 0.0
    %1616 = vmatprep.subr.mxu0 0.0
    %1617 = vmatpush1.msra.mxu0 0.0
    %1618 = vmatprep.subr.mxu0 0.0
    %1619 = vmatpush1.msra.mxu0 0.0
    %1620 = vmatprep.subr.mxu0 0.0
    %1621 = vmatpush1.msra.mxu0 0.0
    %1622 = vmatprep.subr.mxu0 0.0
    %1623 = vmatpush1.msra.mxu0 0.0
    %1624 = vmatprep.subr.mxu0 0.0
    %1625 = vmatpush1.msra.mxu0 0.0
    %1626 = vmatprep.subr.mxu0 0.0
    %1627 = vmatpush1.msra.mxu0 0.0
    %1628 = vmatprep.subr.mxu0 0.0
    %1629 = vmatpush1.msra.mxu0 0.0
    %1630 = vmatprep.subr.mxu0 0.0
    %1631 = vmatpush1.msra.mxu0 0.0
    %1632 = vmatprep.subr.mxu0 0.0
    %1633 = vmatpush1.msra.mxu0 0.0
    %1634 = vmatprep.subr.mxu0 0.0
    %1635 = vmatpush1.msra.mxu0 0.0
    %1636 = vmatprep.subr.mxu0 0.0
    %1637 = vmatpush1.msra.mxu0 0.0
    %1638 = vmatprep.subr.mxu0 0.0
    %1639 = vmatpush1.msra.mxu0 0.0
    %1640 = vmatprep.subr.mxu0 0.0
    %1641 = vmatpush1.msra.mxu0 0.0
    %1642 = vmatprep.subr.mxu0 0.0
    %1643 = vmatpush1.msra.mxu0 0.0
    %1644 = vmatprep.subr.mxu0 0.0
    %1645 = vmatpush1.msra.mxu0 0.0
    %1646 = vmatprep.subr.mxu0 0.0
    %1647 = vmatpush1.msra.mxu0 0.0
    %1648 = vmatprep.subr.mxu0 0.0
    %1649 = vmatpush1.msra.mxu0 0.0
    %1650 = vmatprep.subr.mxu0 0.0
    %1651 = vmatpush1.msra.mxu0 0.0
    %1652 = vmatprep.subr.mxu0 0.0
    %1653 = vmatpush1.msra.mxu0 0.0
    %1654 = vmatprep.subr.mxu0 0.0
    %1655 = vmatpush1.msra.mxu0 0.0
    %1656 = vmatprep.subr.mxu0 0.0
    %1657 = vmatpush1.msra.mxu0 0.0
    %1658 = vmatprep.subr.mxu0 0.0
    %1659 = vmatpush1.msra.mxu0 0.0
    %1660 = vmatprep.mubr.f32.mxu0 0.0
    %1661 = vmatmul.mubr.f32.gmra.mrb[0].mxu0 %v1484
    %v1662 = vpop.f32.mrb[0].mxu0
    %v1663 = vadd.f32 0.0, %v1662
    %v1664 = vpop.f32.mrb[0].mxu0
    %1665 = vdwg.mxu0
    %v1667 = vsel %vm192, %v1588, 0
    %1669 = vmatprep.subr.mxu0 0.0
    %1670 = vmatpush1.msra.mxu0 %v1589
    %1671 = vmatprep.subr.mxu0 0.0
    %1672 = vmatpush1.msra.mxu0 %v1590
    %1673 = vmatprep.subr.mxu0 0.0
    %1674 = vmatpush1.msra.mxu0 0.0
    %1675 = vmatprep.subr.mxu0 0.0
    %1676 = vmatpush1.msra.mxu0 0.0
    %1677 = vmatprep.subr.mxu0 0.0
    %1678 = vmatpush1.msra.mxu0 0.0
    %1679 = vmatprep.subr.mxu0 0.0
    %1680 = vmatpush1.msra.mxu0 0.0
    %1681 = vmatprep.subr.mxu0 0.0
    %1682 = vmatpush1.msra.mxu0 0.0
    %1683 = vmatprep.subr.mxu0 0.0
    %1684 = vmatpush1.msra.mxu0 0.0
    %1685 = vmatprep.subr.mxu0 0.0
    %1686 = vmatpush1.msra.mxu0 0.0
    %1687 = vmatprep.subr.mxu0 0.0
    %1688 = vmatpush1.msra.mxu0 0.0
    %1689 = vmatprep.subr.mxu0 0.0
    %1690 = vmatpush1.msra.mxu0 0.0
    %1691 = vmatprep.subr.mxu0 0.0
    %1692 = vmatpush1.msra.mxu0 0.0
    %1693 = vmatprep.subr.mxu0 0.0
    %1694 = vmatpush1.msra.mxu0 0.0
    %1695 = vmatprep.subr.mxu0 0.0
    %1696 = vmatpush1.msra.mxu0 0.0
    %1697 = vmatprep.subr.mxu0 0.0
    %1698 = vmatpush1.msra.mxu0 0.0
    %1699 = vmatprep.subr.mxu0 0.0
    %1700 = vmatpush1.msra.mxu0 0.0
    %1701 = vmatprep.subr.mxu0 0.0
    %1702 = vmatpush1.msra.mxu0 0.0
    %1703 = vmatprep.subr.mxu0 0.0
    %1704 = vmatpush1.msra.mxu0 0.0
    %1705 = vmatprep.subr.mxu0 0.0
    %1706 = vmatpush1.msra.mxu0 0.0
    %1707 = vmatprep.subr.mxu0 0.0
    %1708 = vmatpush1.msra.mxu0 0.0
    %1709 = vmatprep.subr.mxu0 0.0
    %1710 = vmatpush1.msra.mxu0 0.0
    %1711 = vmatprep.subr.mxu0 0.0
    %1712 = vmatpush1.msra.mxu0 0.0
    %1713 = vmatprep.subr.mxu0 0.0
    %1714 = vmatpush1.msra.mxu0 0.0
    %1715 = vmatprep.subr.mxu0 0.0
    %1716 = vmatpush1.msra.mxu0 0.0
    %1717 = vmatprep.subr.mxu0 0.0
    %1718 = vmatpush1.msra.mxu0 0.0
    %1719 = vmatprep.subr.mxu0 0.0
    %1720 = vmatpush1.msra.mxu0 0.0
    %1721 = vmatprep.subr.mxu0 0.0
    %1722 = vmatpush1.msra.mxu0 0.0
    %1723 = vmatprep.subr.mxu0 0.0
    %1724 = vmatpush1.msra.mxu0 0.0
    %1725 = vmatprep.subr.mxu0 0.0
    %1726 = vmatpush1.msra.mxu0 0.0
    %1727 = vmatprep.subr.mxu0 0.0
    %1728 = vmatpush1.msra.mxu0 0.0
    %1729 = vmatprep.subr.mxu0 0.0
    %1730 = vmatpush1.msra.mxu0 0.0
    %1731 = vmatprep.subr.mxu0 0.0
    %1732 = vmatpush1.msra.mxu0 0.0
    %1733 = vmatprep.mubr.f32.mxu0 0.0
    %1734 = vmatmul.mubr.f32.gmra.mrb[0].mxu0 %v1667
    %v1735 = vpop.f32.mrb[0].mxu0
    %v1736 = vadd.f32 %v1663, %v1735
    %v1737 = vpop.f32.mrb[0].mxu0
    %1738 = vdwg.mxu0
    %v1739 = vadd.f32 %v1736, %v1595
    %v1740 = vxor.u32 %v1739, 2147483648
    %v1741 = vmul.f32 %v1740, 1.442695
    %v1742 = vpow.pop %v1741
    %v1743 = vadd.f32 %v1742, 1.0
    %v1744 = vrcp.pop %v1743
    %v1745 = vmul.f32 1.0, %v1744
    %v1746 = vtanh.pop %v1739
    %v1747 = vmul.f32 %v1745, %v1393
    %1749 = vrot.lane.b32.xlu0 %v1746, 64
    %v1750 = vpop.permute.xlu0 %1749
    %v1752 = vmul.f32 %v1745, %v1750
    %1754 = vrot.lane.b32.xlu0 %v1752, 32
    %v1755 = vpop.permute.xlu0 %1754
    %v1757 = vadd.f32 %v1747, %v1755
    %v1758 = vtanh.pop %v1757
    %1760 = vrot.lane.b32.xlu0 %v1758, 64
    %v1761 = vpop.permute.xlu0 %1760
    %v1763 = vmul.f32 %v1745, %v1761
    %v1764 = vld [vmem:[#allocation10] sm:$0xff]
    %v1765 = vld [vmem:[#allocation10 + $0x8] sm:$0xff]
    %v1766 = vld [vmem:[#allocation10 + $0x10] sm:$0xff]
    %v1767 = vld [vmem:[#allocation10 + $0x18] sm:$0xff]
    %v1768 = vld [vmem:[#allocation12] sm:$0xff]
    %v1769 = vld [vmem:[#allocation12 + $0x8] sm:$0xff]
    %v1770 = vld [vmem:[#allocation12 + $0x10] sm:$0xff]
    %v1771 = vld [vmem:[#allocation12 + $0x18] sm:$0xff]
    %v1772 = vld [vmem:[%s6] sm:$0x1]
    %v1773 = vsel %vm118, %v1583, 0
    %1775 = vmatprep.subr.mxu0 0.0
    %1776 = vmatpush1.msra.mxu0 %v1768
    %1777 = vmatprep.subr.mxu0 0.0
    %1778 = vmatpush1.msra.mxu0 %v1769
    %1779 = vmatprep.subr.mxu0 0.0
    %1780 = vmatpush1.msra.mxu0 %v1770
    %1781 = vmatprep.subr.mxu0 0.0
    %1782 = vmatpush1.msra.mxu0 %v1771
    %1783 = vmatprep.subr.mxu0 0.0
    %1784 = vmatpush1.msra.mxu0 0.0
    %1785 = vmatprep.subr.mxu0 0.0
    %1786 = vmatpush1.msra.mxu0 0.0
    %1787 = vmatprep.subr.mxu0 0.0
    %1788 = vmatpush1.msra.mxu0 0.0
    %1789 = vmatprep.subr.mxu0 0.0
    %1790 = vmatpush1.msra.mxu0 0.0
    %1791 = vmatprep.subr.mxu0 0.0
    %1792 = vmatpush1.msra.mxu0 0.0
    %1793 = vmatprep.subr.mxu0 0.0
    %1794 = vmatpush1.msra.mxu0 0.0
    %1795 = vmatprep.subr.mxu0 0.0
    %1796 = vmatpush1.msra.mxu0 0.0
    %1797 = vmatprep.subr.mxu0 0.0
    %1798 = vmatpush1.msra.mxu0 0.0
    %1799 = vmatprep.subr.mxu0 0.0
    %1800 = vmatpush1.msra.mxu0 0.0
    %1801 = vmatprep.subr.mxu0 0.0
    %1802 = vmatpush1.msra.mxu0 0.0
    %1803 = vmatprep.subr.mxu0 0.0
    %1804 = vmatpush1.msra.mxu0 0.0
    %1805 = vmatprep.subr.mxu0 0.0
    %1806 = vmatpush1.msra.mxu0 0.0
    %1807 = vmatprep.subr.mxu0 0.0
    %1808 = vmatpush1.msra.mxu0 0.0
    %1809 = vmatprep.subr.mxu0 0.0
    %1810 = vmatpush1.msra.mxu0 0.0
    %1811 = vmatprep.subr.mxu0 0.0
    %1812 = vmatpush1.msra.mxu0 0.0
    %1813 = vmatprep.subr.mxu0 0.0
    %1814 = vmatpush1.msra.mxu0 0.0
    %1815 = vmatprep.subr.mxu0 0.0
    %1816 = vmatpush1.msra.mxu0 0.0
    %1817 = vmatprep.subr.mxu0 0.0
    %1818 = vmatpush1.msra.mxu0 0.0
    %1819 = vmatprep.subr.mxu0 0.0
    %1820 = vmatpush1.msra.mxu0 0.0
    %1821 = vmatprep.subr.mxu0 0.0
    %1822 = vmatpush1.msra.mxu0 0.0
    %1823 = vmatprep.subr.mxu0 0.0
    %1824 = vmatpush1.msra.mxu0 0.0
    %1825 = vmatprep.subr.mxu0 0.0
    %1826 = vmatpush1.msra.mxu0 0.0
    %1827 = vmatprep.subr.mxu0 0.0
    %1828 = vmatpush1.msra.mxu0 0.0
    %1829 = vmatprep.subr.mxu0 0.0
    %1830 = vmatpush1.msra.mxu0 0.0
    %1831 = vmatprep.subr.mxu0 0.0
    %1832 = vmatpush1.msra.mxu0 0.0
    %1833 = vmatprep.subr.mxu0 0.0
    %1834 = vmatpush1.msra.mxu0 0.0
    %1835 = vmatprep.subr.mxu0 0.0
    %1836 = vmatpush1.msra.mxu0 0.0
    %1837 = vmatprep.subr.mxu0 0.0
    %1838 = vmatpush1.msra.mxu0 0.0
    %1839 = vmatprep.mubr.f32.mxu0 0.0
    %1840 = vmatmul.mubr.f32.gmra.mrb[0].mxu0 %v1773
    %v1841 = vpop.f32.mrb[0].mxu0
    %v1842 = vadd.f32 0.0, %v1841
    %v1843 = vpop.f32.mrb[0].mxu0
    %1844 = vdwg.mxu0
    %1846 = vrot.lane.b32.xlu0 %v1763, 32
    %v1847 = vpop.permute.xlu0 %1846
    %v1848 = vsel %vm118, %v1847, 0
    %1850 = vmatprep.subr.mxu0 0.0
    %1851 = vmatpush1.msra.mxu0 %v1764
    %1852 = vmatprep.subr.mxu0 0.0
    %1853 = vmatpush1.msra.mxu0 %v1765
    %1854 = vmatprep.subr.mxu0 0.0
    %1855 = vmatpush1.msra.mxu0 %v1766
    %1856 = vmatprep.subr.mxu0 0.0
    %1857 = vmatpush1.msra.mxu0 %v1767
    %1858 = vmatprep.subr.mxu0 0.0
    %1859 = vmatpush1.msra.mxu0 0.0
    %1860 = vmatprep.subr.mxu0 0.0
    %1861 = vmatpush1.msra.mxu0 0.0
    %1862 = vmatprep.subr.mxu0 0.0
    %1863 = vmatpush1.msra.mxu0 0.0
    %1864 = vmatprep.subr.mxu0 0.0
    %1865 = vmatpush1.msra.mxu0 0.0
    %1866 = vmatprep.subr.mxu0 0.0
    %1867 = vmatpush1.msra.mxu0 0.0
    %1868 = vmatprep.subr.mxu0 0.0
    %1869 = vmatpush1.msra.mxu0 0.0
    %1870 = vmatprep.subr.mxu0 0.0
    %1871 = vmatpush1.msra.mxu0 0.0
    %1872 = vmatprep.subr.mxu0 0.0
    %1873 = vmatpush1.msra.mxu0 0.0
    %1874 = vmatprep.subr.mxu0 0.0
    %1875 = vmatpush1.msra.mxu0 0.0
    %1876 = vmatprep.subr.mxu0 0.0
    %1877 = vmatpush1.msra.mxu0 0.0
    %1878 = vmatprep.subr.mxu0 0.0
    %1879 = vmatpush1.msra.mxu0 0.0
    %1880 = vmatprep.subr.mxu0 0.0
    %1881 = vmatpush1.msra.mxu0 0.0
    %1882 = vmatprep.subr.mxu0 0.0
    %1883 = vmatpush1.msra.mxu0 0.0
    %1884 = vmatprep.subr.mxu0 0.0
    %1885 = vmatpush1.msra.mxu0 0.0
    %1886 = vmatprep.subr.mxu0 0.0
    %1887 = vmatpush1.msra.mxu0 0.0
    %1888 = vmatprep.subr.mxu0 0.0
    %1889 = vmatpush1.msra.mxu0 0.0
    %1890 = vmatprep.subr.mxu0 0.0
    %1891 = vmatpush1.msra.mxu0 0.0
    %1892 = vmatprep.subr.mxu0 0.0
    %1893 = vmatpush1.msra.mxu0 0.0
    %1894 = vmatprep.subr.mxu0 0.0
    %1895 = vmatpush1.msra.mxu0 0.0
    %1896 = vmatprep.subr.mxu0 0.0
    %1897 = vmatpush1.msra.mxu0 0.0
    %1898 = vmatprep.subr.mxu0 0.0
    %1899 = vmatpush1.msra.mxu0 0.0
    %1900 = vmatprep.subr.mxu0 0.0
    %1901 = vmatpush1.msra.mxu0 0.0
    %1902 = vmatprep.subr.mxu0 0.0
    %1903 = vmatpush1.msra.mxu0 0.0
    %1904 = vmatprep.subr.mxu0 0.0
    %1905 = vmatpush1.msra.mxu0 0.0
    %1906 = vmatprep.subr.mxu0 0.0
    %1907 = vmatpush1.msra.mxu0 0.0
    %1908 = vmatprep.subr.mxu0 0.0
    %1909 = vmatpush1.msra.mxu0 0.0
    %1910 = vmatprep.subr.mxu0 0.0
    %1911 = vmatpush1.msra.mxu0 0.0
    %1912 = vmatprep.subr.mxu0 0.0
    %1913 = vmatpush1.msra.mxu0 0.0
    %1914 = vmatprep.mubr.f32.mxu0 0.0
    %1915 = vmatmul.mubr.f32.gmra.mrb[0].mxu0 %v1848
    %v1916 = vpop.f32.mrb[0].mxu0
    %v1917 = vadd.f32 %v1842, %v1916
    %v1918 = vpop.f32.mrb[0].mxu0
    %1919 = vdwg.mxu0
    %v1920 = vadd.f32 %v1917, %v1772
    %v1921 = vxor.u32 %v1920, 2147483648
    %v1922 = vmul.f32 %v1921, 1.442695
    %v1923 = vpow.pop %v1922
    %v1924 = vadd.f32 %v1923, 1.0
    %v1925 = vrcp.pop %v1924
    %v1926 = vmul.f32 1.0, %v1925
    %v1927 = vtanh.pop %v1920
    %v1928 = vmul.f32 %v1926, %v1574
    %1930 = vrot.lane.b32.xlu0 %v1927, 64
    %v1931 = vpop.permute.xlu0 %1930
    %v1933 = vmul.f32 %v1926, %v1931
    %1935 = vrot.lane.b32.xlu0 %v1933, 32
    %v1936 = vpop.permute.xlu0 %1935
    %v1938 = vadd.f32 %v1928, %v1936
    %v1939 = vtanh.pop %v1938
    %1941 = vrot.lane.b32.xlu0 %v1939, 64
    %v1942 = vpop.permute.xlu0 %1941
    %v1944 = vmul.f32 %v1926, %v1942
    %1946 = vrot.lane.b32.xlu0 %v1944, 32
    %v1947 = vpop.permute.xlu0 %1946
    %s1949 = scalar_lea.vmem [#allocation13], 4
    %1950 = vst.msk [vmem:[%s1949] sm:$0x1] %vm493, %v1947
    %s1951 = scalar_lea.vmem [#allocation4], 5
    %v1952 = vld [vmem:[%s1951] sm:$0x1]
    %v1953 = vld [vmem:[#allocation7] sm:$0xff]
    %v1954 = vld [vmem:[#allocation7 + $0x8] sm:$0xff]
    %v1955 = vld [vmem:[#allocation9] sm:$0xff]
    %v1956 = vld [vmem:[#allocation9 + $0x8] sm:$0xff]
    %v1957 = vld [vmem:[#allocation9 + $0x10] sm:$0xff]
    %v1958 = vld [vmem:[#allocation9 + $0x18] sm:$0xff]
    %v1959 = vld [vmem:[%s3] sm:$0x1]
    %1960 = vmatprep.subr.mxu0 0.0
    %1961 = vmatpush1.msra.mxu0 %v1955
    %1962 = vmatprep.subr.mxu0 0.0
    %1963 = vmatpush1.msra.mxu0 %v1956
    %1964 = vmatprep.subr.mxu0 0.0
    %1965 = vmatpush1.msra.mxu0 %v1957
    %1966 = vmatprep.subr.mxu0 0.0
    %1967 = vmatpush1.msra.mxu0 %v1958
    %1968 = vmatprep.subr.mxu0 0.0
    %1969 = vmatpush1.msra.mxu0 0.0
    %1970 = vmatprep.subr.mxu0 0.0
    %1971 = vmatpush1.msra.mxu0 0.0
    %1972 = vmatprep.subr.mxu0 0.0
    %1973 = vmatpush1.msra.mxu0 0.0
    %1974 = vmatprep.subr.mxu0 0.0
    %1975 = vmatpush1.msra.mxu0 0.0
    %1976 = vmatprep.subr.mxu0 0.0
    %1977 = vmatpush1.msra.mxu0 0.0
    %1978 = vmatprep.subr.mxu0 0.0
    %1979 = vmatpush1.msra.mxu0 0.0
    %1980 = vmatprep.subr.mxu0 0.0
    %1981 = vmatpush1.msra.mxu0 0.0
    %1982 = vmatprep.subr.mxu0 0.0
    %1983 = vmatpush1.msra.mxu0 0.0
    %1984 = vmatprep.subr.mxu0 0.0
    %1985 = vmatpush1.msra.mxu0 0.0
    %1986 = vmatprep.subr.mxu0 0.0
    %1987 = vmatpush1.msra.mxu0 0.0
    %1988 = vmatprep.subr.mxu0 0.0
    %1989 = vmatpush1.msra.mxu0 0.0
    %1990 = vmatprep.subr.mxu0 0.0
    %1991 = vmatpush1.msra.mxu0 0.0
    %1992 = vmatprep.subr.mxu0 0.0
    %1993 = vmatpush1.msra.mxu0 0.0
    %1994 = vmatprep.subr.mxu0 0.0
    %1995 = vmatpush1.msra.mxu0 0.0
    %1996 = vmatprep.subr.mxu0 0.0
    %1997 = vmatpush1.msra.mxu0 0.0
    %1998 = vmatprep.subr.mxu0 0.0
    %1999 = vmatpush1.msra.mxu0 0.0
    %2000 = vmatprep.subr.mxu0 0.0
    %2001 = vmatpush1.msra.mxu0 0.0
    %2002 = vmatprep.subr.mxu0 0.0
    %2003 = vmatpush1.msra.mxu0 0.0
    %2004 = vmatprep.subr.mxu0 0.0
    %2005 = vmatpush1.msra.mxu0 0.0
    %2006 = vmatprep.subr.mxu0 0.0
    %2007 = vmatpush1.msra.mxu0 0.0
    %2008 = vmatprep.subr.mxu0 0.0
    %2009 = vmatpush1.msra.mxu0 0.0
    %2010 = vmatprep.subr.mxu0 0.0
    %2011 = vmatpush1.msra.mxu0 0.0
    %2012 = vmatprep.subr.mxu0 0.0
    %2013 = vmatpush1.msra.mxu0 0.0
    %2014 = vmatprep.subr.mxu0 0.0
    %2015 = vmatpush1.msra.mxu0 0.0
    %2016 = vmatprep.subr.mxu0 0.0
    %2017 = vmatpush1.msra.mxu0 0.0
    %2018 = vmatprep.subr.mxu0 0.0
    %2019 = vmatpush1.msra.mxu0 0.0
    %2020 = vmatprep.subr.mxu0 0.0
    %2021 = vmatpush1.msra.mxu0 0.0
    %2022 = vmatprep.subr.mxu0 0.0
    %2023 = vmatpush1.msra.mxu0 0.0
    %2024 = vmatprep.mubr.f32.mxu0 0.0
    %2025 = vmatmul.mubr.f32.gmra.mrb[0].mxu0 %v1848
    %v2026 = vpop.f32.mrb[0].mxu0
    %v2027 = vadd.f32 0.0, %v2026
    %v2028 = vpop.f32.mrb[0].mxu0
    %2029 = vdwg.mxu0
    %v2031 = vsel %vm192, %v1952, 0
    %2033 = vmatprep.subr.mxu0 0.0
    %2034 = vmatpush1.msra.mxu0 %v1953
    %2035 = vmatprep.subr.mxu0 0.0
    %2036 = vmatpush1.msra.mxu0 %v1954
    %2037 = vmatprep.subr.mxu0 0.0
    %2038 = vmatpush1.msra.mxu0 0.0
    %2039 = vmatprep.subr.mxu0 0.0
    %2040 = vmatpush1.msra.mxu0 0.0
    %2041 = vmatprep.subr.mxu0 0.0
    %2042 = vmatpush1.msra.mxu0 0.0
    %2043 = vmatprep.subr.mxu0 0.0
    %2044 = vmatpush1.msra.mxu0 0.0
    %2045 = vmatprep.subr.mxu0 0.0
    %2046 = vmatpush1.msra.mxu0 0.0
    %2047 = vmatprep.subr.mxu0 0.0
    %2048 = vmatpush1.msra.mxu0 0.0
    %2049 = vmatprep.subr.mxu0 0.0
    %2050 = vmatpush1.msra.mxu0 0.0
    %2051 = vmatprep.subr.mxu0 0.0
    %2052 = vmatpush1.msra.mxu0 0.0
    %2053 = vmatprep.subr.mxu0 0.0
    %2054 = vmatpush1.msra.mxu0 0.0
    %2055 = vmatprep.subr.mxu0 0.0
    %2056 = vmatpush1.msra.mxu0 0.0
    %2057 = vmatprep.subr.mxu0 0.0
    %2058 = vmatpush1.msra.mxu0 0.0
    %2059 = vmatprep.subr.mxu0 0.0
    %2060 = vmatpush1.msra.mxu0 0.0
    %2061 = vmatprep.subr.mxu0 0.0
    %2062 = vmatpush1.msra.mxu0 0.0
    %2063 = vmatprep.subr.mxu0 0.0
    %2064 = vmatpush1.msra.mxu0 0.0
    %2065 = vmatprep.subr.mxu0 0.0
    %2066 = vmatpush1.msra.mxu0 0.0
    %2067 = vmatprep.subr.mxu0 0.0
    %2068 = vmatpush1.msra.mxu0 0.0
    %2069 = vmatprep.subr.mxu0 0.0
    %2070 = vmatpush1.msra.mxu0 0.0
    %2071 = vmatprep.subr.mxu0 0.0
    %2072 = vmatpush1.msra.mxu0 0.0
    %2073 = vmatprep.subr.mxu0 0.0
    %2074 = vmatpush1.msra.mxu0 0.0
    %2075 = vmatprep.subr.mxu0 0.0
    %2076 = vmatpush1.msra.mxu0 0.0
    %2077 = vmatprep.subr.mxu0 0.0
    %2078 = vmatpush1.msra.mxu0 0.0
    %2079 = vmatprep.subr.mxu0 0.0
    %2080 = vmatpush1.msra.mxu0 0.0
    %2081 = vmatprep.subr.mxu0 0.0
    %2082 = vmatpush1.msra.mxu0 0.0
    %2083 = vmatprep.subr.mxu0 0.0
    %2084 = vmatpush1.msra.mxu0 0.0
    %2085 = vmatprep.subr.mxu0 0.0
    %2086 = vmatpush1.msra.mxu0 0.0
    %2087 = vmatprep.subr.mxu0 0.0
    %2088 = vmatpush1.msra.mxu0 0.0
    %2089 = vmatprep.subr.mxu0 0.0
    %2090 = vmatpush1.msra.mxu0 0.0
    %2091 = vmatprep.subr.mxu0 0.0
    %2092 = vmatpush1.msra.mxu0 0.0
    %2093 = vmatprep.subr.mxu0 0.0
    %2094 = vmatpush1.msra.mxu0 0.0
    %2095 = vmatprep.subr.mxu0 0.0
    %2096 = vmatpush1.msra.mxu0 0.0
    %2097 = vmatprep.mubr.f32.mxu0 0.0
    %2098 = vmatmul.mubr.f32.gmra.mrb[0].mxu0 %v2031
    %v2099 = vpop.f32.mrb[0].mxu0
    %v2100 = vadd.f32 %v2027, %v2099
    %v2101 = vpop.f32.mrb[0].mxu0
    %2102 = vdwg.mxu0
    %v2103 = vadd.f32 %v2100, %v1959
    %v2104 = vxor.u32 %v2103, 2147483648
    %v2105 = vmul.f32 %v2104, 1.442695
    %v2106 = vpow.pop %v2105
    %v2107 = vadd.f32 %v2106, 1.0
    %v2108 = vrcp.pop %v2107
    %v2109 = vmul.f32 1.0, %v2108
    %v2110 = vtanh.pop %v2103
    %v2111 = vmul.f32 %v2109, %v1757
    %2113 = vrot.lane.b32.xlu0 %v2110, 64
    %v2114 = vpop.permute.xlu0 %2113
    %v2116 = vmul.f32 %v2109, %v2114
    %2118 = vrot.lane.b32.xlu0 %v2116, 32
    %v2119 = vpop.permute.xlu0 %2118
    %v2121 = vadd.f32 %v2111, %v2119
    %v2122 = vtanh.pop %v2121
    %2124 = vrot.lane.b32.xlu0 %v2122, 64
    %v2125 = vpop.permute.xlu0 %2124
    %v2127 = vmul.f32 %v2109, %v2125
    %v2128 = vld [vmem:[#allocation10] sm:$0xff]
    %v2129 = vld [vmem:[#allocation10 + $0x8] sm:$0xff]
    %v2130 = vld [vmem:[#allocation10 + $0x10] sm:$0xff]
    %v2131 = vld [vmem:[#allocation10 + $0x18] sm:$0xff]
    %v2132 = vld [vmem:[#allocation12] sm:$0xff]
    %v2133 = vld [vmem:[#allocation12 + $0x8] sm:$0xff]
    %v2134 = vld [vmem:[#allocation12 + $0x10] sm:$0xff]
    %v2135 = vld [vmem:[#allocation12 + $0x18] sm:$0xff]
    %v2136 = vld [vmem:[%s6] sm:$0x1]
    %v2137 = vsel %vm118, %v1947, 0
    %2139 = vmatprep.subr.mxu0 0.0
    %2140 = vmatpush1.msra.mxu0 %v2132
    %2141 = vmatprep.subr.mxu0 0.0
    %2142 = vmatpush1.msra.mxu0 %v2133
    %2143 = vmatprep.subr.mxu0 0.0
    %2144 = vmatpush1.msra.mxu0 %v2134
    %2145 = vmatprep.subr.mxu0 0.0
    %2146 = vmatpush1.msra.mxu0 %v2135
    %2147 = vmatprep.subr.mxu0 0.0
    %2148 = vmatpush1.msra.mxu0 0.0
    %2149 = vmatprep.subr.mxu0 0.0
    %2150 = vmatpush1.msra.mxu0 0.0
    %2151 = vmatprep.subr.mxu0 0.0
    %2152 = vmatpush1.msra.mxu0 0.0
    %2153 = vmatprep.subr.mxu0 0.0
    %2154 = vmatpush1.msra.mxu0 0.0
    %2155 = vmatprep.subr.mxu0 0.0
    %2156 = vmatpush1.msra.mxu0 0.0
    %2157 = vmatprep.subr.mxu0 0.0
    %2158 = vmatpush1.msra.mxu0 0.0
    %2159 = vmatprep.subr.mxu0 0.0
    %2160 = vmatpush1.msra.mxu0 0.0
    %2161 = vmatprep.subr.mxu0 0.0
    %2162 = vmatpush1.msra.mxu0 0.0
    %2163 = vmatprep.subr.mxu0 0.0
    %2164 = vmatpush1.msra.mxu0 0.0
    %2165 = vmatprep.subr.mxu0 0.0
    %2166 = vmatpush1.msra.mxu0 0.0
    %2167 = vmatprep.subr.mxu0 0.0
    %2168 = vmatpush1.msra.mxu0 0.0
    %2169 = vmatprep.subr.mxu0 0.0
    %2170 = vmatpush1.msra.mxu0 0.0
    %2171 = vmatprep.subr.mxu0 0.0
    %2172 = vmatpush1.msra.mxu0 0.0
    %2173 = vmatprep.subr.mxu0 0.0
    %2174 = vmatpush1.msra.mxu0 0.0
    %2175 = vmatprep.subr.mxu0 0.0
    %2176 = vmatpush1.msra.mxu0 0.0
    %2177 = vmatprep.subr.mxu0 0.0
    %2178 = vmatpush1.msra.mxu0 0.0
    %2179 = vmatprep.subr.mxu0 0.0
    %2180 = vmatpush1.msra.mxu0 0.0
    %2181 = vmatprep.subr.mxu0 0.0
    %2182 = vmatpush1.msra.mxu0 0.0
    %2183 = vmatprep.subr.mxu0 0.0
    %2184 = vmatpush1.msra.mxu0 0.0
    %2185 = vmatprep.subr.mxu0 0.0
    %2186 = vmatpush1.msra.mxu0 0.0
    %2187 = vmatprep.subr.mxu0 0.0
    %2188 = vmatpush1.msra.mxu0 0.0
    %2189 = vmatprep.subr.mxu0 0.0
    %2190 = vmatpush1.msra.mxu0 0.0
    %2191 = vmatprep.subr.mxu0 0.0
    %2192 = vmatpush1.msra.mxu0 0.0
    %2193 = vmatprep.subr.mxu0 0.0
    %2194 = vmatpush1.msra.mxu0 0.0
    %2195 = vmatprep.subr.mxu0 0.0
    %2196 = vmatpush1.msra.mxu0 0.0
    %2197 = vmatprep.subr.mxu0 0.0
    %2198 = vmatpush1.msra.mxu0 0.0
    %2199 = vmatprep.subr.mxu0 0.0
    %2200 = vmatpush1.msra.mxu0 0.0
    %2201 = vmatprep.subr.mxu0 0.0
    %2202 = vmatpush1.msra.mxu0 0.0
    %2203 = vmatprep.mubr.f32.mxu0 0.0
    %2204 = vmatmul.mubr.f32.gmra.mrb[0].mxu0 %v2137
    %v2205 = vpop.f32.mrb[0].mxu0
    %v2206 = vadd.f32 0.0, %v2205
    %v2207 = vpop.f32.mrb[0].mxu0
    %2208 = vdwg.mxu0
    %2210 = vrot.lane.b32.xlu0 %v2127, 32
    %v2211 = vpop.permute.xlu0 %2210
    %v2212 = vsel %vm118, %v2211, 0
    %2214 = vmatprep.subr.mxu0 0.0
    %2215 = vmatpush1.msra.mxu0 %v2128
    %2216 = vmatprep.subr.mxu0 0.0
    %2217 = vmatpush1.msra.mxu0 %v2129
    %2218 = vmatprep.subr.mxu0 0.0
    %2219 = vmatpush1.msra.mxu0 %v2130
    %2220 = vmatprep.subr.mxu0 0.0
    %2221 = vmatpush1.msra.mxu0 %v2131
    %2222 = vmatprep.subr.mxu0 0.0
    %2223 = vmatpush1.msra.mxu0 0.0
    %2224 = vmatprep.subr.mxu0 0.0
    %2225 = vmatpush1.msra.mxu0 0.0
    %2226 = vmatprep.subr.mxu0 0.0
    %2227 = vmatpush1.msra.mxu0 0.0
    %2228 = vmatprep.subr.mxu0 0.0
    %2229 = vmatpush1.msra.mxu0 0.0
    %2230 = vmatprep.subr.mxu0 0.0
    %2231 = vmatpush1.msra.mxu0 0.0
    %2232 = vmatprep.subr.mxu0 0.0
    %2233 = vmatpush1.msra.mxu0 0.0
    %2234 = vmatprep.subr.mxu0 0.0
    %2235 = vmatpush1.msra.mxu0 0.0
    %2236 = vmatprep.subr.mxu0 0.0
    %2237 = vmatpush1.msra.mxu0 0.0
    %2238 = vmatprep.subr.mxu0 0.0
    %2239 = vmatpush1.msra.mxu0 0.0
    %2240 = vmatprep.subr.mxu0 0.0
    %2241 = vmatpush1.msra.mxu0 0.0
    %2242 = vmatprep.subr.mxu0 0.0
    %2243 = vmatpush1.msra.mxu0 0.0
    %2244 = vmatprep.subr.mxu0 0.0
    %2245 = vmatpush1.msra.mxu0 0.0
    %2246 = vmatprep.subr.mxu0 0.0
    %2247 = vmatpush1.msra.mxu0 0.0
    %2248 = vmatprep.subr.mxu0 0.0
    %2249 = vmatpush1.msra.mxu0 0.0
    %2250 = vmatprep.subr.mxu0 0.0
    %2251 = vmatpush1.msra.mxu0 0.0
    %2252 = vmatprep.subr.mxu0 0.0
    %2253 = vmatpush1.msra.mxu0 0.0
    %2254 = vmatprep.subr.mxu0 0.0
    %2255 = vmatpush1.msra.mxu0 0.0
    %2256 = vmatprep.subr.mxu0 0.0
    %2257 = vmatpush1.msra.mxu0 0.0
    %2258 = vmatprep.subr.mxu0 0.0
    %2259 = vmatpush1.msra.mxu0 0.0
    %2260 = vmatprep.subr.mxu0 0.0
    %2261 = vmatpush1.msra.mxu0 0.0
    %2262 = vmatprep.subr.mxu0 0.0
    %2263 = vmatpush1.msra.mxu0 0.0
    %2264 = vmatprep.subr.mxu0 0.0
    %2265 = vmatpush1.msra.mxu0 0.0
    %2266 = vmatprep.subr.mxu0 0.0
    %2267 = vmatpush1.msra.mxu0 0.0
    %2268 = vmatprep.subr.mxu0 0.0
    %2269 = vmatpush1.msra.mxu0 0.0
    %2270 = vmatprep.subr.mxu0 0.0
    %2271 = vmatpush1.msra.mxu0 0.0
    %2272 = vmatprep.subr.mxu0 0.0
    %2273 = vmatpush1.msra.mxu0 0.0
    %2274 = vmatprep.subr.mxu0 0.0
    %2275 = vmatpush1.msra.mxu0 0.0
    %2276 = vmatprep.subr.mxu0 0.0
    %2277 = vmatpush1.msra.mxu0 0.0
    %2278 = vmatprep.mubr.f32.mxu0 0.0
    %2279 = vmatmul.mubr.f32.gmra.mrb[0].mxu0 %v2212
    %v2280 = vpop.f32.mrb[0].mxu0
    %v2281 = vadd.f32 %v2206, %v2280
    %v2282 = vpop.f32.mrb[0].mxu0
    %2283 = vdwg.mxu0
    %v2284 = vadd.f32 %v2281, %v2136
    %v2285 = vxor.u32 %v2284, 2147483648
    %v2286 = vmul.f32 %v2285, 1.442695
    %v2287 = vpow.pop %v2286
    %v2288 = vadd.f32 %v2287, 1.0
    %v2289 = vrcp.pop %v2288
    %v2290 = vmul.f32 1.0, %v2289
    %v2291 = vtanh.pop %v2284
    %v2292 = vmul.f32 %v2290, %v1938
    %2294 = vrot.lane.b32.xlu0 %v2291, 64
    %v2295 = vpop.permute.xlu0 %2294
    %v2297 = vmul.f32 %v2290, %v2295
    %2299 = vrot.lane.b32.xlu0 %v2297, 32
    %v2300 = vpop.permute.xlu0 %2299
    %v2302 = vadd.f32 %v2292, %v2300
    %v2303 = vtanh.pop %v2302
    %2305 = vrot.lane.b32.xlu0 %v2303, 64
    %v2306 = vpop.permute.xlu0 %2305
    %v2308 = vmul.f32 %v2290, %v2306
    %2310 = vrot.lane.b32.xlu0 %v2308, 32
    %v2311 = vpop.permute.xlu0 %2310
    %s2313 = scalar_lea.vmem [#allocation13], 5
    %2314 = vst.msk [vmem:[%s2313] sm:$0x1] %vm493, %v2311
    %s2315 = scalar_lea.vmem [#allocation4], 6
    %v2316 = vld [vmem:[%s2315] sm:$0x1]
    %v2317 = vld [vmem:[#allocation7] sm:$0xff]
    %v2318 = vld [vmem:[#allocation7 + $0x8] sm:$0xff]
    %v2319 = vld [vmem:[#allocation9] sm:$0xff]
    %v2320 = vld [vmem:[#allocation9 + $0x8] sm:$0xff]
    %v2321 = vld [vmem:[#allocation9 + $0x10] sm:$0xff]
    %v2322 = vld [vmem:[#allocation9 + $0x18] sm:$0xff]
    %v2323 = vld [vmem:[%s3] sm:$0x1]
    %2324 = vmatprep.subr.mxu0 0.0
    %2325 = vmatpush1.msra.mxu0 %v2319
    %2326 = vmatprep.subr.mxu0 0.0
    %2327 = vmatpush1.msra.mxu0 %v2320
    %2328 = vmatprep.subr.mxu0 0.0
    %2329 = vmatpush1.msra.mxu0 %v2321
    %2330 = vmatprep.subr.mxu0 0.0
    %2331 = vmatpush1.msra.mxu0 %v2322
    %2332 = vmatprep.subr.mxu0 0.0
    %2333 = vmatpush1.msra.mxu0 0.0
    %2334 = vmatprep.subr.mxu0 0.0
    %2335 = vmatpush1.msra.mxu0 0.0
    %2336 = vmatprep.subr.mxu0 0.0
    %2337 = vmatpush1.msra.mxu0 0.0
    %2338 = vmatprep.subr.mxu0 0.0
    %2339 = vmatpush1.msra.mxu0 0.0
    %2340 = vmatprep.subr.mxu0 0.0
    %2341 = vmatpush1.msra.mxu0 0.0
    %2342 = vmatprep.subr.mxu0 0.0
    %2343 = vmatpush1.msra.mxu0 0.0
    %2344 = vmatprep.subr.mxu0 0.0
    %2345 = vmatpush1.msra.mxu0 0.0
    %2346 = vmatprep.subr.mxu0 0.0
    %2347 = vmatpush1.msra.mxu0 0.0
    %2348 = vmatprep.subr.mxu0 0.0
    %2349 = vmatpush1.msra.mxu0 0.0
    %2350 = vmatprep.subr.mxu0 0.0
    %2351 = vmatpush1.msra.mxu0 0.0
    %2352 = vmatprep.subr.mxu0 0.0
    %2353 = vmatpush1.msra.mxu0 0.0
    %2354 = vmatprep.subr.mxu0 0.0
    %2355 = vmatpush1.msra.mxu0 0.0
    %2356 = vmatprep.subr.mxu0 0.0
    %2357 = vmatpush1.msra.mxu0 0.0
    %2358 = vmatprep.subr.mxu0 0.0
    %2359 = vmatpush1.msra.mxu0 0.0
    %2360 = vmatprep.subr.mxu0 0.0
    %2361 = vmatpush1.msra.mxu0 0.0
    %2362 = vmatprep.subr.mxu0 0.0
    %2363 = vmatpush1.msra.mxu0 0.0
    %2364 = vmatprep.subr.mxu0 0.0
    %2365 = vmatpush1.msra.mxu0 0.0
    %2366 = vmatprep.subr.mxu0 0.0
    %2367 = vmatpush1.msra.mxu0 0.0
    %2368 = vmatprep.subr.mxu0 0.0
    %2369 = vmatpush1.msra.mxu0 0.0
    %2370 = vmatprep.subr.mxu0 0.0
    %2371 = vmatpush1.msra.mxu0 0.0
    %2372 = vmatprep.subr.mxu0 0.0
    %2373 = vmatpush1.msra.mxu0 0.0
    %2374 = vmatprep.subr.mxu0 0.0
    %2375 = vmatpush1.msra.mxu0 0.0
    %2376 = vmatprep.subr.mxu0 0.0
    %2377 = vmatpush1.msra.mxu0 0.0
    %2378 = vmatprep.subr.mxu0 0.0
    %2379 = vmatpush1.msra.mxu0 0.0
    %2380 = vmatprep.subr.mxu0 0.0
    %2381 = vmatpush1.msra.mxu0 0.0
    %2382 = vmatprep.subr.mxu0 0.0
    %2383 = vmatpush1.msra.mxu0 0.0
    %2384 = vmatprep.subr.mxu0 0.0
    %2385 = vmatpush1.msra.mxu0 0.0
    %2386 = vmatprep.subr.mxu0 0.0
    %2387 = vmatpush1.msra.mxu0 0.0
    %2388 = vmatprep.mubr.f32.mxu0 0.0
    %2389 = vmatmul.mubr.f32.gmra.mrb[0].mxu0 %v2212
    %v2390 = vpop.f32.mrb[0].mxu0
    %v2391 = vadd.f32 0.0, %v2390
    %v2392 = vpop.f32.mrb[0].mxu0
    %2393 = vdwg.mxu0
    %v2395 = vsel %vm192, %v2316, 0
    %2397 = vmatprep.subr.mxu0 0.0
    %2398 = vmatpush1.msra.mxu0 %v2317
    %2399 = vmatprep.subr.mxu0 0.0
    %2400 = vmatpush1.msra.mxu0 %v2318
    %2401 = vmatprep.subr.mxu0 0.0
    %2402 = vmatpush1.msra.mxu0 0.0
    %2403 = vmatprep.subr.mxu0 0.0
    %2404 = vmatpush1.msra.mxu0 0.0
    %2405 = vmatprep.subr.mxu0 0.0
    %2406 = vmatpush1.msra.mxu0 0.0
    %2407 = vmatprep.subr.mxu0 0.0
    %2408 = vmatpush1.msra.mxu0 0.0
    %2409 = vmatprep.subr.mxu0 0.0
    %2410 = vmatpush1.msra.mxu0 0.0
    %2411 = vmatprep.subr.mxu0 0.0
    %2412 = vmatpush1.msra.mxu0 0.0
    %2413 = vmatprep.subr.mxu0 0.0
    %2414 = vmatpush1.msra.mxu0 0.0
    %2415 = vmatprep.subr.mxu0 0.0
    %2416 = vmatpush1.msra.mxu0 0.0
    %2417 = vmatprep.subr.mxu0 0.0
    %2418 = vmatpush1.msra.mxu0 0.0
    %2419 = vmatprep.subr.mxu0 0.0
    %2420 = vmatpush1.msra.mxu0 0.0
    %2421 = vmatprep.subr.mxu0 0.0
    %2422 = vmatpush1.msra.mxu0 0.0
    %2423 = vmatprep.subr.mxu0 0.0
    %2424 = vmatpush1.msra.mxu0 0.0
    %2425 = vmatprep.subr.mxu0 0.0
    %2426 = vmatpush1.msra.mxu0 0.0
    %2427 = vmatprep.subr.mxu0 0.0
    %2428 = vmatpush1.msra.mxu0 0.0
    %2429 = vmatprep.subr.mxu0 0.0
    %2430 = vmatpush1.msra.mxu0 0.0
    %2431 = vmatprep.subr.mxu0 0.0
    %2432 = vmatpush1.msra.mxu0 0.0
    %2433 = vmatprep.subr.mxu0 0.0
    %2434 = vmatpush1.msra.mxu0 0.0
    %2435 = vmatprep.subr.mxu0 0.0
    %2436 = vmatpush1.msra.mxu0 0.0
    %2437 = vmatprep.subr.mxu0 0.0
    %2438 = vmatpush1.msra.mxu0 0.0
    %2439 = vmatprep.subr.mxu0 0.0
    %2440 = vmatpush1.msra.mxu0 0.0
    %2441 = vmatprep.subr.mxu0 0.0
    %2442 = vmatpush1.msra.mxu0 0.0
    %2443 = vmatprep.subr.mxu0 0.0
    %2444 = vmatpush1.msra.mxu0 0.0
    %2445 = vmatprep.subr.mxu0 0.0
    %2446 = vmatpush1.msra.mxu0 0.0
    %2447 = vmatprep.subr.mxu0 0.0
    %2448 = vmatpush1.msra.mxu0 0.0
    %2449 = vmatprep.subr.mxu0 0.0
    %2450 = vmatpush1.msra.mxu0 0.0
    %2451 = vmatprep.subr.mxu0 0.0
    %2452 = vmatpush1.msra.mxu0 0.0
    %2453 = vmatprep.subr.mxu0 0.0
    %2454 = vmatpush1.msra.mxu0 0.0
    %2455 = vmatprep.subr.mxu0 0.0
    %2456 = vmatpush1.msra.mxu0 0.0
    %2457 = vmatprep.subr.mxu0 0.0
    %2458 = vmatpush1.msra.mxu0 0.0
    %2459 = vmatprep.subr.mxu0 0.0
    %2460 = vmatpush1.msra.mxu0 0.0
    %2461 = vmatprep.mubr.f32.mxu0 0.0
    %2462 = vmatmul.mubr.f32.gmra.mrb[0].mxu0 %v2395
    %v2463 = vpop.f32.mrb[0].mxu0
    %v2464 = vadd.f32 %v2391, %v2463
    %v2465 = vpop.f32.mrb[0].mxu0
    %2466 = vdwg.mxu0
    %v2467 = vadd.f32 %v2464, %v2323
    %v2468 = vxor.u32 %v2467, 2147483648
    %v2469 = vmul.f32 %v2468, 1.442695
    %v2470 = vpow.pop %v2469
    %v2471 = vadd.f32 %v2470, 1.0
    %v2472 = vrcp.pop %v2471
    %v2473 = vmul.f32 1.0, %v2472
    %v2474 = vtanh.pop %v2467
    %v2475 = vmul.f32 %v2473, %v2121
    %2477 = vrot.lane.b32.xlu0 %v2474, 64
    %v2478 = vpop.permute.xlu0 %2477
    %v2480 = vmul.f32 %v2473, %v2478
    %2482 = vrot.lane.b32.xlu0 %v2480, 32
    %v2483 = vpop.permute.xlu0 %2482
    %v2485 = vadd.f32 %v2475, %v2483
    %v2486 = vtanh.pop %v2485
    %2488 = vrot.lane.b32.xlu0 %v2486, 64
    %v2489 = vpop.permute.xlu0 %2488
    %v2491 = vmul.f32 %v2473, %v2489
    %v2492 = vld [vmem:[#allocation10] sm:$0xff]
    %v2493 = vld [vmem:[#allocation10 + $0x8] sm:$0xff]
    %v2494 = vld [vmem:[#allocation10 + $0x10] sm:$0xff]
    %v2495 = vld [vmem:[#allocation10 + $0x18] sm:$0xff]
    %v2496 = vld [vmem:[#allocation12] sm:$0xff]
    %v2497 = vld [vmem:[#allocation12 + $0x8] sm:$0xff]
    %v2498 = vld [vmem:[#allocation12 + $0x10] sm:$0xff]
    %v2499 = vld [vmem:[#allocation12 + $0x18] sm:$0xff]
    %v2500 = vld [vmem:[%s6] sm:$0x1]
    %v2501 = vsel %vm118, %v2311, 0
    %2503 = vmatprep.subr.mxu0 0.0
    %2504 = vmatpush1.msra.mxu0 %v2496
    %2505 = vmatprep.subr.mxu0 0.0
    %2506 = vmatpush1.msra.mxu0 %v2497
    %2507 = vmatprep.subr.mxu0 0.0
    %2508 = vmatpush1.msra.mxu0 %v2498
    %2509 = vmatprep.subr.mxu0 0.0
    %2510 = vmatpush1.msra.mxu0 %v2499
    %2511 = vmatprep.subr.mxu0 0.0
    %2512 = vmatpush1.msra.mxu0 0.0
    %2513 = vmatprep.subr.mxu0 0.0
    %2514 = vmatpush1.msra.mxu0 0.0
    %2515 = vmatprep.subr.mxu0 0.0
    %2516 = vmatpush1.msra.mxu0 0.0
    %2517 = vmatprep.subr.mxu0 0.0
    %2518 = vmatpush1.msra.mxu0 0.0
    %2519 = vmatprep.subr.mxu0 0.0
    %2520 = vmatpush1.msra.mxu0 0.0
    %2521 = vmatprep.subr.mxu0 0.0
    %2522 = vmatpush1.msra.mxu0 0.0
    %2523 = vmatprep.subr.mxu0 0.0
    %2524 = vmatpush1.msra.mxu0 0.0
    %2525 = vmatprep.subr.mxu0 0.0
    %2526 = vmatpush1.msra.mxu0 0.0
    %2527 = vmatprep.subr.mxu0 0.0
    %2528 = vmatpush1.msra.mxu0 0.0
    %2529 = vmatprep.subr.mxu0 0.0
    %2530 = vmatpush1.msra.mxu0 0.0
    %2531 = vmatprep.subr.mxu0 0.0
    %2532 = vmatpush1.msra.mxu0 0.0
    %2533 = vmatprep.subr.mxu0 0.0
    %2534 = vmatpush1.msra.mxu0 0.0
    %2535 = vmatprep.subr.mxu0 0.0
    %2536 = vmatpush1.msra.mxu0 0.0
    %2537 = vmatprep.subr.mxu0 0.0
    %2538 = vmatpush1.msra.mxu0 0.0
    %2539 = vmatprep.subr.mxu0 0.0
    %2540 = vmatpush1.msra.mxu0 0.0
    %2541 = vmatprep.subr.mxu0 0.0
    %2542 = vmatpush1.msra.mxu0 0.0
    %2543 = vmatprep.subr.mxu0 0.0
    %2544 = vmatpush1.msra.mxu0 0.0
    %2545 = vmatprep.subr.mxu0 0.0
    %2546 = vmatpush1.msra.mxu0 0.0
    %2547 = vmatprep.subr.mxu0 0.0
    %2548 = vmatpush1.msra.mxu0 0.0
    %2549 = vmatprep.subr.mxu0 0.0
    %2550 = vmatpush1.msra.mxu0 0.0
    %2551 = vmatprep.subr.mxu0 0.0
    %2552 = vmatpush1.msra.mxu0 0.0
    %2553 = vmatprep.subr.mxu0 0.0
    %2554 = vmatpush1.msra.mxu0 0.0
    %2555 = vmatprep.subr.mxu0 0.0
    %2556 = vmatpush1.msra.mxu0 0.0
    %2557 = vmatprep.subr.mxu0 0.0
    %2558 = vmatpush1.msra.mxu0 0.0
    %2559 = vmatprep.subr.mxu0 0.0
    %2560 = vmatpush1.msra.mxu0 0.0
    %2561 = vmatprep.subr.mxu0 0.0
    %2562 = vmatpush1.msra.mxu0 0.0
    %2563 = vmatprep.subr.mxu0 0.0
    %2564 = vmatpush1.msra.mxu0 0.0
    %2565 = vmatprep.subr.mxu0 0.0
    %2566 = vmatpush1.msra.mxu0 0.0
    %2567 = vmatprep.mubr.f32.mxu0 0.0
    %2568 = vmatmul.mubr.f32.gmra.mrb[0].mxu0 %v2501
    %v2569 = vpop.f32.mrb[0].mxu0
    %v2570 = vadd.f32 0.0, %v2569
    %v2571 = vpop.f32.mrb[0].mxu0
    %2572 = vdwg.mxu0
    %2574 = vrot.lane.b32.xlu0 %v2491, 32
    %v2575 = vpop.permute.xlu0 %2574
    %v2576 = vsel %vm118, %v2575, 0
    %2578 = vmatprep.subr.mxu0 0.0
    %2579 = vmatpush1.msra.mxu0 %v2492
    %2580 = vmatprep.subr.mxu0 0.0
    %2581 = vmatpush1.msra.mxu0 %v2493
    %2582 = vmatprep.subr.mxu0 0.0
    %2583 = vmatpush1.msra.mxu0 %v2494
    %2584 = vmatprep.subr.mxu0 0.0
    %2585 = vmatpush1.msra.mxu0 %v2495
    %2586 = vmatprep.subr.mxu0 0.0
    %2587 = vmatpush1.msra.mxu0 0.0
    %2588 = vmatprep.subr.mxu0 0.0
    %2589 = vmatpush1.msra.mxu0 0.0
    %2590 = vmatprep.subr.mxu0 0.0
    %2591 = vmatpush1.msra.mxu0 0.0
    %2592 = vmatprep.subr.mxu0 0.0
    %2593 = vmatpush1.msra.mxu0 0.0
    %2594 = vmatprep.subr.mxu0 0.0
    %2595 = vmatpush1.msra.mxu0 0.0
    %2596 = vmatprep.subr.mxu0 0.0
    %2597 = vmatpush1.msra.mxu0 0.0
    %2598 = vmatprep.subr.mxu0 0.0
    %2599 = vmatpush1.msra.mxu0 0.0
    %2600 = vmatprep.subr.mxu0 0.0
    %2601 = vmatpush1.msra.mxu0 0.0
    %2602 = vmatprep.subr.mxu0 0.0
    %2603 = vmatpush1.msra.mxu0 0.0
    %2604 = vmatprep.subr.mxu0 0.0
    %2605 = vmatpush1.msra.mxu0 0.0
    %2606 = vmatprep.subr.mxu0 0.0
    %2607 = vmatpush1.msra.mxu0 0.0
    %2608 = vmatprep.subr.mxu0 0.0
    %2609 = vmatpush1.msra.mxu0 0.0
    %2610 = vmatprep.subr.mxu0 0.0
    %2611 = vmatpush1.msra.mxu0 0.0
    %2612 = vmatprep.subr.mxu0 0.0
    %2613 = vmatpush1.msra.mxu0 0.0
    %2614 = vmatprep.subr.mxu0 0.0
    %2615 = vmatpush1.msra.mxu0 0.0
    %2616 = vmatprep.subr.mxu0 0.0
    %2617 = vmatpush1.msra.mxu0 0.0
    %2618 = vmatprep.subr.mxu0 0.0
    %2619 = vmatpush1.msra.mxu0 0.0
    %2620 = vmatprep.subr.mxu0 0.0
    %2621 = vmatpush1.msra.mxu0 0.0
    %2622 = vmatprep.subr.mxu0 0.0
    %2623 = vmatpush1.msra.mxu0 0.0
    %2624 = vmatprep.subr.mxu0 0.0
    %2625 = vmatpush1.msra.mxu0 0.0
    %2626 = vmatprep.subr.mxu0 0.0
    %2627 = vmatpush1.msra.mxu0 0.0
    %2628 = vmatprep.subr.mxu0 0.0
    %2629 = vmatpush1.msra.mxu0 0.0
    %2630 = vmatprep.subr.mxu0 0.0
    %2631 = vmatpush1.msra.mxu0 0.0
    %2632 = vmatprep.subr.mxu0 0.0
    %2633 = vmatpush1.msra.mxu0 0.0
    %2634 = vmatprep.subr.mxu0 0.0
    %2635 = vmatpush1.msra.mxu0 0.0
    %2636 = vmatprep.subr.mxu0 0.0
    %2637 = vmatpush1.msra.mxu0 0.0
    %2638 = vmatprep.subr.mxu0 0.0
    %2639 = vmatpush1.msra.mxu0 0.0
    %2640 = vmatprep.subr.mxu0 0.0
    %2641 = vmatpush1.msra.mxu0 0.0
    %2642 = vmatprep.mubr.f32.mxu0 0.0
    %2643 = vmatmul.mubr.f32.gmra.mrb[0].mxu0 %v2576
    %v2644 = vpop.f32.mrb[0].mxu0
    %v2645 = vadd.f32 %v2570, %v2644
    %v2646 = vpop.f32.mrb[0].mxu0
    %2647 = vdwg.mxu0
    %v2648 = vadd.f32 %v2645, %v2500
    %v2649 = vxor.u32 %v2648, 2147483648
    %v2650 = vmul.f32 %v2649, 1.442695
    %v2651 = vpow.pop %v2650
    %v2652 = vadd.f32 %v2651, 1.0
    %v2653 = vrcp.pop %v2652
    %v2654 = vmul.f32 1.0, %v2653
    %v2655 = vtanh.pop %v2648
    %v2656 = vmul.f32 %v2654, %v2302
    %2658 = vrot.lane.b32.xlu0 %v2655, 64
    %v2659 = vpop.permute.xlu0 %2658
    %v2661 = vmul.f32 %v2654, %v2659
    %2663 = vrot.lane.b32.xlu0 %v2661, 32
    %v2664 = vpop.permute.xlu0 %2663
    %v2666 = vadd.f32 %v2656, %v2664
    %v2667 = vtanh.pop %v2666
    %2669 = vrot.lane.b32.xlu0 %v2667, 64
    %v2670 = vpop.permute.xlu0 %2669
    %v2672 = vmul.f32 %v2654, %v2670
    %2674 = vrot.lane.b32.xlu0 %v2672, 32
    %v2675 = vpop.permute.xlu0 %2674
    %s2677 = scalar_lea.vmem [#allocation13], 6
    %2678 = vst.msk [vmem:[%s2677] sm:$0x1] %vm493, %v2675
    %s2679 = scalar_lea.vmem [#allocation4], 7
    %v2680 = vld [vmem:[%s2679] sm:$0x1]
    %v2681 = vld [vmem:[#allocation7] sm:$0xff]
    %v2682 = vld [vmem:[#allocation7 + $0x8] sm:$0xff]
    %v2683 = vld [vmem:[#allocation9] sm:$0xff]
    %v2684 = vld [vmem:[#allocation9 + $0x8] sm:$0xff]
    %v2685 = vld [vmem:[#allocation9 + $0x10] sm:$0xff]
    %v2686 = vld [vmem:[#allocation9 + $0x18] sm:$0xff]
    %v2687 = vld [vmem:[%s3] sm:$0x1]
    %2688 = vmatprep.subr.mxu0 0.0
    %2689 = vmatpush1.msra.mxu0 %v2683
    %2690 = vmatprep.subr.mxu0 0.0
    %2691 = vmatpush1.msra.mxu0 %v2684
    %2692 = vmatprep.subr.mxu0 0.0
    %2693 = vmatpush1.msra.mxu0 %v2685
    %2694 = vmatprep.subr.mxu0 0.0
    %2695 = vmatpush1.msra.mxu0 %v2686
    %2696 = vmatprep.subr.mxu0 0.0
    %2697 = vmatpush1.msra.mxu0 0.0
    %2698 = vmatprep.subr.mxu0 0.0
    %2699 = vmatpush1.msra.mxu0 0.0
    %2700 = vmatprep.subr.mxu0 0.0
    %2701 = vmatpush1.msra.mxu0 0.0
    %2702 = vmatprep.subr.mxu0 0.0
    %2703 = vmatpush1.msra.mxu0 0.0
    %2704 = vmatprep.subr.mxu0 0.0
    %2705 = vmatpush1.msra.mxu0 0.0
    %2706 = vmatprep.subr.mxu0 0.0
    %2707 = vmatpush1.msra.mxu0 0.0
    %2708 = vmatprep.subr.mxu0 0.0
    %2709 = vmatpush1.msra.mxu0 0.0
    %2710 = vmatprep.subr.mxu0 0.0
    %2711 = vmatpush1.msra.mxu0 0.0
    %2712 = vmatprep.subr.mxu0 0.0
    %2713 = vmatpush1.msra.mxu0 0.0
    %2714 = vmatprep.subr.mxu0 0.0
    %2715 = vmatpush1.msra.mxu0 0.0
    %2716 = vmatprep.subr.mxu0 0.0
    %2717 = vmatpush1.msra.mxu0 0.0
    %2718 = vmatprep.subr.mxu0 0.0
    %2719 = vmatpush1.msra.mxu0 0.0
    %2720 = vmatprep.subr.mxu0 0.0
    %2721 = vmatpush1.msra.mxu0 0.0
    %2722 = vmatprep.subr.mxu0 0.0
    %2723 = vmatpush1.msra.mxu0 0.0
    %2724 = vmatprep.subr.mxu0 0.0
    %2725 = vmatpush1.msra.mxu0 0.0
    %2726 = vmatprep.subr.mxu0 0.0
    %2727 = vmatpush1.msra.mxu0 0.0
    %2728 = vmatprep.subr.mxu0 0.0
    %2729 = vmatpush1.msra.mxu0 0.0
    %2730 = vmatprep.subr.mxu0 0.0
    %2731 = vmatpush1.msra.mxu0 0.0
    %2732 = vmatprep.subr.mxu0 0.0
    %2733 = vmatpush1.msra.mxu0 0.0
    %2734 = vmatprep.subr.mxu0 0.0
    %2735 = vmatpush1.msra.mxu0 0.0
    %2736 = vmatprep.subr.mxu0 0.0
    %2737 = vmatpush1.msra.mxu0 0.0
    %2738 = vmatprep.subr.mxu0 0.0
    %2739 = vmatpush1.msra.mxu0 0.0
    %2740 = vmatprep.subr.mxu0 0.0
    %2741 = vmatpush1.msra.mxu0 0.0
    %2742 = vmatprep.subr.mxu0 0.0
    %2743 = vmatpush1.msra.mxu0 0.0
    %2744 = vmatprep.subr.mxu0 0.0
    %2745 = vmatpush1.msra.mxu0 0.0
    %2746 = vmatprep.subr.mxu0 0.0
    %2747 = vmatpush1.msra.mxu0 0.0
    %2748 = vmatprep.subr.mxu0 0.0
    %2749 = vmatpush1.msra.mxu0 0.0
    %2750 = vmatprep.subr.mxu0 0.0
    %2751 = vmatpush1.msra.mxu0 0.0
    %2752 = vmatprep.mubr.f32.mxu0 0.0
    %2753 = vmatmul.mubr.f32.gmra.mrb[0].mxu0 %v2576
    %v2754 = vpop.f32.mrb[0].mxu0
    %v2755 = vadd.f32 0.0, %v2754
    %v2756 = vpop.f32.mrb[0].mxu0
    %2757 = vdwg.mxu0
    %v2759 = vsel %vm192, %v2680, 0
    %2761 = vmatprep.subr.mxu0 0.0
    %2762 = vmatpush1.msra.mxu0 %v2681
    %2763 = vmatprep.subr.mxu0 0.0
    %2764 = vmatpush1.msra.mxu0 %v2682
    %2765 = vmatprep.subr.mxu0 0.0
    %2766 = vmatpush1.msra.mxu0 0.0
    %2767 = vmatprep.subr.mxu0 0.0
    %2768 = vmatpush1.msra.mxu0 0.0
    %2769 = vmatprep.subr.mxu0 0.0
    %2770 = vmatpush1.msra.mxu0 0.0
    %2771 = vmatprep.subr.mxu0 0.0
    %2772 = vmatpush1.msra.mxu0 0.0
    %2773 = vmatprep.subr.mxu0 0.0
    %2774 = vmatpush1.msra.mxu0 0.0
    %2775 = vmatprep.subr.mxu0 0.0
    %2776 = vmatpush1.msra.mxu0 0.0
    %2777 = vmatprep.subr.mxu0 0.0
    %2778 = vmatpush1.msra.mxu0 0.0
    %2779 = vmatprep.subr.mxu0 0.0
    %2780 = vmatpush1.msra.mxu0 0.0
    %2781 = vmatprep.subr.mxu0 0.0
    %2782 = vmatpush1.msra.mxu0 0.0
    %2783 = vmatprep.subr.mxu0 0.0
    %2784 = vmatpush1.msra.mxu0 0.0
    %2785 = vmatprep.subr.mxu0 0.0
    %2786 = vmatpush1.msra.mxu0 0.0
    %2787 = vmatprep.subr.mxu0 0.0
    %2788 = vmatpush1.msra.mxu0 0.0
    %2789 = vmatprep.subr.mxu0 0.0
    %2790 = vmatpush1.msra.mxu0 0.0
    %2791 = vmatprep.subr.mxu0 0.0
    %2792 = vmatpush1.msra.mxu0 0.0
    %2793 = vmatprep.subr.mxu0 0.0
    %2794 = vmatpush1.msra.mxu0 0.0
    %2795 = vmatprep.subr.mxu0 0.0
    %2796 = vmatpush1.msra.mxu0 0.0
    %2797 = vmatprep.subr.mxu0 0.0
    %2798 = vmatpush1.msra.mxu0 0.0
    %2799 = vmatprep.subr.mxu0 0.0
    %2800 = vmatpush1.msra.mxu0 0.0
    %2801 = vmatprep.subr.mxu0 0.0
    %2802 = vmatpush1.msra.mxu0 0.0
    %2803 = vmatprep.subr.mxu0 0.0
    %2804 = vmatpush1.msra.mxu0 0.0
    %2805 = vmatprep.subr.mxu0 0.0
    %2806 = vmatpush1.msra.mxu0 0.0
    %2807 = vmatprep.subr.mxu0 0.0
    %2808 = vmatpush1.msra.mxu0 0.0
    %2809 = vmatprep.subr.mxu0 0.0
    %2810 = vmatpush1.msra.mxu0 0.0
    %2811 = vmatprep.subr.mxu0 0.0
    %2812 = vmatpush1.msra.mxu0 0.0
    %2813 = vmatprep.subr.mxu0 0.0
    %2814 = vmatpush1.msra.mxu0 0.0
    %2815 = vmatprep.subr.mxu0 0.0
    %2816 = vmatpush1.msra.mxu0 0.0
    %2817 = vmatprep.subr.mxu0 0.0
    %2818 = vmatpush1.msra.mxu0 0.0
    %2819 = vmatprep.subr.mxu0 0.0
    %2820 = vmatpush1.msra.mxu0 0.0
    %2821 = vmatprep.subr.mxu0 0.0
    %2822 = vmatpush1.msra.mxu0 0.0
    %2823 = vmatprep.subr.mxu0 0.0
    %2824 = vmatpush1.msra.mxu0 0.0
    %2825 = vmatprep.mubr.f32.mxu0 0.0
    %2826 = vmatmul.mubr.f32.gmra.mrb[0].mxu0 %v2759
    %v2827 = vpop.f32.mrb[0].mxu0
    %v2828 = vadd.f32 %v2755, %v2827
    %v2829 = vpop.f32.mrb[0].mxu0
    %2830 = vdwg.mxu0
    %v2831 = vadd.f32 %v2828, %v2687
    %v2832 = vxor.u32 %v2831, 2147483648
    %v2833 = vmul.f32 %v2832, 1.442695
    %v2834 = vpow.pop %v2833
    %v2835 = vadd.f32 %v2834, 1.0
    %v2836 = vrcp.pop %v2835
    %v2837 = vmul.f32 1.0, %v2836
    %v2838 = vtanh.pop %v2831
    %v2839 = vmul.f32 %v2837, %v2485
    %2841 = vrot.lane.b32.xlu0 %v2838, 64
    %v2842 = vpop.permute.xlu0 %2841
    %v2844 = vmul.f32 %v2837, %v2842
    %2846 = vrot.lane.b32.xlu0 %v2844, 32
    %v2847 = vpop.permute.xlu0 %2846
    %v2849 = vadd.f32 %v2839, %v2847
    %v2850 = vtanh.pop %v2849
    %2852 = vrot.lane.b32.xlu0 %v2850, 64
    %v2853 = vpop.permute.xlu0 %2852
    %v2855 = vmul.f32 %v2837, %v2853
    %v2856 = vld [vmem:[#allocation10] sm:$0xff]
    %v2857 = vld [vmem:[#allocation10 + $0x8] sm:$0xff]
    %v2858 = vld [vmem:[#allocation10 + $0x10] sm:$0xff]
    %v2859 = vld [vmem:[#allocation10 + $0x18] sm:$0xff]
    %v2860 = vld [vmem:[#allocation12] sm:$0xff]
    %v2861 = vld [vmem:[#allocation12 + $0x8] sm:$0xff]
    %v2862 = vld [vmem:[#allocation12 + $0x10] sm:$0xff]
    %v2863 = vld [vmem:[#allocation12 + $0x18] sm:$0xff]
    %v2864 = vld [vmem:[%s6] sm:$0x1]
    %v2865 = vsel %vm118, %v2675, 0
    %2867 = vmatprep.subr.mxu0 0.0
    %2868 = vmatpush1.msra.mxu0 %v2860
    %2869 = vmatprep.subr.mxu0 0.0
    %2870 = vmatpush1.msra.mxu0 %v2861
    %2871 = vmatprep.subr.mxu0 0.0
    %2872 = vmatpush1.msra.mxu0 %v2862
    %2873 = vmatprep.subr.mxu0 0.0
    %2874 = vmatpush1.msra.mxu0 %v2863
    %2875 = vmatprep.subr.mxu0 0.0
    %2876 = vmatpush1.msra.mxu0 0.0
    %2877 = vmatprep.subr.mxu0 0.0
    %2878 = vmatpush1.msra.mxu0 0.0
    %2879 = vmatprep.subr.mxu0 0.0
    %2880 = vmatpush1.msra.mxu0 0.0
    %2881 = vmatprep.subr.mxu0 0.0
    %2882 = vmatpush1.msra.mxu0 0.0
    %2883 = vmatprep.subr.mxu0 0.0
    %2884 = vmatpush1.msra.mxu0 0.0
    %2885 = vmatprep.subr.mxu0 0.0
    %2886 = vmatpush1.msra.mxu0 0.0
    %2887 = vmatprep.subr.mxu0 0.0
    %2888 = vmatpush1.msra.mxu0 0.0
    %2889 = vmatprep.subr.mxu0 0.0
    %2890 = vmatpush1.msra.mxu0 0.0
    %2891 = vmatprep.subr.mxu0 0.0
    %2892 = vmatpush1.msra.mxu0 0.0
    %2893 = vmatprep.subr.mxu0 0.0
    %2894 = vmatpush1.msra.mxu0 0.0
    %2895 = vmatprep.subr.mxu0 0.0
    %2896 = vmatpush1.msra.mxu0 0.0
    %2897 = vmatprep.subr.mxu0 0.0
    %2898 = vmatpush1.msra.mxu0 0.0
    %2899 = vmatprep.subr.mxu0 0.0
    %2900 = vmatpush1.msra.mxu0 0.0
    %2901 = vmatprep.subr.mxu0 0.0
    %2902 = vmatpush1.msra.mxu0 0.0
    %2903 = vmatprep.subr.mxu0 0.0
    %2904 = vmatpush1.msra.mxu0 0.0
    %2905 = vmatprep.subr.mxu0 0.0
    %2906 = vmatpush1.msra.mxu0 0.0
    %2907 = vmatprep.subr.mxu0 0.0
    %2908 = vmatpush1.msra.mxu0 0.0
    %2909 = vmatprep.subr.mxu0 0.0
    %2910 = vmatpush1.msra.mxu0 0.0
    %2911 = vmatprep.subr.mxu0 0.0
    %2912 = vmatpush1.msra.mxu0 0.0
    %2913 = vmatprep.subr.mxu0 0.0
    %2914 = vmatpush1.msra.mxu0 0.0
    %2915 = vmatprep.subr.mxu0 0.0
    %2916 = vmatpush1.msra.mxu0 0.0
    %2917 = vmatprep.subr.mxu0 0.0
    %2918 = vmatpush1.msra.mxu0 0.0
    %2919 = vmatprep.subr.mxu0 0.0
    %2920 = vmatpush1.msra.mxu0 0.0
    %2921 = vmatprep.subr.mxu0 0.0
    %2922 = vmatpush1.msra.mxu0 0.0
    %2923 = vmatprep.subr.mxu0 0.0
    %2924 = vmatpush1.msra.mxu0 0.0
    %2925 = vmatprep.subr.mxu0 0.0
    %2926 = vmatpush1.msra.mxu0 0.0
    %2927 = vmatprep.subr.mxu0 0.0
    %2928 = vmatpush1.msra.mxu0 0.0
    %2929 = vmatprep.subr.mxu0 0.0
    %2930 = vmatpush1.msra.mxu0 0.0
    %2931 = vmatprep.mubr.f32.mxu0 0.0
    %2932 = vmatmul.mubr.f32.gmra.mrb[0].mxu0 %v2865
    %v2933 = vpop.f32.mrb[0].mxu0
    %v2934 = vadd.f32 0.0, %v2933
    %v2935 = vpop.f32.mrb[0].mxu0
    %2936 = vdwg.mxu0
    %2938 = vrot.lane.b32.xlu0 %v2855, 32
    %v2939 = vpop.permute.xlu0 %2938
    %v2940 = vsel %vm118, %v2939, 0
    %2942 = vmatprep.subr.mxu0 0.0
    %2943 = vmatpush1.msra.mxu0 %v2856
    %2944 = vmatprep.subr.mxu0 0.0
    %2945 = vmatpush1.msra.mxu0 %v2857
    %2946 = vmatprep.subr.mxu0 0.0
    %2947 = vmatpush1.msra.mxu0 %v2858
    %2948 = vmatprep.subr.mxu0 0.0
    %2949 = vmatpush1.msra.mxu0 %v2859
    %2950 = vmatprep.subr.mxu0 0.0
    %2951 = vmatpush1.msra.mxu0 0.0
    %2952 = vmatprep.subr.mxu0 0.0
    %2953 = vmatpush1.msra.mxu0 0.0
    %2954 = vmatprep.subr.mxu0 0.0
    %2955 = vmatpush1.msra.mxu0 0.0
    %2956 = vmatprep.subr.mxu0 0.0
    %2957 = vmatpush1.msra.mxu0 0.0
    %2958 = vmatprep.subr.mxu0 0.0
    %2959 = vmatpush1.msra.mxu0 0.0
    %2960 = vmatprep.subr.mxu0 0.0
    %2961 = vmatpush1.msra.mxu0 0.0
    %2962 = vmatprep.subr.mxu0 0.0
    %2963 = vmatpush1.msra.mxu0 0.0
    %2964 = vmatprep.subr.mxu0 0.0
    %2965 = vmatpush1.msra.mxu0 0.0
    %2966 = vmatprep.subr.mxu0 0.0
    %2967 = vmatpush1.msra.mxu0 0.0
    %2968 = vmatprep.subr.mxu0 0.0
    %2969 = vmatpush1.msra.mxu0 0.0
    %2970 = vmatprep.subr.mxu0 0.0
    %2971 = vmatpush1.msra.mxu0 0.0
    %2972 = vmatprep.subr.mxu0 0.0
    %2973 = vmatpush1.msra.mxu0 0.0
    %2974 = vmatprep.subr.mxu0 0.0
    %2975 = vmatpush1.msra.mxu0 0.0
    %2976 = vmatprep.subr.mxu0 0.0
    %2977 = vmatpush1.msra.mxu0 0.0
    %2978 = vmatprep.subr.mxu0 0.0
    %2979 = vmatpush1.msra.mxu0 0.0
    %2980 = vmatprep.subr.mxu0 0.0
    %2981 = vmatpush1.msra.mxu0 0.0
    %2982 = vmatprep.subr.mxu0 0.0
    %2983 = vmatpush1.msra.mxu0 0.0
    %2984 = vmatprep.subr.mxu0 0.0
    %2985 = vmatpush1.msra.mxu0 0.0
    %2986 = vmatprep.subr.mxu0 0.0
    %2987 = vmatpush1.msra.mxu0 0.0
    %2988 = vmatprep.subr.mxu0 0.0
    %2989 = vmatpush1.msra.mxu0 0.0
    %2990 = vmatprep.subr.mxu0 0.0
    %2991 = vmatpush1.msra.mxu0 0.0
    %2992 = vmatprep.subr.mxu0 0.0
    %2993 = vmatpush1.msra.mxu0 0.0
    %2994 = vmatprep.subr.mxu0 0.0
    %2995 = vmatpush1.msra.mxu0 0.0
    %2996 = vmatprep.subr.mxu0 0.0
    %2997 = vmatpush1.msra.mxu0 0.0
    %2998 = vmatprep.subr.mxu0 0.0
    %2999 = vmatpush1.msra.mxu0 0.0
    %3000 = vmatprep.subr.mxu0 0.0
    %3001 = vmatpush1.msra.mxu0 0.0
    %3002 = vmatprep.subr.mxu0 0.0
    %3003 = vmatpush1.msra.mxu0 0.0
    %3004 = vmatprep.subr.mxu0 0.0
    %3005 = vmatpush1.msra.mxu0 0.0
    %3006 = vmatprep.mubr.f32.mxu0 0.0
    %3007 = vmatmul.mubr.f32.gmra.mrb[0].mxu0 %v2940
    %v3008 = vpop.f32.mrb[0].mxu0
    %v3009 = vadd.f32 %v2934, %v3008
    %v3010 = vpop.f32.mrb[0].mxu0
    %3011 = vdwg.mxu0
    %v3012 = vadd.f32 %v3009, %v2864
    %v3013 = vxor.u32 %v3012, 2147483648
    %v3014 = vmul.f32 %v3013, 1.442695
    %v3015 = vpow.pop %v3014
    %v3016 = vadd.f32 %v3015, 1.0
    %v3017 = vrcp.pop %v3016
    %v3018 = vmul.f32 1.0, %v3017
    %v3019 = vtanh.pop %v3012
    %v3020 = vmul.f32 %v3018, %v2666
    %3022 = vrot.lane.b32.xlu0 %v3019, 64
    %v3023 = vpop.permute.xlu0 %3022
    %v3025 = vmul.f32 %v3018, %v3023
    %3027 = vrot.lane.b32.xlu0 %v3025, 32
    %v3028 = vpop.permute.xlu0 %3027
    %v3030 = vadd.f32 %v3020, %v3028
    %v3031 = vtanh.pop %v3030
    %3033 = vrot.lane.b32.xlu0 %v3031, 64
    %v3034 = vpop.permute.xlu0 %3033
    %v3036 = vmul.f32 %v3018, %v3034
    %3038 = vrot.lane.b32.xlu0 %v3036, 32
    %v3039 = vpop.permute.xlu0 %3038
    %s3041 = scalar_lea.vmem [#allocation13], 7
    %3042 = vst.msk [vmem:[%s3041] sm:$0x1] %vm493, %v3039
    %3044 = vst.msk [vmem:[#allocation2] sm:$0x1] %vm493, %v2939
    %3046 = vrot.lane.b32.xlu0 %v2849, 96
    %v3047 = vpop.permute.xlu0 %3046
    %3049 = vst.msk [vmem:[#allocation3] sm:$0x1] %vm493, %v3047
    %3050 = vst.msk [vmem:[%s105] sm:$0x1] %vm493, %v3039
    %3052 = vrot.lane.b32.xlu0 %v3030, 96
    %v3053 = vpop.permute.xlu0 %3052
    %3055 = vst.msk [vmem:[%s108] sm:$0x1] %vm493, %v3053
    // Predicated region
    $region54: #{tpu_custom_call.1} parent=1 // pred_check
      _
    $region55: #{tpu_custom_call.1} parent=1 // pred_check_branch
      %3057 = sbr.rel (0) target = $region57
    $region56: #{tpu_custom_call.1} parent=1 // pred_region
      %s3059 = ssub.s32 128, 128
      %3060 = vsyncadd [#allocation6], %s3059
      %s3061 = sshll.u32 [#allocation13], 4
      %s3062 = int_to_ptr.vmem [resolvable:$true] %s3061
      %3067 = dma.vmem_to_hbm [thread:$0]  %s3062, 128, %s7, [#allocation6], 16, 16, 1
    $region57: #{tpu_custom_call.1} parent=1 // pred_fallthru
      _
    // Predicated region
    $region58: #{tpu_custom_call.1} parent=1 // pred_check
      _
    $region59: #{tpu_custom_call.1} parent=1 // pred_check_branch
      %3069 = sbr.rel (0) target = $region61
    $region60: #{tpu_custom_call.1} parent=1 // pred_region
      %3070 = dma.done [#allocation6], 128
    $region61: #{tpu_custom_call.1} parent=1 // pred_fallthru
      _
    %3071 = vsyncpa [#allocation5], 1
    %3072 = vsyncpa [#allocation8], 1
    %3073 = vsyncpa [#allocation11], 1
    %3074 = vsyncpa [#allocation6], 1

</llo_original>
